<compile_context>
chip_gen: v7x
topology: tpu7x:2x2x1
jax: 0.10.0
libtpu: 0.0.40
codegen_flags: <defaults>
</compile_context>

<pallas_src>
import jax
import jax.numpy as jnp
from jax.experimental import pallas as pl
from jax.experimental.pallas import tpu as pltpu

K_NEIGHBORS = 20
BN_EPS = 1e-5

_VMEM_LIMIT_CACHE = []


def _vmem_limit():
    """Generation-aware VMEM scoped limit: ~3/4 of physical, capped at 96 MiB."""
    if _VMEM_LIMIT_CACHE:
        return _VMEM_LIMIT_CACHE[0]
    cap = 64 << 20
    try:
        info = pltpu.get_tpu_info()
        cap = int(getattr(info, "vmem_capacity_bytes", cap) or cap)
    except Exception:
        pass
    limit = int(min(96 << 20, (cap * 3) // 4))
    _VMEM_LIMIT_CACHE.append(limit)
    return limit


# ----------------------------- tiling helpers -----------------------------
def _divisor_tile(n, pref):
    """Largest multiple of 128 that is <= pref and divides n; else full n."""
    if n <= pref:
        return n
    t = (pref // 128) * 128
    while t >= 128:
        if n % t == 0:
            return t
        t -= 128
    return n


def _fold_batches(b, per_b_bytes, budget_bytes):
    """How many batches to fold per grid step so a step moves ~budget bytes."""
    bt = max(1, min(b, budget_bytes // max(per_b_bytes, 1)))
    while b % bt:
        bt -= 1
    return bt


# ----------------------------- Kernel 1: pairwise squared distance -----------------------------
def _pairwise_sqdist_kernel(pi_ref, pj_ref, dist_ref):
    # pi_ref: [bt, TNi, 3] (rows),  pj_ref: [bt, 3, TNj] (cols, lane-dense)
    pi = pi_ref[...]
    pj = pj_ref[...]
    sqi = jnp.sum(pi * pi, axis=2, keepdims=True)           # [bt, TNi, 1]
    sqj = jnp.sum(pj * pj, axis=1, keepdims=True)           # [bt, 1, TNj]
    prod = jax.lax.dot_general(                              # [bt, TNi, TNj]
        pi, pj, (((2,), (1,)), ((0,), (0,))),
        preferred_element_type=jnp.float32)
    # matches square_distance: -2 pi.pj + |pi|^2 + |pj|^2 (may go ~-eps for coincident points)
    dist_ref[...] = sqi + sqj - 2.0 * prod


def pairwise_sqdist(xyz, xyz_t):
    # xyz: [B, N, 3], xyz_t: [B, 3, N]
    B, N, _ = xyz.shape
    tni = _divisor_tile(N, 512)
    tnj = _divisor_tile(N, 512)
    per_b = tni * tnj * 4 + (tni + tnj) * 3 * 4
    bt = _fold_batches(B, per_b, 2 << 20)
    return pl.pallas_call(
        _pairwise_sqdist_kernel,
        out_shape=jax.ShapeDtypeStruct((B, N, N), jnp.float32),
        grid=(B // bt, N // tni, N // tnj),
        in_specs=[
            pl.BlockSpec((bt, tni, 3), lambda b, i, j: (b, i, 0)),
            pl.BlockSpec((bt, 3, tnj), lambda b, i, j: (b, 0, j)),
        ],
        out_specs=pl.BlockSpec((bt, tni, tnj), lambda b, i, j: (b, i, j)),
        compiler_params=pltpu.CompilerParams(
            dimension_semantics=("parallel", "parallel", "parallel"),
            vmem_limit_bytes=_vmem_limit()),
    )(xyz, xyz_t)


# ----------------------------- Kernel 2a: BatchNorm statistics (sum & sumsq of conv1 pre-BN, no bias) -----------------------------
def _bn_stats_kernel(x_ref, nrm_ref, w1x_ref, w1n_ref, sum_ref, sq_ref):
    # x_ref: [BT, C, TN]; nrm_ref: [BT, 3, TN]; w1x: [C, C] bf16; w1n: [C, 3] bf16
    # sum_ref / sq_ref: [C, 1] resident accumulator for this batch group.
    @pl.when(pl.program_id(1) == 0)
    def _():
        sum_ref[...] = jnp.zeros_like(sum_ref)
        sq_ref[...] = jnp.zeros_like(sq_ref)

    bt = x_ref.shape[0]
    s_acc = jnp.zeros(sum_ref.shape, jnp.float32)
    q_acc = jnp.zeros(sq_ref.shape, jnp.float32)
    for b in range(bt):  # static unroll over the folded batch tile
        h = (jnp.dot(w1x_ref[...], x_ref[b].astype(jnp.bfloat16),
                     preferred_element_type=jnp.float32)
             + jnp.dot(w1n_ref[...], nrm_ref[b].astype(jnp.bfloat16),
                       preferred_element_type=jnp.float32))
        s_acc = s_acc + jnp.sum(h, axis=1, keepdims=True)
        q_acc = q_acc + jnp.sum(h * h, axis=1, keepdims=True)
    sum_ref[...] += s_acc
    sq_ref[...] += q_acc


def bn_stats(x, nrm, w1x_bf, w1n_bf, bt, tn):
    B, C, N = x.shape
    groups = B // bt
    return pl.pallas_call(
        _bn_stats_kernel,
        out_shape=(jax.ShapeDtypeStruct((groups, C, 1), jnp.float32),
                   jax.ShapeDtypeStruct((groups, C, 1), jnp.float32)),
        grid=(groups, N // tn),
        in_specs=[
            pl.BlockSpec((bt, C, tn), lambda b, n: (b, 0, n)),
            pl.BlockSpec((bt, 3, tn), lambda b, n: (b, 0, n)),
            pl.BlockSpec((C, C), lambda b, n: (0, 0)),           # bf16, resident
            pl.BlockSpec((C, 3), lambda b, n: (0, 0)),           # bf16, resident
        ],
        out_specs=(pl.BlockSpec((None, C, 1), lambda b, n: (b, 0, 0)),
                   pl.BlockSpec((None, C, 1), lambda b, n: (b, 0, 0))),
        compiler_params=pltpu.CompilerParams(
            # batch-group axis parallel (v7x: per-core partial accumulators),
            # N axis arbitrary (resident accumulator reduction).
            dimension_semantics=("parallel", "arbitrary"),
            vmem_limit_bytes=_vmem_limit()),
    )(x, nrm, w1x_bf, w1n_bf)


# ----------------------------- Kernel 2b: (BN-folded) Conv1x1 -> ReLU -> Conv1x1 -----------------------------
def _mlp_kernel(x_ref, nrm_ref, w1xs_ref, w1ns_ref, shift_ref, w2_ref, b2_ref, o_ref):
    # Weights already carry the BN scale; b1 cancels under training-mode BN.
    bt = x_ref.shape[0]
    for b in range(bt):  # static unroll over the folded batch tile
        h = (jnp.dot(w1xs_ref[...], x_ref[b].astype(jnp.bfloat16),
                     preferred_element_type=jnp.float32)
             + jnp.dot(w1ns_ref[...], nrm_ref[b].astype(jnp.bfloat16),
                       preferred_element_type=jnp.float32)
             + shift_ref[...])
        r = jnp.maximum(h, 0.0)
        o_ref[b] = (jnp.dot(w2_ref[...], r.astype(jnp.bfloat16),
                            preferred_element_type=jnp.float32)
                    + b2_ref[...]).astype(o_ref.dtype)


def mlp_apply(x, nrm, w1xs_bf, w1ns_bf, shift, w2_bf, b2, bt, tn):
    B, C, N = x.shape
    return pl.pallas_call(
        _mlp_kernel,
        out_shape=jax.ShapeDtypeStruct((B, C, N), jnp.float32),
        grid=(B // bt, N // tn),
        in_specs=[
            pl.BlockSpec((bt, C, tn), lambda b, n: (b, 0, n)),
            pl.BlockSpec((bt, 3, tn), lambda b, n: (b, 0, n)),
            pl.BlockSpec((C, C), lambda b, n: (0, 0)),           # bf16, BN-scaled, resident
            pl.BlockSpec((C, 3), lambda b, n: (0, 0)),           # bf16, BN-scaled, resident
            pl.BlockSpec((C, 1), lambda b, n: (0, 0)),           # shift (f32), resident
            pl.BlockSpec((C, C), lambda b, n: (0, 0)),           # w2 bf16, resident
            pl.BlockSpec((C, 1), lambda b, n: (0, 0)),           # b2 (f32), resident
        ],
        out_specs=pl.BlockSpec((bt, C, tn), lambda b, n: (b, 0, n)),
        compiler_params=pltpu.CompilerParams(
            dimension_semantics=("parallel", "parallel"),        # megacore-friendly
            vmem_limit_bytes=_vmem_limit()),
    )(x, nrm, w1xs_bf, w1ns_bf, shift, w2_bf, b2)


def _mlp_tiling(B, C, N):
    tn = _divisor_tile(N, 2048)
    per_b = (2 * C * tn + 3 * tn) * 4      # x block + out block + normals block (f32)
    bt = _fold_batches(B, per_b, 2 << 20)
    return bt, tn


# ----------------------------- compute_normals (Kernel 1 + JAX glue) -----------------------------
def compute_normals(xyz):
    """xyz: [B, N, 3] -> normals [B, N, 3] (eigenvector of smallest eigenvalue of local covariance)."""
    B, N, _ = xyz.shape
    k = min(K_NEIGHBORS, N)
    xyz_t = jnp.swapaxes(xyz, 1, 2)                               # [B, 3, N]
    dist = pairwise_sqdist(xyz, xyz_t)                            # Pallas kernel, f32 [B, N, N]
    # TODO(synk): top-k neighbor selection + gather have no clean Pallas equivalent; done with XLA ops.
    _, idx = jax.lax.top_k(-dist, k)                              # k smallest distances
    neighbors = jax.vmap(lambda pts, ii: pts[ii])(xyz, idx)       # [B, N, k, 3]
    d = neighbors - xyz[:, :, None, :]
    cov = jnp.einsum('bnki,bnkj->bnij', d, d)                     # [B, N, 3, 3]
    # TODO(synk): 3x3 symmetric eigendecomposition has no Pallas equivalent; jnp.linalg.eigh
    #             (eigenvector sign is arbitrary, as in the PyTorch reference).
    _, eigvecs = jnp.linalg.eigh(cov)
    return eigvecs[..., 0]                                        # [B, N, 3]


# ----------------------------- module wrapper -----------------------------
def init_params(key, in_channels):
    c = in_channels
    k1, k2, k3, k4 = jax.random.split(key, 4)
    w1 = jax.random.normal(k1, (c, c + 3), jnp.float32) * 0.1     # Conv1d(C+3, C, 1) weight
    b1 = jax.random.normal(k2, (c,), jnp.float32) * 0.01
    gamma = jnp.ones((c,), jnp.float32)                           # BatchNorm1d affine
    beta = jnp.zeros((c,), jnp.float32)
    w2 = jax.random.normal(k3, (c, c), jnp.float32) * 0.1         # Conv1d(C, C, 1) weight
    b2 = jax.random.normal(k4, (c,), jnp.float32) * 0.01
    return w1, b1, gamma, beta, w2, b2


@jax.jit
def geometric_feature_extraction(x, xyz, w1, b1, gamma, beta, w2, b2):
    """x: [B, C, N], xyz: [B, N, 3] -> [B, C, N]"""
    del b1  # conv1 bias cancels exactly under training-mode BatchNorm statistics
    B, C, N = x.shape
    normals = compute_normals(xyz)                                # [B, N, 3]
    nrm_t = jnp.swapaxes(normals, 1, 2)                           # [B, 3, N]

    # Split w1 so the channel concat of (x, normals) is never materialized.
    w1x, w1n = w1[:, :C], w1[:, C:]
    w1x_bf = w1x.astype(jnp.bfloat16)
    w1n_bf = w1n.astype(jnp.bfloat16)

    bt, tn = _mlp_tiling(B, C, N)

    # Phase 1: per-channel batch statistics of h0 = conv1(cat(x, normals)) - b1.
    s_sum, s_sq = bn_stats(x, nrm_t, w1x_bf, w1n_bf, bt, tn)      # [G,C,1] each
    total_sum = jnp.sum(s_sum, axis=0)[:, 0]
    total_sq = jnp.sum(s_sq, axis=0)[:, 0]
    count = B * N
    mean = total_sum / count
    var = jnp.maximum(total_sq / count - mean * mean, 0.0)        # biased variance (training mode)
    scale = gamma * jax.lax.rsqrt(var + BN_EPS)
    shift = (beta - mean * scale).reshape(C, 1)

    # Fold BN scale into conv1 weights (host-side, tiny), pre-cast to bf16.
    w1xs_bf = (scale[:, None] * w1x).astype(jnp.bfloat16)
    w1ns_bf = (scale[:, None] * w1n).astype(jnp.bfloat16)
    w2_bf = w2.astype(jnp.bfloat16)

    # Phase 2: (BN-folded) conv1 -> ReLU -> conv2.
    return mlp_apply(x, nrm_t, w1xs_bf, w1ns_bf, shift, w2_bf,
                     b2.reshape(C, 1), bt, tn)


if __name__ == "__main__":
    B, C, N = 2, 32, 64                                           # N >= k(=20) neighbors
    key = jax.random.PRNGKey(0)
    kx, kxyz, kp = jax.random.split(key, 3)
    x = jax.random.normal(kx, (B, C, N), jnp.float32)
    xyz = jax.random.normal(kxyz, (B, N, 3), jnp.float32)
    params = init_params(kp, C)

    out = geometric_feature_extraction(x, xyz, *params)
    out = jax.block_until_ready(out)
    assert out.shape == (B, C, N) and out.dtype == jnp.float32
    print("KERNEL_OK")
</pallas_src>

<mosaic_0001>
module attributes {stable_mosaic.version = 11 : i64} {
  func.func @_pairwise_sqdist_kernel(%arg0: i32, %arg1: i32, %arg2: i32, %arg3: memref<2x64x3xf32, #tpu.memory_space<vmem>>, %arg4: memref<2x3x64xf32, #tpu.memory_space<vmem>>, %arg5: memref<2x64x64xf32, #tpu.memory_space<vmem>>) attributes {dimension_semantics = [#tpu.dimension_semantics<parallel>, #tpu.dimension_semantics<parallel>, #tpu.dimension_semantics<parallel>], iteration_bounds = array<i64: 1, 1, 1>, scalar_prefetch = 0 : i64, scratch_operands = 0 : i64, tpu.core_type = #tpu.core_type<tc>, window_params = [{transform_indices = @transform_0, window_bounds = array<i64: 2, 64, 3>}, {transform_indices = @transform_1, window_bounds = array<i64: 2, 3, 64>}, {transform_indices = @transform_2, window_bounds = array<i64: 2, 64, 64>}]} {
    %c0 = arith.constant 0 : index
    %c0_0 = arith.constant 0 : index
    %c0_1 = arith.constant 0 : index
    %0 = vector.load %arg3[%c0, %c0_0, %c0_1] : memref<2x64x3xf32, #tpu.memory_space<vmem>>, vector<2x64x3xf32>
    %c0_2 = arith.constant 0 : index
    %c0_3 = arith.constant 0 : index
    %c0_4 = arith.constant 0 : index
    %1 = vector.load %arg4[%c0_2, %c0_3, %c0_4] : memref<2x3x64xf32, #tpu.memory_space<vmem>>, vector<2x3x64xf32>
    %2 = arith.mulf %0, %0 : vector<2x64x3xf32>
    %cst = arith.constant dense<0.000000e+00> : vector<2x64xf32>
    %3 = vector.multi_reduction <add>, %2, %cst [2] : vector<2x64x3xf32> to vector<2x64xf32>
    %4 = vector.shape_cast %3 : vector<2x64xf32> to vector<2x64x1xf32>
    %5 = arith.mulf %1, %1 : vector<2x3x64xf32>
    %cst_5 = arith.constant dense<0.000000e+00> : vector<2x64xf32>
    %6 = vector.multi_reduction <add>, %5, %cst_5 [1] : vector<2x3x64xf32> to vector<2x64xf32>
    %7 = vector.shape_cast %6 : vector<2x64xf32> to vector<2x1x64xf32>
    %cst_6 = arith.constant dense<0.000000e+00> : vector<2x64x64xf32>
    %8 = tpu.matmul %0, %1, %cst_6 {dimension_numbers = #tpu.dot_dimension_numbers<[2], [1], [1], [2], [0, 0, 0, 1, 1, 2], [0], [0]>} : vector<2x64x3xf32>, vector<2x3x64xf32>, vector<2x64x64xf32> -> vector<2x64x64xf32>
    %9 = vector.broadcast %4 : vector<2x64x1xf32> to vector<2x64x64xf32>
    %10 = vector.broadcast %7 : vector<2x1x64xf32> to vector<2x64x64xf32>
    %11 = arith.addf %9, %10 : vector<2x64x64xf32>
    %cst_7 = arith.constant 2.000000e+00 : f32
    %12 = vector.broadcast %cst_7 : f32 to vector<2x64x64xf32>
    %13 = arith.mulf %12, %8 : vector<2x64x64xf32>
    %14 = arith.subf %11, %13 : vector<2x64x64xf32>
    %c0_8 = arith.constant 0 : index
    %c0_9 = arith.constant 0 : index
    %c0_10 = arith.constant 0 : index
    %15 = vector.load %arg5[%c0_8, %c0_9, %c0_10] : memref<2x64x64xf32, #tpu.memory_space<vmem>>, vector<2x64x64xf32>
    tpu.vector_store %arg5[%c0_8, %c0_9, %c0_10], %14 {strides = array<i32>} : memref<2x64x64xf32, #tpu.memory_space<vmem>>, vector<2x64x64xf32>,
    return
  }
  func.func @transform_0(%arg0: i32, %arg1: i32, %arg2: i32) -> (i32, i32, i32) {
    %c0_i32 = arith.constant 0 : i32
    %c0_i32_0 = arith.constant 0 : i32
    return %arg0, %arg1, %c0_i32 : i32, i32, i32
  }
  func.func @transform_1(%arg0: i32, %arg1: i32, %arg2: i32) -> (i32, i32, i32) {
    %c0_i32 = arith.constant 0 : i32
    %c0_i32_0 = arith.constant 0 : i32
    return %arg0, %c0_i32, %arg2 : i32, i32, i32
  }
  func.func @transform_2(%arg0: i32, %arg1: i32, %arg2: i32) -> (i32, i32, i32) {
    %c0_i32 = arith.constant 0 : i32
    return %arg0, %arg1, %arg2 : i32, i32, i32
  }
}

module attributes {stable_mosaic.version = 11 : i64} {
  func.func @_bn_stats_kernel(%arg0: i32, %arg1: i32, %arg2: memref<2x32x64xf32, #tpu.memory_space<vmem>>, %arg3: memref<2x3x64xf32, #tpu.memory_space<vmem>>, %arg4: memref<32x32xbf16, #tpu.memory_space<vmem>>, %arg5: memref<32x3xbf16, #tpu.memory_space<vmem>>, %arg6: memref<1x32x1xf32, #tpu.memory_space<vmem>>, %arg7: memref<1x32x1xf32, #tpu.memory_space<vmem>>) attributes {dimension_semantics = [#tpu.dimension_semantics<parallel>, #tpu.dimension_semantics<arbitrary>], iteration_bounds = array<i64: 1, 1>, scalar_prefetch = 0 : i64, scratch_operands = 0 : i64, tpu.core_type = #tpu.core_type<tc>, window_params = [{transform_indices = @transform_0, window_bounds = array<i64: 2, 32, 64>}, {transform_indices = @transform_1, window_bounds = array<i64: 2, 3, 64>}, {pipeline_mode = #tpu.pipeline_mode<synchronous>, transform_indices = @transform_2, window_bounds = array<i64: 32, 32>}, {pipeline_mode = #tpu.pipeline_mode<synchronous>, transform_indices = @transform_3, window_bounds = array<i64: 32, 3>}, {transform_indices = @transform_4, window_bounds = array<i64: 1, 32, 1>}, {transform_indices = @transform_5, window_bounds = array<i64: 1, 32, 1>}]} {
    %c0_i32 = arith.constant 0 : i32
    %0 = arith.cmpi eq, %arg1, %c0_i32 : i32
    %1 = arith.extui %0 : i1 to i32
    %c0_i32_0 = arith.constant 0 : i32
    %2 = arith.cmpi ne, %1, %c0_i32_0 : i32
    scf.if %2 {
      %cst_40 = arith.constant 0.000000e+00 : f32
      %53 = vector.broadcast %cst_40 : f32 to vector<32x1xf32>
      %c0_41 = arith.constant 0 : index
      %c0_42 = arith.constant 0 : index
      %c0_43 = arith.constant 0 : index
      %54 = vector.load %arg6[%c0_41, %c0_42, %c0_43] : memref<1x32x1xf32, #tpu.memory_space<vmem>>, vector<1x32x1xf32>
      %55 = vector.shape_cast %54 : vector<1x32x1xf32> to vector<32x1xf32>
      %56 = vector.shape_cast %53 : vector<32x1xf32> to vector<1x32x1xf32>
      tpu.vector_store %arg6[%c0_41, %c0_42, %c0_43], %56 {strides = array<i32>} : memref<1x32x1xf32, #tpu.memory_space<vmem>>, vector<1x32x1xf32>,
      %cst_44 = arith.constant 0.000000e+00 : f32
      %57 = vector.broadcast %cst_44 : f32 to vector<32x1xf32>
      %c0_45 = arith.constant 0 : index
      %c0_46 = arith.constant 0 : index
      %c0_47 = arith.constant 0 : index
      %58 = vector.load %arg7[%c0_45, %c0_46, %c0_47] : memref<1x32x1xf32, #tpu.memory_space<vmem>>, vector<1x32x1xf32>
      %59 = vector.shape_cast %58 : vector<1x32x1xf32> to vector<32x1xf32>
      %60 = vector.shape_cast %57 : vector<32x1xf32> to vector<1x32x1xf32>
      tpu.vector_store %arg7[%c0_45, %c0_46, %c0_47], %60 {strides = array<i32>} : memref<1x32x1xf32, #tpu.memory_space<vmem>>, vector<1x32x1xf32>,
    } else {
    }
    %cst = arith.constant 0.000000e+00 : f32
    %3 = vector.broadcast %cst : f32 to vector<32x1xf32>
    %cst_1 = arith.constant 0.000000e+00 : f32
    %4 = vector.broadcast %cst_1 : f32 to vector<32x1xf32>
    %c0 = arith.constant 0 : index
    %c0_2 = arith.constant 0 : index
    %5 = vector.load %arg4[%c0, %c0_2] : memref<32x32xbf16, #tpu.memory_space<vmem>>, vector<32x32xbf16>
    %c0_3 = arith.constant 0 : index
    %c0_4 = arith.constant 0 : index
    %c0_5 = arith.constant 0 : index
    %6 = vector.load %arg2[%c0_3, %c0_4, %c0_5] : memref<2x32x64xf32, #tpu.memory_space<vmem>>, vector<1x32x64xf32>
    %7 = vector.shape_cast %6 : vector<1x32x64xf32> to vector<32x64xf32>
    %8 = arith.truncf %7 : vector<32x64xf32> to vector<32x64xbf16>
    %cst_6 = arith.constant dense<0.000000e+00> : vector<32x64xf32>
    %9 = tpu.matmul %5, %8, %cst_6 {dimension_numbers = #tpu.dot_dimension_numbers<[1], [0], [0], [1], [0, 0, 1, 1], [], []>} : vector<32x32xbf16>, vector<32x64xbf16>, vector<32x64xf32> -> vector<32x64xf32>
    %c0_7 = arith.constant 0 : index
    %c0_8 = arith.constant 0 : index
    %10 = vector.load %arg5[%c0_7, %c0_8] : memref<32x3xbf16, #tpu.memory_space<vmem>>, vector<32x3xbf16>
    %c0_9 = arith.constant 0 : index
    %c0_10 = arith.constant 0 : index
    %c0_11 = arith.constant 0 : index
    %11 = vector.load %arg3[%c0_9, %c0_10, %c0_11] : memref<2x3x64xf32, #tpu.memory_space<vmem>>, vector<1x3x64xf32>
    %12 = vector.shape_cast %11 : vector<1x3x64xf32> to vector<3x64xf32>
    %13 = arith.truncf %12 : vector<3x64xf32> to vector<3x64xbf16>
    %cst_12 = arith.constant dense<0.000000e+00> : vector<32x64xf32>
    %14 = tpu.matmul %10, %13, %cst_12 {dimension_numbers = #tpu.dot_dimension_numbers<[1], [0], [0], [1], [0, 0, 1, 1], [], []>} : vector<32x3xbf16>, vector<3x64xbf16>, vector<32x64xf32> -> vector<32x64xf32>
    %15 = arith.addf %9, %14 : vector<32x64xf32>
    %cst_13 = arith.constant dense<0.000000e+00> : vector<32xf32>
    %16 = vector.multi_reduction <add>, %15, %cst_13 [1] : vector<32x64xf32> to vector<32xf32>
    %17 = vector.shape_cast %16 : vector<32xf32> to vector<32x1xf32>
    %18 = arith.addf %3, %17 : vector<32x1xf32>
    %19 = arith.mulf %15, %15 : vector<32x64xf32>
    %cst_14 = arith.constant dense<0.000000e+00> : vector<32xf32>
    %20 = vector.multi_reduction <add>, %19, %cst_14 [1] : vector<32x64xf32> to vector<32xf32>
    %21 = vector.shape_cast %20 : vector<32xf32> to vector<32x1xf32>
    %22 = arith.addf %4, %21 : vector<32x1xf32>
    %c0_15 = arith.constant 0 : index
    %c0_16 = arith.constant 0 : index
    %23 = vector.load %arg4[%c0_15, %c0_16] : memref<32x32xbf16, #tpu.memory_space<vmem>>, vector<32x32xbf16>
    %c1 = arith.constant 1 : index
    %c0_17 = arith.constant 0 : index
    %c0_18 = arith.constant 0 : index
    %24 = vector.load %arg2[%c1, %c0_17, %c0_18] : memref<2x32x64xf32, #tpu.memory_space<vmem>>, vector<1x32x64xf32>
    %25 = vector.shape_cast %24 : vector<1x32x64xf32> to vector<32x64xf32>
    %26 = arith.truncf %25 : vector<32x64xf32> to vector<32x64xbf16>
    %cst_19 = arith.constant dense<0.000000e+00> : vector<32x64xf32>
    %27 = tpu.matmul %23, %26, %cst_19 {dimension_numbers = #tpu.dot_dimension_numbers<[1], [0], [0], [1], [0, 0, 1, 1], [], []>} : vector<32x32xbf16>, vector<32x64xbf16>, vector<32x64xf32> -> vector<32x64xf32>
    %c0_20 = arith.constant 0 : index
    %c0_21 = arith.constant 0 : index
    %28 = vector.load %arg5[%c0_20, %c0_21] : memref<32x3xbf16, #tpu.memory_space<vmem>>, vector<32x3xbf16>
    %c1_22 = arith.constant 1 : index
    %c0_23 = arith.constant 0 : index
    %c0_24 = arith.constant 0 : index
    %29 = vector.load %arg3[%c1_22, %c0_23, %c0_24] : memref<2x3x64xf32, #tpu.memory_space<vmem>>, vector<1x3x64xf32>
    %30 = vector.shape_cast %29 : vector<1x3x64xf32> to vector<3x64xf32>
    %31 = arith.truncf %30 : vector<3x64xf32> to vector<3x64xbf16>
    %cst_25 = arith.constant dense<0.000000e+00> : vector<32x64xf32>
    %32 = tpu.matmul %28, %31, %cst_25 {dimension_numbers = #tpu.dot_dimension_numbers<[1], [0], [0], [1], [0, 0, 1, 1], [], []>} : vector<32x3xbf16>, vector<3x64xbf16>, vector<32x64xf32> -> vector<32x64xf32>
    %33 = arith.addf %27, %32 : vector<32x64xf32>
    %cst_26 = arith.constant dense<0.000000e+00> : vector<32xf32>
    %34 = vector.multi_reduction <add>, %33, %cst_26 [1] : vector<32x64xf32> to vector<32xf32>
    %35 = vector.shape_cast %34 : vector<32xf32> to vector<32x1xf32>
    %36 = arith.addf %18, %35 : vector<32x1xf32>
    %37 = arith.mulf %33, %33 : vector<32x64xf32>
    %cst_27 = arith.constant dense<0.000000e+00> : vector<32xf32>
    %38 = vector.multi_reduction <add>, %37, %cst_27 [1] : vector<32x64xf32> to vector<32xf32>
    %39 = vector.shape_cast %38 : vector<32xf32> to vector<32x1xf32>
    %40 = arith.addf %22, %39 : vector<32x1xf32>
    %c0_28 = arith.constant 0 : index
    %c0_29 = arith.constant 0 : index
    %c0_30 = arith.constant 0 : index
    %41 = vector.load %arg6[%c0_28, %c0_29, %c0_30] : memref<1x32x1xf32, #tpu.memory_space<vmem>>, vector<1x32x1xf32>
    %42 = vector.shape_cast %41 : vector<1x32x1xf32> to vector<32x1xf32>
    %43 = arith.addf %42, %36 : vector<32x1xf32>
    %c0_31 = arith.constant 0 : index
    %c0_32 = arith.constant 0 : index
    %c0_33 = arith.constant 0 : index
    %44 = vector.load %arg6[%c0_31, %c0_32, %c0_33] : memref<1x32x1xf32, #tpu.memory_space<vmem>>, vector<1x32x1xf32>
    %45 = vector.shape_cast %44 : vector<1x32x1xf32> to vector<32x1xf32>
    %46 = vector.shape_cast %43 : vector<32x1xf32> to vector<1x32x1xf32>
    tpu.vector_store %arg6[%c0_31, %c0_32, %c0_33], %46 {strides = array<i32>} : memref<1x32x1xf32, #tpu.memory_space<vmem>>, vector<1x32x1xf32>,
    %c0_34 = arith.constant 0 : index
    %c0_35 = arith.constant 0 : index
    %c0_36 = arith.constant 0 : index
    %47 = vector.load %arg7[%c0_34, %c0_35, %c0_36] : memref<1x32x1xf32, #tpu.memory_space<vmem>>, vector<1x32x1xf32>
    %48 = vector.shape_cast %47 : vector<1x32x1xf32> to vector<32x1xf32>
    %49 = arith.addf %48, %40 : vector<32x1xf32>
    %c0_37 = arith.constant 0 : index
    %c0_38 = arith.constant 0 : index
    %c0_39 = arith.constant 0 : index
    %50 = vector.load %arg7[%c0_37, %c0_38, %c0_39] : memref<1x32x1xf32, #tpu.memory_space<vmem>>, vector<1x32x1xf32>
    %51 = vector.shape_cast %50 : vector<1x32x1xf32> to vector<32x1xf32>
    %52 = vector.shape_cast %49 : vector<32x1xf32> to vector<1x32x1xf32>
    tpu.vector_store %arg7[%c0_37, %c0_38, %c0_39], %52 {strides = array<i32>} : memref<1x32x1xf32, #tpu.memory_space<vmem>>, vector<1x32x1xf32>,
    return
  }
  func.func @transform_0(%arg0: i32, %arg1: i32) -> (i32, i32, i32) {
    %c0_i32 = arith.constant 0 : i32
    %c0_i32_0 = arith.constant 0 : i32
    return %arg0, %c0_i32, %arg1 : i32, i32, i32
  }
  func.func @transform_1(%arg0: i32, %arg1: i32) -> (i32, i32, i32) {
    %c0_i32 = arith.constant 0 : i32
    %c0_i32_0 = arith.constant 0 : i32
    return %arg0, %c0_i32, %arg1 : i32, i32, i32
  }
  func.func @transform_2(%arg0: i32, %arg1: i32) -> (i32, i32) {
    %c0_i32 = arith.constant 0 : i32
    %c0_i32_0 = arith.constant 0 : i32
    %c0_i32_1 = arith.constant 0 : i32
    return %c0_i32, %c0_i32_0 : i32, i32
  }
  func.func @transform_3(%arg0: i32, %arg1: i32) -> (i32, i32) {
    %c0_i32 = arith.constant 0 : i32
    %c0_i32_0 = arith.constant 0 : i32
    %c0_i32_1 = arith.constant 0 : i32
    return %c0_i32, %c0_i32_0 : i32, i32
  }
  func.func @transform_4(%arg0: i32, %arg1: i32) -> (i32, i32, i32) {
    %c0_i32 = arith.constant 0 : i32
    %c0_i32_0 = arith.constant 0 : i32
    %c0_i32_1 = arith.constant 0 : i32
    return %arg0, %c0_i32, %c0_i32_0 : i32, i32, i32
  }
  func.func @transform_5(%arg0: i32, %arg1: i32) -> (i32, i32, i32) {
    %c0_i32 = arith.constant 0 : i32
    %c0_i32_0 = arith.constant 0 : i32
    %c0_i32_1 = arith.constant 0 : i32
    return %arg0, %c0_i32, %c0_i32_0 : i32, i32, i32
  }
}

module attributes {stable_mosaic.version = 11 : i64} {
  func.func @_mlp_kernel(%arg0: i32, %arg1: i32, %arg2: memref<2x32x64xf32, #tpu.memory_space<vmem>>, %arg3: memref<2x3x64xf32, #tpu.memory_space<vmem>>, %arg4: memref<32x32xbf16, #tpu.memory_space<vmem>>, %arg5: memref<32x3xbf16, #tpu.memory_space<vmem>>, %arg6: memref<32x1xf32, #tpu.memory_space<vmem>>, %arg7: memref<32x32xbf16, #tpu.memory_space<vmem>>, %arg8: memref<32x1xf32, #tpu.memory_space<vmem>>, %arg9: memref<2x32x64xf32, #tpu.memory_space<vmem>>) attributes {dimension_semantics = [#tpu.dimension_semantics<parallel>, #tpu.dimension_semantics<parallel>], iteration_bounds = array<i64: 1, 1>, scalar_prefetch = 0 : i64, scratch_operands = 0 : i64, tpu.core_type = #tpu.core_type<tc>, window_params = [{transform_indices = @transform_0, window_bounds = array<i64: 2, 32, 64>}, {transform_indices = @transform_1, window_bounds = array<i64: 2, 3, 64>}, {pipeline_mode = #tpu.pipeline_mode<synchronous>, transform_indices = @transform_2, window_bounds = array<i64: 32, 32>}, {pipeline_mode = #tpu.pipeline_mode<synchronous>, transform_indices = @transform_3, window_bounds = array<i64: 32, 3>}, {pipeline_mode = #tpu.pipeline_mode<synchronous>, transform_indices = @transform_4, window_bounds = array<i64: 32, 1>}, {pipeline_mode = #tpu.pipeline_mode<synchronous>, transform_indices = @transform_5, window_bounds = array<i64: 32, 32>}, {pipeline_mode = #tpu.pipeline_mode<synchronous>, transform_indices = @transform_6, window_bounds = array<i64: 32, 1>}, {transform_indices = @transform_7, window_bounds = array<i64: 2, 32, 64>}]} {
    %c0 = arith.constant 0 : index
    %c0_0 = arith.constant 0 : index
    %0 = vector.load %arg4[%c0, %c0_0] : memref<32x32xbf16, #tpu.memory_space<vmem>>, vector<32x32xbf16>
    %c0_1 = arith.constant 0 : index
    %c0_2 = arith.constant 0 : index
    %c0_3 = arith.constant 0 : index
    %1 = vector.load %arg2[%c0_1, %c0_2, %c0_3] : memref<2x32x64xf32, #tpu.memory_space<vmem>>, vector<1x32x64xf32>
    %2 = vector.shape_cast %1 : vector<1x32x64xf32> to vector<32x64xf32>
    %3 = arith.truncf %2 : vector<32x64xf32> to vector<32x64xbf16>
    %cst = arith.constant dense<0.000000e+00> : vector<32x64xf32>
    %4 = tpu.matmul %0, %3, %cst {dimension_numbers = #tpu.dot_dimension_numbers<[1], [0], [0], [1], [0, 0, 1, 1], [], []>} : vector<32x32xbf16>, vector<32x64xbf16>, vector<32x64xf32> -> vector<32x64xf32>
    %c0_4 = arith.constant 0 : index
    %c0_5 = arith.constant 0 : index
    %5 = vector.load %arg5[%c0_4, %c0_5] : memref<32x3xbf16, #tpu.memory_space<vmem>>, vector<32x3xbf16>
    %c0_6 = arith.constant 0 : index
    %c0_7 = arith.constant 0 : index
    %c0_8 = arith.constant 0 : index
    %6 = vector.load %arg3[%c0_6, %c0_7, %c0_8] : memref<2x3x64xf32, #tpu.memory_space<vmem>>, vector<1x3x64xf32>
    %7 = vector.shape_cast %6 : vector<1x3x64xf32> to vector<3x64xf32>
    %8 = arith.truncf %7 : vector<3x64xf32> to vector<3x64xbf16>
    %cst_9 = arith.constant dense<0.000000e+00> : vector<32x64xf32>
    %9 = tpu.matmul %5, %8, %cst_9 {dimension_numbers = #tpu.dot_dimension_numbers<[1], [0], [0], [1], [0, 0, 1, 1], [], []>} : vector<32x3xbf16>, vector<3x64xbf16>, vector<32x64xf32> -> vector<32x64xf32>
    %10 = arith.addf %4, %9 : vector<32x64xf32>
    %c0_10 = arith.constant 0 : index
    %c0_11 = arith.constant 0 : index
    %11 = vector.load %arg6[%c0_10, %c0_11] : memref<32x1xf32, #tpu.memory_space<vmem>>, vector<32x1xf32>
    %12 = vector.broadcast %11 : vector<32x1xf32> to vector<32x64xf32>
    %13 = arith.addf %10, %12 : vector<32x64xf32>
    %cst_12 = arith.constant 0.000000e+00 : f32
    %14 = vector.broadcast %cst_12 : f32 to vector<32x64xf32>
    %15 = arith.maximumf %13, %14 : vector<32x64xf32>
    %c0_13 = arith.constant 0 : index
    %c0_14 = arith.constant 0 : index
    %16 = vector.load %arg7[%c0_13, %c0_14] : memref<32x32xbf16, #tpu.memory_space<vmem>>, vector<32x32xbf16>
    %17 = arith.truncf %15 : vector<32x64xf32> to vector<32x64xbf16>
    %cst_15 = arith.constant dense<0.000000e+00> : vector<32x64xf32>
    %18 = tpu.matmul %16, %17, %cst_15 {dimension_numbers = #tpu.dot_dimension_numbers<[1], [0], [0], [1], [0, 0, 1, 1], [], []>} : vector<32x32xbf16>, vector<32x64xbf16>, vector<32x64xf32> -> vector<32x64xf32>
    %c0_16 = arith.constant 0 : index
    %c0_17 = arith.constant 0 : index
    %19 = vector.load %arg8[%c0_16, %c0_17] : memref<32x1xf32, #tpu.memory_space<vmem>>, vector<32x1xf32>
    %20 = vector.broadcast %19 : vector<32x1xf32> to vector<32x64xf32>
    %21 = arith.addf %18, %20 : vector<32x64xf32>
    %c0_18 = arith.constant 0 : index
    %c0_19 = arith.constant 0 : index
    %c0_20 = arith.constant 0 : index
    %22 = vector.load %arg9[%c0_18, %c0_19, %c0_20] : memref<2x32x64xf32, #tpu.memory_space<vmem>>, vector<1x32x64xf32>
    %23 = vector.shape_cast %22 : vector<1x32x64xf32> to vector<32x64xf32>
    %24 = vector.shape_cast %21 : vector<32x64xf32> to vector<1x32x64xf32>
    tpu.vector_store %arg9[%c0_18, %c0_19, %c0_20], %24 {strides = array<i32>} : memref<2x32x64xf32, #tpu.memory_space<vmem>>, vector<1x32x64xf32>,
    %c0_21 = arith.constant 0 : index
    %c0_22 = arith.constant 0 : index
    %25 = vector.load %arg4[%c0_21, %c0_22] : memref<32x32xbf16, #tpu.memory_space<vmem>>, vector<32x32xbf16>
    %c1 = arith.constant 1 : index
    %c0_23 = arith.constant 0 : index
    %c0_24 = arith.constant 0 : index
    %26 = vector.load %arg2[%c1, %c0_23, %c0_24] : memref<2x32x64xf32, #tpu.memory_space<vmem>>, vector<1x32x64xf32>
    %27 = vector.shape_cast %26 : vector<1x32x64xf32> to vector<32x64xf32>
    %28 = arith.truncf %27 : vector<32x64xf32> to vector<32x64xbf16>
    %cst_25 = arith.constant dense<0.000000e+00> : vector<32x64xf32>
    %29 = tpu.matmul %25, %28, %cst_25 {dimension_numbers = #tpu.dot_dimension_numbers<[1], [0], [0], [1], [0, 0, 1, 1], [], []>} : vector<32x32xbf16>, vector<32x64xbf16>, vector<32x64xf32> -> vector<32x64xf32>
    %c0_26 = arith.constant 0 : index
    %c0_27 = arith.constant 0 : index
    %30 = vector.load %arg5[%c0_26, %c0_27] : memref<32x3xbf16, #tpu.memory_space<vmem>>, vector<32x3xbf16>
    %c1_28 = arith.constant 1 : index
    %c0_29 = arith.constant 0 : index
    %c0_30 = arith.constant 0 : index
    %31 = vector.load %arg3[%c1_28, %c0_29, %c0_30] : memref<2x3x64xf32, #tpu.memory_space<vmem>>, vector<1x3x64xf32>
    %32 = vector.shape_cast %31 : vector<1x3x64xf32> to vector<3x64xf32>
    %33 = arith.truncf %32 : vector<3x64xf32> to vector<3x64xbf16>
    %cst_31 = arith.constant dense<0.000000e+00> : vector<32x64xf32>
    %34 = tpu.matmul %30, %33, %cst_31 {dimension_numbers = #tpu.dot_dimension_numbers<[1], [0], [0], [1], [0, 0, 1, 1], [], []>} : vector<32x3xbf16>, vector<3x64xbf16>, vector<32x64xf32> -> vector<32x64xf32>
    %35 = arith.addf %29, %34 : vector<32x64xf32>
    %c0_32 = arith.constant 0 : index
    %c0_33 = arith.constant 0 : index
    %36 = vector.load %arg6[%c0_32, %c0_33] : memref<32x1xf32, #tpu.memory_space<vmem>>, vector<32x1xf32>
    %37 = vector.broadcast %36 : vector<32x1xf32> to vector<32x64xf32>
    %38 = arith.addf %35, %37 : vector<32x64xf32>
    %cst_34 = arith.constant 0.000000e+00 : f32
    %39 = vector.broadcast %cst_34 : f32 to vector<32x64xf32>
    %40 = arith.maximumf %38, %39 : vector<32x64xf32>
    %c0_35 = arith.constant 0 : index
    %c0_36 = arith.constant 0 : index
    %41 = vector.load %arg7[%c0_35, %c0_36] : memref<32x32xbf16, #tpu.memory_space<vmem>>, vector<32x32xbf16>
    %42 = arith.truncf %40 : vector<32x64xf32> to vector<32x64xbf16>
    %cst_37 = arith.constant dense<0.000000e+00> : vector<32x64xf32>
    %43 = tpu.matmul %41, %42, %cst_37 {dimension_numbers = #tpu.dot_dimension_numbers<[1], [0], [0], [1], [0, 0, 1, 1], [], []>} : vector<32x32xbf16>, vector<32x64xbf16>, vector<32x64xf32> -> vector<32x64xf32>
    %c0_38 = arith.constant 0 : index
    %c0_39 = arith.constant 0 : index
    %44 = vector.load %arg8[%c0_38, %c0_39] : memref<32x1xf32, #tpu.memory_space<vmem>>, vector<32x1xf32>
    %45 = vector.broadcast %44 : vector<32x1xf32> to vector<32x64xf32>
    %46 = arith.addf %43, %45 : vector<32x64xf32>
    %c1_40 = arith.constant 1 : index
    %c0_41 = arith.constant 0 : index
    %c0_42 = arith.constant 0 : index
    %47 = vector.load %arg9[%c1_40, %c0_41, %c0_42] : memref<2x32x64xf32, #tpu.memory_space<vmem>>, vector<1x32x64xf32>
    %48 = vector.shape_cast %47 : vector<1x32x64xf32> to vector<32x64xf32>
    %49 = vector.shape_cast %46 : vector<32x64xf32> to vector<1x32x64xf32>
    tpu.vector_store %arg9[%c1_40, %c0_41, %c0_42], %49 {strides = array<i32>} : memref<2x32x64xf32, #tpu.memory_space<vmem>>, vector<1x32x64xf32>,
    return
  }
  func.func @transform_0(%arg0: i32, %arg1: i32) -> (i32, i32, i32) {
    %c0_i32 = arith.constant 0 : i32
    %c0_i32_0 = arith.constant 0 : i32
    return %arg0, %c0_i32, %arg1 : i32, i32, i32
  }
  func.func @transform_1(%arg0: i32, %arg1: i32) -> (i32, i32, i32) {
    %c0_i32 = arith.constant 0 : i32
    %c0_i32_0 = arith.constant 0 : i32
    return %arg0, %c0_i32, %arg1 : i32, i32, i32
  }
  func.func @transform_2(%arg0: i32, %arg1: i32) -> (i32, i32) {
    %c0_i32 = arith.constant 0 : i32
    %c0_i32_0 = arith.constant 0 : i32
    %c0_i32_1 = arith.constant 0 : i32
    return %c0_i32, %c0_i32_0 : i32, i32
  }
  func.func @transform_3(%arg0: i32, %arg1: i32) -> (i32, i32) {
    %c0_i32 = arith.constant 0 : i32
    %c0_i32_0 = arith.constant 0 : i32
    %c0_i32_1 = arith.constant 0 : i32
    return %c0_i32, %c0_i32_0 : i32, i32
  }
  func.func @transform_4(%arg0: i32, %arg1: i32) -> (i32, i32) {
    %c0_i32 = arith.constant 0 : i32
    %c0_i32_0 = arith.constant 0 : i32
    %c0_i32_1 = arith.constant 0 : i32
    return %c0_i32, %c0_i32_0 : i32, i32
  }
  func.func @transform_5(%arg0: i32, %arg1: i32) -> (i32, i32) {
    %c0_i32 = arith.constant 0 : i32
    %c0_i32_0 = arith.constant 0 : i32
    %c0_i32_1 = arith.constant 0 : i32
    return %c0_i32, %c0_i32_0 : i32, i32
  }
  func.func @transform_6(%arg0: i32, %arg1: i32) -> (i32, i32) {
    %c0_i32 = arith.constant 0 : i32
    %c0_i32_0 = arith.constant 0 : i32
    %c0_i32_1 = arith.constant 0 : i32
    return %c0_i32, %c0_i32_0 : i32, i32
  }
  func.func @transform_7(%arg0: i32, %arg1: i32) -> (i32, i32, i32) {
    %c0_i32 = arith.constant 0 : i32
    %c0_i32_0 = arith.constant 0 : i32
    return %arg0, %c0_i32, %arg1 : i32, i32, i32
  }
}

</mosaic_0001>

<llo_original>
// kernel: neg.1
$region0: #{neg.1}
  #allocation0 [shape = 's32[1]{0}', space=sflag, size = 0x4, scoped, tag = 'scoped memory for neg.1']
  %s0 = inlined_call_operand.vmem [shape: f32[2,64,64], index: 0, kind: input, shape index: {}]
  %s1 = inlined_call_operand.vmem [shape: f32[2,64,64], index: 1, kind: output, shape index: {}]
  %v2 = vld [vmem:[%s0] sm:$0xff]
  %3 = xla_tuple %v2
  %4 = xla_tuple %3
  %v5 = vxor.u32 %v2, 2147483648
  %6 = xla_tuple %v5
  %7 = vst [vmem:[%s1] sm:$0xff] %v5
  %s8 = scalar_lea.vmem %s0, 64
  %v9 = vld [vmem:[%s8] sm:$0xff]
  %10 = xla_tuple %v9
  %11 = xla_tuple %10
  %v12 = vxor.u32 %v9, 2147483648
  %13 = xla_tuple %v12
  %s14 = scalar_lea.vmem %s1, 64
  %15 = vst [vmem:[%s14] sm:$0xff] %v12
  %s16 = scalar_lea.vmem %s0, 8
  %v17 = vld [vmem:[%s16] sm:$0xff]
  %18 = xla_tuple %v17
  %19 = xla_tuple %18
  %v20 = vxor.u32 %v17, 2147483648
  %21 = xla_tuple %v20
  %s22 = scalar_lea.vmem %s1, 8
  %23 = vst [vmem:[%s22] sm:$0xff] %v20
  %s24 = scalar_lea.vmem %s0, 72
  %v25 = vld [vmem:[%s24] sm:$0xff]
  %26 = xla_tuple %v25
  %27 = xla_tuple %26
  %v28 = vxor.u32 %v25, 2147483648
  %29 = xla_tuple %v28
  %s30 = scalar_lea.vmem %s1, 72
  %31 = vst [vmem:[%s30] sm:$0xff] %v28
  %s32 = scalar_lea.vmem %s0, 16
  %v33 = vld [vmem:[%s32] sm:$0xff]
  %34 = xla_tuple %v33
  %35 = xla_tuple %34
  %v36 = vxor.u32 %v33, 2147483648
  %37 = xla_tuple %v36
  %s38 = scalar_lea.vmem %s1, 16
  %39 = vst [vmem:[%s38] sm:$0xff] %v36
  %s40 = scalar_lea.vmem %s0, 80
  %v41 = vld [vmem:[%s40] sm:$0xff]
  %42 = xla_tuple %v41
  %43 = xla_tuple %42
  %v44 = vxor.u32 %v41, 2147483648
  %45 = xla_tuple %v44
  %s46 = scalar_lea.vmem %s1, 80
  %47 = vst [vmem:[%s46] sm:$0xff] %v44
  %s48 = scalar_lea.vmem %s0, 24
  %v49 = vld [vmem:[%s48] sm:$0xff]
  %50 = xla_tuple %v49
  %51 = xla_tuple %50
  %v52 = vxor.u32 %v49, 2147483648
  %53 = xla_tuple %v52
  %s54 = scalar_lea.vmem %s1, 24
  %55 = vst [vmem:[%s54] sm:$0xff] %v52
  %s56 = scalar_lea.vmem %s0, 88
  %v57 = vld [vmem:[%s56] sm:$0xff]
  %58 = xla_tuple %v57
  %59 = xla_tuple %58
  %v60 = vxor.u32 %v57, 2147483648
  %61 = xla_tuple %v60
  %s62 = scalar_lea.vmem %s1, 88
  %63 = vst [vmem:[%s62] sm:$0xff] %v60
  %s64 = scalar_lea.vmem %s0, 32
  %v65 = vld [vmem:[%s64] sm:$0xff]
  %66 = xla_tuple %v65
  %67 = xla_tuple %66
  %v68 = vxor.u32 %v65, 2147483648
  %69 = xla_tuple %v68
  %s70 = scalar_lea.vmem %s1, 32
  %71 = vst [vmem:[%s70] sm:$0xff] %v68
  %s72 = scalar_lea.vmem %s0, 96
  %v73 = vld [vmem:[%s72] sm:$0xff]
  %74 = xla_tuple %v73
  %75 = xla_tuple %74
  %v76 = vxor.u32 %v73, 2147483648
  %77 = xla_tuple %v76
  %s78 = scalar_lea.vmem %s1, 96
  %79 = vst [vmem:[%s78] sm:$0xff] %v76
  %s80 = scalar_lea.vmem %s0, 40
  %v81 = vld [vmem:[%s80] sm:$0xff]
  %82 = xla_tuple %v81
  %83 = xla_tuple %82
  %v84 = vxor.u32 %v81, 2147483648
  %85 = xla_tuple %v84
  %s86 = scalar_lea.vmem %s1, 40
  %87 = vst [vmem:[%s86] sm:$0xff] %v84
  %s88 = scalar_lea.vmem %s0, 104
  %v89 = vld [vmem:[%s88] sm:$0xff]
  %90 = xla_tuple %v89
  %91 = xla_tuple %90
  %v92 = vxor.u32 %v89, 2147483648
  %93 = xla_tuple %v92
  %s94 = scalar_lea.vmem %s1, 104
  %95 = vst [vmem:[%s94] sm:$0xff] %v92
  %s96 = scalar_lea.vmem %s0, 48
  %v97 = vld [vmem:[%s96] sm:$0xff]
  %98 = xla_tuple %v97
  %99 = xla_tuple %98
  %v100 = vxor.u32 %v97, 2147483648
  %101 = xla_tuple %v100
  %s102 = scalar_lea.vmem %s1, 48
  %103 = vst [vmem:[%s102] sm:$0xff] %v100
  %s104 = scalar_lea.vmem %s0, 112
  %v105 = vld [vmem:[%s104] sm:$0xff]
  %106 = xla_tuple %v105
  %107 = xla_tuple %106
  %v108 = vxor.u32 %v105, 2147483648
  %109 = xla_tuple %v108
  %s110 = scalar_lea.vmem %s1, 112
  %111 = vst [vmem:[%s110] sm:$0xff] %v108
  %s112 = scalar_lea.vmem %s0, 56
  %v113 = vld [vmem:[%s112] sm:$0xff]
  %114 = xla_tuple %v113
  %115 = xla_tuple %114
  %v116 = vxor.u32 %v113, 2147483648
  %117 = xla_tuple %v116
  %s118 = scalar_lea.vmem %s1, 56
  %119 = vst [vmem:[%s118] sm:$0xff] %v116
  %s120 = scalar_lea.vmem %s0, 120
  %v121 = vld [vmem:[%s120] sm:$0xff]
  %122 = xla_tuple %v121
  %123 = xla_tuple %122
  %v124 = vxor.u32 %v121, 2147483648
  %125 = xla_tuple %v124
  %s126 = scalar_lea.vmem %s1, 120
  %127 = vst [vmem:[%s126] sm:$0xff] %v124

// kernel: geometric_feature_extraction.3
$region0: #{geometric_feature_extraction.3}
  #allocation0 [shape = 'u32[]', space=smem, size = 0x4, offset = 0x4, fixed_abs, tag = 'smem constant byte address 0x4 - core index']
  #allocation1 [shape = 'u32[144,128]{1,0:T(1,128)}', space=vmem, size = 0x12000, scoped, tag = 'internal scratch']
  %s0 = inlined_call_operand.vmem [shape: f32[2,64,3], index: 0, kind: input, shape index: {}]
  %s1 = inlined_call_operand.vmem [shape: f32[2,3,64], index: 1, kind: input, shape index: {}]
  %s2 = inlined_call_operand.vmem [shape: f32[2,64,64], index: 2, kind: output, shape index: {}]
  %s3 = sld [smem:[#allocation0]]
  $region18: #{geometric_feature_extraction.3} parent=0
    _
  %s5 = ssub.s32 1, %s3
  %s6 = scalar_select 0, %s5, %s3
  // Predicated region
  $region2: #{geometric_feature_extraction.3} parent=0 // pred_check
    _
  $region3: #{geometric_feature_extraction.3} parent=0 // pred_check_branch
    %8 = sbr.rel (0) target = $region5
  $region4: #{geometric_feature_extraction.3} parent=0 // pred_region
    _
  $region5: #{geometric_feature_extraction.3} parent=0 // pred_fallthru
    _
  // Predicated region
  $region6: #{geometric_feature_extraction.3} parent=0 // pred_check
    _
  $region7: #{geometric_feature_extraction.3} parent=0 // pred_check_branch
    %10 = sbr.rel (0) target = $region9
  $region8: #{geometric_feature_extraction.3} parent=0 // pred_region
    _
  $region9: #{geometric_feature_extraction.3} parent=0 // pred_fallthru
    _
  %v11 = vld [vmem:[%s0] sm:$0xff]
  %v12 = vld [vmem:[%s0 + $0x8] sm:$0xff]
  %v13 = vld [vmem:[%s0 + $0x10] sm:$0xff]
  %v14 = vld [vmem:[%s0 + $0x18] sm:$0xff]
  %v15 = vld [vmem:[%s0 + $0x20] sm:$0xff]
  %v16 = vld [vmem:[%s0 + $0x28] sm:$0xff]
  %v17 = vld [vmem:[%s0 + $0x30] sm:$0xff]
  %v18 = vld [vmem:[%s0 + $0x38] sm:$0xff]
  %v19 = vld [vmem:[%s0 + $0x40] sm:$0xff]
  %v20 = vld [vmem:[%s0 + $0x48] sm:$0xff]
  %v21 = vld [vmem:[%s0 + $0x50] sm:$0xff]
  %v22 = vld [vmem:[%s0 + $0x58] sm:$0xff]
  %v23 = vld [vmem:[%s0 + $0x60] sm:$0xff]
  %v24 = vld [vmem:[%s0 + $0x68] sm:$0xff]
  %v25 = vld [vmem:[%s0 + $0x70] sm:$0xff]
  %v26 = vld [vmem:[%s0 + $0x78] sm:$0xff]
  %v27 = vld [vmem:[%s1] sm:$0x7]
  %v28 = vld [vmem:[%s1 + $0x4] sm:$0x7]
  %v29 = vmul.f32 %v11, %v11
  %v30 = vmul.f32 %v12, %v12
  %v31 = vmul.f32 %v13, %v13
  %v32 = vmul.f32 %v14, %v14
  %v33 = vmul.f32 %v15, %v15
  %v34 = vmul.f32 %v16, %v16
  %v35 = vmul.f32 %v17, %v17
  %v36 = vmul.f32 %v18, %v18
  %v37 = vmul.f32 %v19, %v19
  %v38 = vmul.f32 %v20, %v20
  %v39 = vmul.f32 %v21, %v21
  %v40 = vmul.f32 %v22, %v22
  %v41 = vmul.f32 %v23, %v23
  %v42 = vmul.f32 %v24, %v24
  %v43 = vmul.f32 %v25, %v25
  %v44 = vmul.f32 %v26, %v26
  %vm45 = vcmask 23552
  %v46 = vsel %vm45, %v29, 0.0
  %47 = vadd.xlane.f32.xlu0 %v46
  %v48 = vpop.xlane.xlu0 %47
  %v49 = vsel %vm45, %v30, 0.0
  %50 = vadd.xlane.f32.xlu0 %v49
  %v51 = vpop.xlane.xlu0 %50
  %v52 = vsel %vm45, %v31, 0.0
  %53 = vadd.xlane.f32.xlu0 %v52
  %v54 = vpop.xlane.xlu0 %53
  %v55 = vsel %vm45, %v32, 0.0
  %56 = vadd.xlane.f32.xlu0 %v55
  %v57 = vpop.xlane.xlu0 %56
  %v58 = vsel %vm45, %v33, 0.0
  %59 = vadd.xlane.f32.xlu0 %v58
  %v60 = vpop.xlane.xlu0 %59
  %v61 = vsel %vm45, %v34, 0.0
  %62 = vadd.xlane.f32.xlu0 %v61
  %v63 = vpop.xlane.xlu0 %62
  %v64 = vsel %vm45, %v35, 0.0
  %65 = vadd.xlane.f32.xlu0 %v64
  %v66 = vpop.xlane.xlu0 %65
  %v67 = vsel %vm45, %v36, 0.0
  %68 = vadd.xlane.f32.xlu0 %v67
  %v69 = vpop.xlane.xlu0 %68
  %v70 = vsel %vm45, %v37, 0.0
  %71 = vadd.xlane.f32.xlu0 %v70
  %v72 = vpop.xlane.xlu0 %71
  %v73 = vsel %vm45, %v38, 0.0
  %74 = vadd.xlane.f32.xlu0 %v73
  %v75 = vpop.xlane.xlu0 %74
  %v76 = vsel %vm45, %v39, 0.0
  %77 = vadd.xlane.f32.xlu0 %v76
  %v78 = vpop.xlane.xlu0 %77
  %v79 = vsel %vm45, %v40, 0.0
  %80 = vadd.xlane.f32.xlu0 %v79
  %v81 = vpop.xlane.xlu0 %80
  %v82 = vsel %vm45, %v41, 0.0
  %83 = vadd.xlane.f32.xlu0 %v82
  %v84 = vpop.xlane.xlu0 %83
  %v85 = vsel %vm45, %v42, 0.0
  %86 = vadd.xlane.f32.xlu0 %v85
  %v87 = vpop.xlane.xlu0 %86
  %v88 = vsel %vm45, %v43, 0.0
  %89 = vadd.xlane.f32.xlu0 %v88
  %v90 = vpop.xlane.xlu0 %89
  %v91 = vsel %vm45, %v44, 0.0
  %92 = vadd.xlane.f32.xlu0 %v91
  %v93 = vpop.xlane.xlu0 %92
  %v94 = vmul.f32 %v27, %v27
  %v95 = vmul.f32 %v28, %v28
  %vm96 = vcmask 518144
  %v97 = vsel %vm96, %v94, 0.0
  %v98 = vrot.slane %v97, 4
  %v99 = vadd.f32 %v97, %v98
  %v100 = vrot.slane %v99, 2
  %v101 = vadd.f32 %v99, %v100
  %v102 = vrot.slane %v101, 1
  %v103 = vadd.f32 %v101, %v102
  %v104 = vsel %vm96, %v95, 0.0
  %v105 = vrot.slane %v104, 4
  %v106 = vadd.f32 %v104, %v105
  %v107 = vrot.slane %v106, 2
  %v108 = vadd.f32 %v106, %v107
  %v109 = vrot.slane %v108, 1
  %v110 = vadd.f32 %v108, %v109
  %v112 = vsel %vm45, %v11, 0
  %v115 = vsel %vm45, %v12, 0
  %v118 = vsel %vm45, %v13, 0
  %v121 = vsel %vm45, %v14, 0
  %v124 = vsel %vm45, %v15, 0
  %v127 = vsel %vm45, %v16, 0
  %v130 = vsel %vm45, %v17, 0
  %v133 = vsel %vm45, %v18, 0
  %vm135 = vcmask 1042432
  %v137 = vsel %vm135, %v27, 0
  %139 = vmatprep.subr.mxu0 0.0
  %140 = vmatpush1.msra.mxu0 %v137
  %141 = vmatprep.subr.mxu0 0.0
  %142 = vmatpush1.msra.mxu0 0.0
  %143 = vmatprep.subr.mxu0 0.0
  %144 = vmatpush1.msra.mxu0 0.0
  %145 = vmatprep.subr.mxu0 0.0
  %146 = vmatpush1.msra.mxu0 0.0
  %147 = vmatprep.subr.mxu0 0.0
  %148 = vmatpush1.msra.mxu0 0.0
  %149 = vmatprep.subr.mxu0 0.0
  %150 = vmatpush1.msra.mxu0 0.0
  %151 = vmatprep.subr.mxu0 0.0
  %152 = vmatpush1.msra.mxu0 0.0
  %153 = vmatprep.subr.mxu0 0.0
  %154 = vmatpush1.msra.mxu0 0.0
  %155 = vmatprep.subr.mxu0 0.0
  %156 = vmatpush1.msra.mxu0 0.0
  %157 = vmatprep.subr.mxu0 0.0
  %158 = vmatpush1.msra.mxu0 0.0
  %159 = vmatprep.subr.mxu0 0.0
  %160 = vmatpush1.msra.mxu0 0.0
  %161 = vmatprep.subr.mxu0 0.0
  %162 = vmatpush1.msra.mxu0 0.0
  %163 = vmatprep.subr.mxu0 0.0
  %164 = vmatpush1.msra.mxu0 0.0
  %165 = vmatprep.subr.mxu0 0.0
  %166 = vmatpush1.msra.mxu0 0.0
  %167 = vmatprep.subr.mxu0 0.0
  %168 = vmatpush1.msra.mxu0 0.0
  %169 = vmatprep.subr.mxu0 0.0
  %170 = vmatpush1.msra.mxu0 0.0
  %171 = vmatprep.subr.mxu0 0.0
  %172 = vmatpush1.msra.mxu0 0.0
  %173 = vmatprep.subr.mxu0 0.0
  %174 = vmatpush1.msra.mxu0 0.0
  %175 = vmatprep.subr.mxu0 0.0
  %176 = vmatpush1.msra.mxu0 0.0
  %177 = vmatprep.subr.mxu0 0.0
  %178 = vmatpush1.msra.mxu0 0.0
  %179 = vmatprep.subr.mxu0 0.0
  %180 = vmatpush1.msra.mxu0 0.0
  %181 = vmatprep.subr.mxu0 0.0
  %182 = vmatpush1.msra.mxu0 0.0
  %183 = vmatprep.subr.mxu0 0.0
  %184 = vmatpush1.msra.mxu0 0.0
  %185 = vmatprep.subr.mxu0 0.0
  %186 = vmatpush1.msra.mxu0 0.0
  %187 = vmatprep.subr.mxu0 0.0
  %188 = vmatpush1.msra.mxu0 0.0
  %189 = vmatprep.subr.mxu0 0.0
  %190 = vmatpush1.msra.mxu0 0.0
  %191 = vmatprep.subr.mxu0 0.0
  %192 = vmatpush1.msra.mxu0 0.0
  %193 = vmatprep.subr.mxu0 0.0
  %194 = vmatpush1.msra.mxu0 0.0
  %195 = vmatprep.subr.mxu0 0.0
  %196 = vmatpush1.msra.mxu0 0.0
  %197 = vmatprep.subr.mxu0 0.0
  %198 = vmatpush1.msra.mxu0 0.0
  %199 = vmatprep.subr.mxu0 0.0
  %200 = vmatpush1.msra.mxu0 0.0
  %201 = vmatprep.subr.mxu0 0.0
  %202 = vmatpush1.msra.mxu0 0.0
  %203 = vmatprep.mubr.f32.mxu0 0.0
  %204 = vmatmul.mubr.f32.gmra.mrb[0].mxu0 %v112
  %v205 = vpop.f32.mrb[0].mxu0
  %v206 = vadd.f32 0.0, %v205
  %v207 = vpop.f32.mrb[0].mxu0
  %208 = vmatprep.mubr.f32.mxu0 0.0
  %209 = vmatmul.mubr.f32.gmra.mrb[0].mxu0 %v115
  %v210 = vpop.f32.mrb[0].mxu0
  %v211 = vadd.f32 0.0, %v210
  %v212 = vpop.f32.mrb[0].mxu0
  %213 = vmatprep.mubr.f32.mxu0 0.0
  %214 = vmatmul.mubr.f32.gmra.mrb[0].mxu0 %v118
  %v215 = vpop.f32.mrb[0].mxu0
  %v216 = vadd.f32 0.0, %v215
  %v217 = vpop.f32.mrb[0].mxu0
  %218 = vmatprep.mubr.f32.mxu0 0.0
  %219 = vmatmul.mubr.f32.gmra.mrb[0].mxu0 %v121
  %v220 = vpop.f32.mrb[0].mxu0
  %v221 = vadd.f32 0.0, %v220
  %v222 = vpop.f32.mrb[0].mxu0
  %223 = vmatprep.mubr.f32.mxu0 0.0
  %224 = vmatmul.mubr.f32.gmra.mrb[0].mxu0 %v124
  %v225 = vpop.f32.mrb[0].mxu0
  %v226 = vadd.f32 0.0, %v225
  %v227 = vpop.f32.mrb[0].mxu0
  %228 = vmatprep.mubr.f32.mxu0 0.0
  %229 = vmatmul.mubr.f32.gmra.mrb[0].mxu0 %v127
  %v230 = vpop.f32.mrb[0].mxu0
  %v231 = vadd.f32 0.0, %v230
  %v232 = vpop.f32.mrb[0].mxu0
  %233 = vmatprep.mubr.f32.mxu0 0.0
  %234 = vmatmul.mubr.f32.gmra.mrb[0].mxu0 %v130
  %v235 = vpop.f32.mrb[0].mxu0
  %v236 = vadd.f32 0.0, %v235
  %v237 = vpop.f32.mrb[0].mxu0
  %238 = vmatprep.mubr.f32.mxu0 0.0
  %239 = vmatmul.mubr.f32.gmra.mrb[0].mxu0 %v133
  %v240 = vpop.f32.mrb[0].mxu0
  %v241 = vadd.f32 0.0, %v240
  %v242 = vpop.f32.mrb[0].mxu0
  %243 = vdwg.mxu0
  %v245 = vsel %vm45, %v19, 0
  %v248 = vsel %vm45, %v20, 0
  %v251 = vsel %vm45, %v21, 0
  %v254 = vsel %vm45, %v22, 0
  %v257 = vsel %vm45, %v23, 0
  %v260 = vsel %vm45, %v24, 0
  %v263 = vsel %vm45, %v25, 0
  %v266 = vsel %vm45, %v26, 0
  %v269 = vsel %vm135, %v28, 0
  %271 = vmatprep.subr.mxu0 0.0
  %272 = vmatpush1.msra.mxu0 %v269
  %273 = vmatprep.subr.mxu0 0.0
  %274 = vmatpush1.msra.mxu0 0.0
  %275 = vmatprep.subr.mxu0 0.0
  %276 = vmatpush1.msra.mxu0 0.0
  %277 = vmatprep.subr.mxu0 0.0
  %278 = vmatpush1.msra.mxu0 0.0
  %279 = vmatprep.subr.mxu0 0.0
  %280 = vmatpush1.msra.mxu0 0.0
  %281 = vmatprep.subr.mxu0 0.0
  %282 = vmatpush1.msra.mxu0 0.0
  %283 = vmatprep.subr.mxu0 0.0
  %284 = vmatpush1.msra.mxu0 0.0
  %285 = vmatprep.subr.mxu0 0.0
  %286 = vmatpush1.msra.mxu0 0.0
  %287 = vmatprep.subr.mxu0 0.0
  %288 = vmatpush1.msra.mxu0 0.0
  %289 = vmatprep.subr.mxu0 0.0
  %290 = vmatpush1.msra.mxu0 0.0
  %291 = vmatprep.subr.mxu0 0.0
  %292 = vmatpush1.msra.mxu0 0.0
  %293 = vmatprep.subr.mxu0 0.0
  %294 = vmatpush1.msra.mxu0 0.0
  %295 = vmatprep.subr.mxu0 0.0
  %296 = vmatpush1.msra.mxu0 0.0
  %297 = vmatprep.subr.mxu0 0.0
  %298 = vmatpush1.msra.mxu0 0.0
  %299 = vmatprep.subr.mxu0 0.0
  %300 = vmatpush1.msra.mxu0 0.0
  %301 = vmatprep.subr.mxu0 0.0
  %302 = vmatpush1.msra.mxu0 0.0
  %303 = vmatprep.subr.mxu0 0.0
  %304 = vmatpush1.msra.mxu0 0.0
  %305 = vmatprep.subr.mxu0 0.0
  %306 = vmatpush1.msra.mxu0 0.0
  %307 = vmatprep.subr.mxu0 0.0
  %308 = vmatpush1.msra.mxu0 0.0
  %309 = vmatprep.subr.mxu0 0.0
  %310 = vmatpush1.msra.mxu0 0.0
  %311 = vmatprep.subr.mxu0 0.0
  %312 = vmatpush1.msra.mxu0 0.0
  %313 = vmatprep.subr.mxu0 0.0
  %314 = vmatpush1.msra.mxu0 0.0
  %315 = vmatprep.subr.mxu0 0.0
  %316 = vmatpush1.msra.mxu0 0.0
  %317 = vmatprep.subr.mxu0 0.0
  %318 = vmatpush1.msra.mxu0 0.0
  %319 = vmatprep.subr.mxu0 0.0
  %320 = vmatpush1.msra.mxu0 0.0
  %321 = vmatprep.subr.mxu0 0.0
  %322 = vmatpush1.msra.mxu0 0.0
  %323 = vmatprep.subr.mxu0 0.0
  %324 = vmatpush1.msra.mxu0 0.0
  %325 = vmatprep.subr.mxu0 0.0
  %326 = vmatpush1.msra.mxu0 0.0
  %327 = vmatprep.subr.mxu0 0.0
  %328 = vmatpush1.msra.mxu0 0.0
  %329 = vmatprep.subr.mxu0 0.0
  %330 = vmatpush1.msra.mxu0 0.0
  %331 = vmatprep.subr.mxu0 0.0
  %332 = vmatpush1.msra.mxu0 0.0
  %333 = vmatprep.subr.mxu0 0.0
  %334 = vmatpush1.msra.mxu0 0.0
  %335 = vmatprep.mubr.f32.mxu0 0.0
  %336 = vmatmul.mubr.f32.gmra.mrb[0].mxu0 %v245
  %v337 = vpop.f32.mrb[0].mxu0
  %v338 = vadd.f32 0.0, %v337
  %v339 = vpop.f32.mrb[0].mxu0
  %340 = vmatprep.mubr.f32.mxu0 0.0
  %341 = vmatmul.mubr.f32.gmra.mrb[0].mxu0 %v248
  %v342 = vpop.f32.mrb[0].mxu0
  %v343 = vadd.f32 0.0, %v342
  %v344 = vpop.f32.mrb[0].mxu0
  %345 = vmatprep.mubr.f32.mxu0 0.0
  %346 = vmatmul.mubr.f32.gmra.mrb[0].mxu0 %v251
  %v347 = vpop.f32.mrb[0].mxu0
  %v348 = vadd.f32 0.0, %v347
  %v349 = vpop.f32.mrb[0].mxu0
  %350 = vmatprep.mubr.f32.mxu0 0.0
  %351 = vmatmul.mubr.f32.gmra.mrb[0].mxu0 %v254
  %v352 = vpop.f32.mrb[0].mxu0
  %v353 = vadd.f32 0.0, %v352
  %v354 = vpop.f32.mrb[0].mxu0
  %355 = vmatprep.mubr.f32.mxu0 0.0
  %356 = vmatmul.mubr.f32.gmra.mrb[0].mxu0 %v257
  %v357 = vpop.f32.mrb[0].mxu0
  %v358 = vadd.f32 0.0, %v357
  %v359 = vpop.f32.mrb[0].mxu0
  %360 = vmatprep.mubr.f32.mxu0 0.0
  %361 = vmatmul.mubr.f32.gmra.mrb[0].mxu0 %v260
  %v362 = vpop.f32.mrb[0].mxu0
  %v363 = vadd.f32 0.0, %v362
  %v364 = vpop.f32.mrb[0].mxu0
  %365 = vmatprep.mubr.f32.mxu0 0.0
  %366 = vmatmul.mubr.f32.gmra.mrb[0].mxu0 %v263
  %v367 = vpop.f32.mrb[0].mxu0
  %v368 = vadd.f32 0.0, %v367
  %v369 = vpop.f32.mrb[0].mxu0
  %370 = vmatprep.mubr.f32.mxu0 0.0
  %371 = vmatmul.mubr.f32.gmra.mrb[0].mxu0 %v266
  %v372 = vpop.f32.mrb[0].mxu0
  %v373 = vadd.f32 0.0, %v372
  %v374 = vpop.f32.mrb[0].mxu0
  %375 = vdwg.mxu0
  %v376 = vadd.f32 %v48, %v103
  %v377 = vadd.f32 %v51, %v103
  %v378 = vadd.f32 %v54, %v103
  %v379 = vadd.f32 %v57, %v103
  %v380 = vadd.f32 %v60, %v103
  %v381 = vadd.f32 %v63, %v103
  %v382 = vadd.f32 %v66, %v103
  %v383 = vadd.f32 %v69, %v103
  %v384 = vadd.f32 %v72, %v110
  %v385 = vadd.f32 %v75, %v110
  %v386 = vadd.f32 %v78, %v110
  %v387 = vadd.f32 %v81, %v110
  %v388 = vadd.f32 %v84, %v110
  %v389 = vadd.f32 %v87, %v110
  %v390 = vadd.f32 %v90, %v110
  %v391 = vadd.f32 %v93, %v110
  %v392 = vmul.f32 %v206, 2.0
  %v393 = vmul.f32 %v211, 2.0
  %v394 = vmul.f32 %v216, 2.0
  %v395 = vmul.f32 %v221, 2.0
  %v396 = vmul.f32 %v226, 2.0
  %v397 = vmul.f32 %v231, 2.0
  %v398 = vmul.f32 %v236, 2.0
  %v399 = vmul.f32 %v241, 2.0
  %v400 = vmul.f32 %v338, 2.0
  %v401 = vmul.f32 %v343, 2.0
  %v402 = vmul.f32 %v348, 2.0
  %v403 = vmul.f32 %v353, 2.0
  %v404 = vmul.f32 %v358, 2.0
  %v405 = vmul.f32 %v363, 2.0
  %v406 = vmul.f32 %v368, 2.0
  %v407 = vmul.f32 %v373, 2.0
  %v408 = vsub.f32 %v376, %v392
  %v409 = vsub.f32 %v377, %v393
  %v410 = vsub.f32 %v378, %v394
  %v411 = vsub.f32 %v379, %v395
  %v412 = vsub.f32 %v380, %v396
  %v413 = vsub.f32 %v381, %v397
  %v414 = vsub.f32 %v382, %v398
  %v415 = vsub.f32 %v383, %v399
  %v416 = vsub.f32 %v384, %v400
  %v417 = vsub.f32 %v385, %v401
  %v418 = vsub.f32 %v386, %v402
  %v419 = vsub.f32 %v387, %v403
  %v420 = vsub.f32 %v388, %v404
  %v421 = vsub.f32 %v389, %v405
  %v422 = vsub.f32 %v390, %v406
  %v423 = vsub.f32 %v391, %v407
  %vm424 = vcmask 523264
  %425 = vst.msk [vmem:[%s2] sm:$0xff] %vm424, %v408
  %426 = vst.msk [vmem:[%s2 + $0x8] sm:$0xff] %vm424, %v409
  %427 = vst.msk [vmem:[%s2 + $0x10] sm:$0xff] %vm424, %v410
  %428 = vst.msk [vmem:[%s2 + $0x18] sm:$0xff] %vm424, %v411
  %429 = vst.msk [vmem:[%s2 + $0x20] sm:$0xff] %vm424, %v412
  %430 = vst.msk [vmem:[%s2 + $0x28] sm:$0xff] %vm424, %v413
  %431 = vst.msk [vmem:[%s2 + $0x30] sm:$0xff] %vm424, %v414
  %432 = vst.msk [vmem:[%s2 + $0x38] sm:$0xff] %vm424, %v415
  %433 = vst.msk [vmem:[%s2 + $0x40] sm:$0xff] %vm424, %v416
  %434 = vst.msk [vmem:[%s2 + $0x48] sm:$0xff] %vm424, %v417
  %435 = vst.msk [vmem:[%s2 + $0x50] sm:$0xff] %vm424, %v418
  %436 = vst.msk [vmem:[%s2 + $0x58] sm:$0xff] %vm424, %v419
  %437 = vst.msk [vmem:[%s2 + $0x60] sm:$0xff] %vm424, %v420
  %438 = vst.msk [vmem:[%s2 + $0x68] sm:$0xff] %vm424, %v421
  %439 = vst.msk [vmem:[%s2 + $0x70] sm:$0xff] %vm424, %v422
  %440 = vst.msk [vmem:[%s2 + $0x78] sm:$0xff] %vm424, %v423
  // Predicated region
  $region10: #{geometric_feature_extraction.3} parent=0 // pred_check
    _
  $region11: #{geometric_feature_extraction.3} parent=0 // pred_check_branch
    %442 = sbr.rel (0) target = $region13
  $region12: #{geometric_feature_extraction.3} parent=0 // pred_region
    _
  $region13: #{geometric_feature_extraction.3} parent=0 // pred_fallthru
    _
  // Predicated region
  $region14: #{geometric_feature_extraction.3} parent=0 // pred_check
    _
  $region15: #{geometric_feature_extraction.3} parent=0 // pred_check_branch
    %444 = sbr.rel (0) target = $region17
  $region16: #{geometric_feature_extraction.3} parent=0 // pred_region
    _
  $region17: #{geometric_feature_extraction.3} parent=0 // pred_fallthru
    _

// kernel: custom-call.2
$region0: #{custom-call.2}
  %s0 = inlined_call_operand.vmem [shape: f32[2,64,2,2], index: 0, kind: input, shape index: {}]
  %s1 = inlined_call_operand.vmem [shape: f32[2,64,2,2], index: 1, kind: input, shape index: {}]
  %s2 = inlined_call_operand.vmem [shape: f32[2,64,2,2], index: 2, kind: input, shape index: {}]
  %s3 = inlined_call_operand.vmem [shape: f32[2,64,2,2], index: 3, kind: input, shape index: {}]
  %s4 = inlined_call_operand.vmem [shape: f32[2,64,2], index: 4, kind: output, shape index: {0}]
  %s5 = inlined_call_operand.vmem [shape: f32[2,64,2], index: 5, kind: output, shape index: {1}]
  %s6 = inlined_call_operand.vmem [shape: f32[2,64,2,2], index: 6, kind: output, shape index: {2}]
  %s7 = inlined_call_operand.vmem [shape: f32[2,64,2,2], index: 7, kind: output, shape index: {3}]
  %s8 = inlined_call_operand.vmem [shape: f32[2,64,2,2], index: 8, kind: output, shape index: {4}]
  %s9 = inlined_call_operand.vmem [shape: f32[2,64,2,2], index: 9, kind: output, shape index: {5}]
  %10 = xla_tuple %s4, %s5, %s6, %s7, %s8, %s9
  $region1: #{custom-call.2} parent=0
    #allocation0 [shape = 'u8[4096]{0}', space=vmem, size = 0x1000, scoped, tag = 'operand span for operand 0']
    #allocation1 [shape = 'u8[2048]{0}', space=vmem, size = 0x800, scoped, tag = 'packed  for operand 0']
    #allocation2 [shape = 'u8[4096]{0}', space=vmem, size = 0x1000, scoped, tag = 'operand span for operand 1']
    #allocation3 [shape = 'u8[2048]{0}', space=vmem, size = 0x800, scoped, tag = 'packed  for operand 1']
    #allocation4 [shape = 'u8[4096]{0}', space=vmem, size = 0x1000, scoped, tag = 'operand span for operand 2']
    #allocation5 [shape = 'u8[2048]{0}', space=vmem, size = 0x800, scoped, tag = 'packed  for operand 2']
    #allocation6 [shape = 'u8[4096]{0}', space=vmem, size = 0x1000, scoped, tag = 'operand span for operand 3']
    #allocation7 [shape = 'u8[2048]{0}', space=vmem, size = 0x800, scoped, tag = 'packed  for operand 3']
    #allocation8 [shape = 'u8[8192]{0}', space=vmem, size = 0x2000, scoped, tag = 'operand span for operand 4']
    #allocation9 [shape = 'u8[8192]{0}', space=vmem, size = 0x2000, scoped, tag = 'operand span for operand 5']
    #allocation10 [shape = 'u8[4096]{0}', space=vmem, size = 0x1000, scoped, tag = 'operand span for operand 6']
    #allocation11 [shape = 'u8[2048]{0}', space=vmem, size = 0x800, scoped, tag = 'packed  for operand 6']
    #allocation12 [shape = 'u8[4096]{0}', space=vmem, size = 0x1000, scoped, tag = 'operand span for operand 7']
    #allocation13 [shape = 'u8[2048]{0}', space=vmem, size = 0x800, scoped, tag = 'packed  for operand 7']
    #allocation14 [shape = 'u8[4096]{0}', space=vmem, size = 0x1000, scoped, tag = 'operand span for operand 8']
    #allocation15 [shape = 'u8[2048]{0}', space=vmem, size = 0x800, scoped, tag = 'packed  for operand 8']
    #allocation16 [shape = 'u8[4096]{0}', space=vmem, size = 0x1000, scoped, tag = 'operand span for operand 9']
    #allocation17 [shape = 'u8[2048]{0}', space=vmem, size = 0x800, scoped, tag = 'packed  for operand 9']
    loop: start=0, step=1, limit=130
    $region2: #{custom-call.2} parent=1 // loop_pre_header
      _
    $region3: #{custom-call.2} parent=1 // loop_header
      %s12 = sphi 0, %s16
      %p13 = scmp.ge.s32.totalorder %s12, 130
      %s19 = sphi 0, %s31
      %s20 = sphi 0, %s27
      %s21 = sphi 0, %s19
      %s22 = sphi 0, %s20
      %s23 = sphi 0, %s21
      %s24 = sphi 0, %s22
      %s38 = sphi 0, %s40
      %s41 = sphi 0, %s38
      %s42 = sphi 0, %s41
      %s58 = sphi 0, %s42
      %s68 = sphi 0, %s70
      %s71 = sphi 0, %s68
      %s72 = sphi 0, %s71
      %s88 = sphi 0, %s72
    $region4: #{custom-call.2} parent=1 // loop_header_branch
      %15 = sbr.rel (%p13) target = $region8
    $region5: #{custom-call.2} parent=1 // loop_body
      %s17 = ssub.s32 %s12, 1
      %s18 = ssub.s32 %s12, 2
      %s25 = sadd.s32 1, %s20
      %p26 = scmp.ge.s32.totalorder %s25, 64
      %s27 = scalar_select %p26, 0, %s25
      %s28 = sadd.s32 1, %s19
      %s29 = scalar_select %p26, %s28, %s19
      %p30 = scmp.ge.s32.totalorder %s29, 2
      %s31 = scalar_select %p30, 0, %s29
      %s32 = sshrl.u32 %s20, 3
      %s33 = sshrl.u32 %s27, 3
      %s34 = ssub.s32 %s19, %s31
      %s35 = ssub.s32 %s32, %s33
      %s36 = sor.u32 %s34, %s35
      %p37 = scmp.eq.s32.totalorder %s36, 0
      %s39 = sadd.s32 %s38, 1
      %s40 = scalar_select %p37, %s38, %s39
      %p43 = pneg %p37
      %p44 = scmp.eq.s32.totalorder %s12, 127
      %p45 = por %p43, %p44
      %p46 = scmp.ne.s32.totalorder %s38, %s41
      %p47 = scmp.eq.s32.totalorder %s12, 0
      %p48 = por %p46, %p47
      %p49 = scmp.ne.s32.totalorder %s38, %s41
      %p50 = scmp.eq.s32.totalorder %s17, 127
      %p51 = por %p49, %p50
      %p52 = scmp.ne.s32.totalorder %s41, %s42
      %p53 = scmp.eq.s32.totalorder %s17, 0
      %p54 = por %p52, %p53
      %p55 = scmp.ne.s32.totalorder %s41, %s42
      %p56 = scmp.eq.s32.totalorder %s18, 127
      %p57 = por %p55, %p56
      %p59 = scmp.ne.s32.totalorder %s42, %s58
      %p60 = scmp.eq.s32.totalorder %s18, 0
      %p61 = por %p59, %p60
      %s62 = sshrl.u32 %s20, 3
      %s63 = sshrl.u32 %s27, 3
      %s64 = ssub.s32 %s19, %s31
      %s65 = ssub.s32 %s62, %s63
      %s66 = sor.u32 %s64, %s65
      %p67 = scmp.eq.s32.totalorder %s66, 0
      %s69 = sadd.s32 %s68, 1
      %s70 = scalar_select %p67, %s68, %s69
      %p73 = pneg %p67
      %p74 = scmp.eq.s32.totalorder %s12, 127
      %p75 = por %p73, %p74
      %p76 = scmp.ne.s32.totalorder %s68, %s71
      %p77 = scmp.eq.s32.totalorder %s12, 0
      %p78 = por %p76, %p77
      %p79 = scmp.ne.s32.totalorder %s68, %s71
      %p80 = scmp.eq.s32.totalorder %s17, 127
      %p81 = por %p79, %p80
      %p82 = scmp.ne.s32.totalorder %s71, %s72
      %p83 = scmp.eq.s32.totalorder %s17, 0
      %p84 = por %p82, %p83
      %p85 = scmp.ne.s32.totalorder %s71, %s72
      %p86 = scmp.eq.s32.totalorder %s18, 127
      %p87 = por %p85, %p86
      %p89 = scmp.ne.s32.totalorder %s72, %s88
      %p90 = scmp.eq.s32.totalorder %s18, 0
      %p91 = por %p89, %p90
      %p92 = scmp.le.s32.totalorder 1, %s12
      %p93 = scmp.lt.s32.totalorder %s12, 129
      %p94 = pnand %p92, %p93
      %p95 = pneg %p94
      // Predicated region
      $region9: #{custom-call.2} parent=5 // pred_check
        _
      $region10: #{custom-call.2} parent=5 // pred_check_branch
        %97 = sbr.rel (%p94) target = $region12
      $region11: #{custom-call.2} parent=5 // pred_region
        %s98 = ssub.s32 %s12, 1
      $region12: #{custom-call.2} parent=5 // pred_fallthru
        _
      %p99 = scmp.lt.s32.totalorder %s12, 128
      // Predicated region
      $region13: #{custom-call.2} parent=5 // pred_check
        %p100 = pneg %p99
      $region14: #{custom-call.2} parent=5 // pred_check_branch
        %102 = sbr.rel (%p100) target = $region16
      $region15: #{custom-call.2} parent=5 // pred_region
        %s103 = sand.u32 %s12, 1
        %s104 = sand.u32 %s12, 1
        %s105 = smul.addr %s104, 2
        %s106 = scalar_lea.vmem [#allocation1], %s105
        %s107 = smul.addr %s19, 64
        %s108 = sadd.s32 %s20, %s107
        %s109 = smul.addr %s108, 2
        %s110 = scalar_lea.vmem %s0, %s109
        // Predicated region
        $region17: #{custom-call.2} parent=15 // pred_check
          _
        $region18: #{custom-call.2} parent=15 // pred_check_branch
          %112 = sbr.rel (0) target = $region20
        $region19: #{custom-call.2} parent=15 // pred_region
          // Predicated region
          $region21: #{custom-call.2} parent=19 // pred_check
            _
          $region22: #{custom-call.2} parent=19 // pred_check_branch
            %114 = sbr.rel target = $region24
          $region23: #{custom-call.2} parent=19 // pred_region
            // Predicated region
            $region36: #{custom-call.2} parent=23 // pred_check
              _
            $region37: #{custom-call.2} parent=23 // pred_check_branch
              %129 = sbr.rel (0) target = $region39
            $region38: #{custom-call.2} parent=23 // pred_region
              loop: start=0, step=1, limit=1
              $region40: #{custom-call.2} parent=38 // loop_pre_header
                _
              $region41: #{custom-call.2} parent=38 // loop_header
                %s132 = sphi 0, %s136
                %p133 = scmp.ge.s32.totalorder %s132, 1
                %s137 = sphi %s110, %s110
                %s138 = sphi %s106, %s106
              $region42: #{custom-call.2} parent=38 // loop_header_branch
                %135 = sbr.rel (%p133) target = $region46
              $region43: #{custom-call.2} parent=38 // loop_body
                %v139 = vld [vmem:[%s137] sm:$0x3]
                %140 = vst [vmem:[%s138] sm:$0x3] %v139
              $region44: #{custom-call.2} parent=38 // loop_footer
                %s136 = sadd.s32 1, %s132
              $region45: #{custom-call.2} parent=38 // loop_footer_branch
                %131 = sbr.rel target = $region41
              $region46: #{custom-call.2} parent=38 // loop_exit
                _
            $region39: #{custom-call.2} parent=23 // pred_fallthru
              _
          $region24: #{custom-call.2} parent=19 // pred_fallthru
            _
          // Predicated region
          $region25: #{custom-call.2} parent=19 // pred_check
            _
          $region26: #{custom-call.2} parent=19 // pred_check_branch
            %116 = sbr.rel (0) target = $region28
          $region27: #{custom-call.2} parent=19 // pred_region
            loop: start=0, step=1, limit=1
            $region29: #{custom-call.2} parent=27 // loop_pre_header
              _
            $region30: #{custom-call.2} parent=27 // loop_header
              %s119 = sphi 0, %s123
              %p120 = scmp.ge.s32.totalorder %s119, 1
              %s124 = sphi %s110, %s110
              %s125 = sphi %s106, %s106
            $region31: #{custom-call.2} parent=27 // loop_header_branch
              %122 = sbr.rel (%p120) target = $region35
            $region32: #{custom-call.2} parent=27 // loop_body
              %v126 = vld [vmem:[%s124] sm:$0x3]
              %127 = vst [vmem:[%s125] sm:$0x3] %v126
            $region33: #{custom-call.2} parent=27 // loop_footer
              %s123 = sadd.s32 1, %s119
            $region34: #{custom-call.2} parent=27 // loop_footer_branch
              %118 = sbr.rel target = $region30
            $region35: #{custom-call.2} parent=27 // loop_exit
              _
          $region28: #{custom-call.2} parent=19 // pred_fallthru
            _
        $region20: #{custom-call.2} parent=15 // pred_fallthru
          _
        %141 = vnop
        %s142 = sand.u32 %s12, 1
        %s143 = sand.u32 %s12, 1
        %s144 = smul.addr %s143, 2
        %s145 = scalar_lea.vmem [#allocation3], %s144
        %s146 = smul.addr %s19, 64
        %s147 = sadd.s32 %s20, %s146
        %s148 = smul.addr %s147, 2
        %s149 = scalar_lea.vmem %s1, %s148
        // Predicated region
        $region47: #{custom-call.2} parent=15 // pred_check
          _
        $region48: #{custom-call.2} parent=15 // pred_check_branch
          %151 = sbr.rel (0) target = $region50
        $region49: #{custom-call.2} parent=15 // pred_region
          // Predicated region
          $region51: #{custom-call.2} parent=49 // pred_check
            _
          $region52: #{custom-call.2} parent=49 // pred_check_branch
            %153 = sbr.rel target = $region54
          $region53: #{custom-call.2} parent=49 // pred_region
            // Predicated region
            $region66: #{custom-call.2} parent=53 // pred_check
              _
            $region67: #{custom-call.2} parent=53 // pred_check_branch
              %168 = sbr.rel (0) target = $region69
            $region68: #{custom-call.2} parent=53 // pred_region
              loop: start=0, step=1, limit=1
              $region70: #{custom-call.2} parent=68 // loop_pre_header
                _
              $region71: #{custom-call.2} parent=68 // loop_header
                %s171 = sphi 0, %s175
                %p172 = scmp.ge.s32.totalorder %s171, 1
                %s176 = sphi %s149, %s149
                %s177 = sphi %s145, %s145
              $region72: #{custom-call.2} parent=68 // loop_header_branch
                %174 = sbr.rel (%p172) target = $region76
              $region73: #{custom-call.2} parent=68 // loop_body
                %v178 = vld [vmem:[%s176] sm:$0x3]
                %179 = vst [vmem:[%s177] sm:$0x3] %v178
              $region74: #{custom-call.2} parent=68 // loop_footer
                %s175 = sadd.s32 1, %s171
              $region75: #{custom-call.2} parent=68 // loop_footer_branch
                %170 = sbr.rel target = $region71
              $region76: #{custom-call.2} parent=68 // loop_exit
                _
            $region69: #{custom-call.2} parent=53 // pred_fallthru
              _
          $region54: #{custom-call.2} parent=49 // pred_fallthru
            _
          // Predicated region
          $region55: #{custom-call.2} parent=49 // pred_check
            _
          $region56: #{custom-call.2} parent=49 // pred_check_branch
            %155 = sbr.rel (0) target = $region58
          $region57: #{custom-call.2} parent=49 // pred_region
            loop: start=0, step=1, limit=1
            $region59: #{custom-call.2} parent=57 // loop_pre_header
              _
            $region60: #{custom-call.2} parent=57 // loop_header
              %s158 = sphi 0, %s162
              %p159 = scmp.ge.s32.totalorder %s158, 1
              %s163 = sphi %s149, %s149
              %s164 = sphi %s145, %s145
            $region61: #{custom-call.2} parent=57 // loop_header_branch
              %161 = sbr.rel (%p159) target = $region65
            $region62: #{custom-call.2} parent=57 // loop_body
              %v165 = vld [vmem:[%s163] sm:$0x3]
              %166 = vst [vmem:[%s164] sm:$0x3] %v165
            $region63: #{custom-call.2} parent=57 // loop_footer
              %s162 = sadd.s32 1, %s158
            $region64: #{custom-call.2} parent=57 // loop_footer_branch
              %157 = sbr.rel target = $region60
            $region65: #{custom-call.2} parent=57 // loop_exit
              _
          $region58: #{custom-call.2} parent=49 // pred_fallthru
            _
        $region50: #{custom-call.2} parent=15 // pred_fallthru
          _
        %180 = vnop
        %s181 = sand.u32 %s12, 1
        %s182 = sand.u32 %s12, 1
        %s183 = smul.addr %s182, 2
        %s184 = scalar_lea.vmem [#allocation5], %s183
        %s185 = smul.addr %s19, 64
        %s186 = sadd.s32 %s20, %s185
        %s187 = smul.addr %s186, 2
        %s188 = scalar_lea.vmem %s2, %s187
        // Predicated region
        $region77: #{custom-call.2} parent=15 // pred_check
          _
        $region78: #{custom-call.2} parent=15 // pred_check_branch
          %190 = sbr.rel (0) target = $region80
        $region79: #{custom-call.2} parent=15 // pred_region
          // Predicated region
          $region81: #{custom-call.2} parent=79 // pred_check
            _
          $region82: #{custom-call.2} parent=79 // pred_check_branch
            %192 = sbr.rel target = $region84
          $region83: #{custom-call.2} parent=79 // pred_region
            // Predicated region
            $region96: #{custom-call.2} parent=83 // pred_check
              _
            $region97: #{custom-call.2} parent=83 // pred_check_branch
              %207 = sbr.rel (0) target = $region99
            $region98: #{custom-call.2} parent=83 // pred_region
              loop: start=0, step=1, limit=1
              $region100: #{custom-call.2} parent=98 // loop_pre_header
                _
              $region101: #{custom-call.2} parent=98 // loop_header
                %s210 = sphi 0, %s214
                %p211 = scmp.ge.s32.totalorder %s210, 1
                %s215 = sphi %s188, %s188
                %s216 = sphi %s184, %s184
              $region102: #{custom-call.2} parent=98 // loop_header_branch
                %213 = sbr.rel (%p211) target = $region106
              $region103: #{custom-call.2} parent=98 // loop_body
                %v217 = vld [vmem:[%s215] sm:$0x3]
                %218 = vst [vmem:[%s216] sm:$0x3] %v217
              $region104: #{custom-call.2} parent=98 // loop_footer
                %s214 = sadd.s32 1, %s210
              $region105: #{custom-call.2} parent=98 // loop_footer_branch
                %209 = sbr.rel target = $region101
              $region106: #{custom-call.2} parent=98 // loop_exit
                _
            $region99: #{custom-call.2} parent=83 // pred_fallthru
              _
          $region84: #{custom-call.2} parent=79 // pred_fallthru
            _
          // Predicated region
          $region85: #{custom-call.2} parent=79 // pred_check
            _
          $region86: #{custom-call.2} parent=79 // pred_check_branch
            %194 = sbr.rel (0) target = $region88
          $region87: #{custom-call.2} parent=79 // pred_region
            loop: start=0, step=1, limit=1
            $region89: #{custom-call.2} parent=87 // loop_pre_header
              _
            $region90: #{custom-call.2} parent=87 // loop_header
              %s197 = sphi 0, %s201
              %p198 = scmp.ge.s32.totalorder %s197, 1
              %s202 = sphi %s188, %s188
              %s203 = sphi %s184, %s184
            $region91: #{custom-call.2} parent=87 // loop_header_branch
              %200 = sbr.rel (%p198) target = $region95
            $region92: #{custom-call.2} parent=87 // loop_body
              %v204 = vld [vmem:[%s202] sm:$0x3]
              %205 = vst [vmem:[%s203] sm:$0x3] %v204
            $region93: #{custom-call.2} parent=87 // loop_footer
              %s201 = sadd.s32 1, %s197
            $region94: #{custom-call.2} parent=87 // loop_footer_branch
              %196 = sbr.rel target = $region90
            $region95: #{custom-call.2} parent=87 // loop_exit
              _
          $region88: #{custom-call.2} parent=79 // pred_fallthru
            _
        $region80: #{custom-call.2} parent=15 // pred_fallthru
          _
        %219 = vnop
        %s220 = sand.u32 %s12, 1
        %s221 = sand.u32 %s12, 1
        %s222 = smul.addr %s221, 2
        %s223 = scalar_lea.vmem [#allocation7], %s222
        %s224 = smul.addr %s19, 64
        %s225 = sadd.s32 %s20, %s224
        %s226 = smul.addr %s225, 2
        %s227 = scalar_lea.vmem %s3, %s226
        // Predicated region
        $region107: #{custom-call.2} parent=15 // pred_check
          _
        $region108: #{custom-call.2} parent=15 // pred_check_branch
          %229 = sbr.rel (0) target = $region110
        $region109: #{custom-call.2} parent=15 // pred_region
          // Predicated region
          $region111: #{custom-call.2} parent=109 // pred_check
            _
          $region112: #{custom-call.2} parent=109 // pred_check_branch
            %231 = sbr.rel target = $region114
          $region113: #{custom-call.2} parent=109 // pred_region
            // Predicated region
            $region126: #{custom-call.2} parent=113 // pred_check
              _
            $region127: #{custom-call.2} parent=113 // pred_check_branch
              %246 = sbr.rel (0) target = $region129
            $region128: #{custom-call.2} parent=113 // pred_region
              loop: start=0, step=1, limit=1
              $region130: #{custom-call.2} parent=128 // loop_pre_header
                _
              $region131: #{custom-call.2} parent=128 // loop_header
                %s249 = sphi 0, %s253
                %p250 = scmp.ge.s32.totalorder %s249, 1
                %s254 = sphi %s227, %s227
                %s255 = sphi %s223, %s223
              $region132: #{custom-call.2} parent=128 // loop_header_branch
                %252 = sbr.rel (%p250) target = $region136
              $region133: #{custom-call.2} parent=128 // loop_body
                %v256 = vld [vmem:[%s254] sm:$0x3]
                %257 = vst [vmem:[%s255] sm:$0x3] %v256
              $region134: #{custom-call.2} parent=128 // loop_footer
                %s253 = sadd.s32 1, %s249
              $region135: #{custom-call.2} parent=128 // loop_footer_branch
                %248 = sbr.rel target = $region131
              $region136: #{custom-call.2} parent=128 // loop_exit
                _
            $region129: #{custom-call.2} parent=113 // pred_fallthru
              _
          $region114: #{custom-call.2} parent=109 // pred_fallthru
            _
          // Predicated region
          $region115: #{custom-call.2} parent=109 // pred_check
            _
          $region116: #{custom-call.2} parent=109 // pred_check_branch
            %233 = sbr.rel (0) target = $region118
          $region117: #{custom-call.2} parent=109 // pred_region
            loop: start=0, step=1, limit=1
            $region119: #{custom-call.2} parent=117 // loop_pre_header
              _
            $region120: #{custom-call.2} parent=117 // loop_header
              %s236 = sphi 0, %s240
              %p237 = scmp.ge.s32.totalorder %s236, 1
              %s241 = sphi %s227, %s227
              %s242 = sphi %s223, %s223
            $region121: #{custom-call.2} parent=117 // loop_header_branch
              %239 = sbr.rel (%p237) target = $region125
            $region122: #{custom-call.2} parent=117 // loop_body
              %v243 = vld [vmem:[%s241] sm:$0x3]
              %244 = vst [vmem:[%s242] sm:$0x3] %v243
            $region123: #{custom-call.2} parent=117 // loop_footer
              %s240 = sadd.s32 1, %s236
            $region124: #{custom-call.2} parent=117 // loop_footer_branch
              %235 = sbr.rel target = $region120
            $region125: #{custom-call.2} parent=117 // loop_exit
              _
          $region118: #{custom-call.2} parent=109 // pred_fallthru
            _
        $region110: #{custom-call.2} parent=15 // pred_fallthru
          _
        %258 = vnop
      $region16: #{custom-call.2} parent=5 // pred_fallthru
        _
      %p259 = scmp.le.s32.totalorder 1, %s12
      %p260 = scmp.lt.s32.totalorder %s12, 129
      %p261 = pnand %p259, %p260
      %p262 = pneg %p261
      // Predicated region
      $region137: #{custom-call.2} parent=5 // pred_check
        _
      $region138: #{custom-call.2} parent=5 // pred_check_branch
        %264 = sbr.rel (%p261) target = $region140
      $region139: #{custom-call.2} parent=5 // pred_region
        #allocation18 [shape = 'f32[2,2]{1,0}', space=vmem, size = 0x1000, scoped, tag = 'a top-left matrix']
        #allocation19 [shape = 'f32[2,2]{1,0}', space=vmem, size = 0x1000, scoped, tag = 'a top-right matrix']
        #allocation20 [shape = 'f32[2,2]{1,0}', space=vmem, size = 0x1000, scoped, tag = 'a bottom-left matrix']
        #allocation21 [shape = 'f32[2,2]{1,0}', space=vmem, size = 0x1000, scoped, tag = 'a bottom-right matrix']
        %s265 = ssub.s32 %s12, 1
        %s266 = sand.u32 %s17, 1
        %s267 = sand.u32 %s17, 1
        %s268 = smul.addr %s267, 2
        %s269 = scalar_lea.vmem [#allocation1], %s268
        %s270 = sand.u32 %s17, 1
        %s271 = sand.u32 %s17, 1
        %s272 = smul.addr %s271, 2
        %s273 = scalar_lea.vmem [#allocation3], %s272
        %s274 = sand.u32 %s17, 1
        %s275 = sand.u32 %s17, 1
        %s276 = smul.addr %s275, 2
        %s277 = scalar_lea.vmem [#allocation5], %s276
        %s278 = sand.u32 %s17, 1
        %s279 = sand.u32 %s17, 1
        %s280 = smul.addr %s279, 2
        %s281 = scalar_lea.vmem [#allocation7], %s280
        %s282 = sand.u32 %s17, 1
        %s283 = sand.u32 %s17, 1
        %s284 = smul.addr %s283, 2
        %s285 = scalar_lea.vmem [#allocation1], %s284
        %s286 = sand.u32 %s17, 1
        %s287 = sand.u32 %s17, 1
        %s288 = smul.addr %s287, 2
        %s289 = scalar_lea.vmem [#allocation3], %s288
        %s290 = sand.u32 %s17, 1
        %s291 = sand.u32 %s17, 1
        %s292 = smul.addr %s291, 2
        %s293 = scalar_lea.vmem [#allocation5], %s292
        %s294 = sand.u32 %s17, 1
        %s295 = sand.u32 %s17, 1
        %s296 = smul.addr %s295, 2
        %s297 = scalar_lea.vmem [#allocation7], %s296
        %p298 = pneg %p54
        %p299 = pneg %p51
        %s300 = sand.u32 %s41, 1
        %s301 = sand.u32 %s41, 1
        %s302 = smul.addr %s301, 8
        %s303 = scalar_lea.vmem [#allocation8], %s302
        %p304 = pneg %p84
        %p305 = pneg %p81
        %s306 = sand.u32 %s71, 1
        %s307 = sand.u32 %s71, 1
        %s308 = smul.addr %s307, 8
        %s309 = scalar_lea.vmem [#allocation9], %s308
        %s310 = sand.u32 %s17, 1
        %s311 = sand.u32 %s17, 1
        %s312 = smul.addr %s311, 2
        %s313 = scalar_lea.vmem [#allocation11], %s312
        %s314 = sand.u32 %s17, 1
        %s315 = sand.u32 %s17, 1
        %s316 = smul.addr %s315, 2
        %s317 = scalar_lea.vmem [#allocation13], %s316
        %s318 = sand.u32 %s17, 1
        %s319 = sand.u32 %s17, 1
        %s320 = smul.addr %s319, 2
        %s321 = scalar_lea.vmem [#allocation15], %s320
        %s322 = sand.u32 %s17, 1
        %s323 = sand.u32 %s17, 1
        %s324 = smul.addr %s323, 2
        %s325 = scalar_lea.vmem [#allocation17], %s324
        %s327 = sshllo.u32 0, 2
        %v328 = vld [vmem:[%s285] sm:%s327]
        %329 = vst [vmem:[#allocation0] sm:%s327] %v328
        %s331 = sshllo.u32 0, 2
        %v332 = vld [vmem:[%s289] sm:%s331]
        %333 = vst [vmem:[#allocation2] sm:%s331] %v332
        %s335 = sshllo.u32 0, 2
        %v336 = vld [vmem:[%s293] sm:%s335]
        %337 = vst [vmem:[#allocation4] sm:%s335] %v336
        %s339 = sshllo.u32 0, 2
        %v340 = vld [vmem:[%s297] sm:%s339]
        %341 = vst [vmem:[#allocation6] sm:%s339] %v340
        %s342 = sshrl.u32 %s22, 3
        %s343 = sshrl.u32 %s22, 3
        %s344 = smov [#allocation18]
        %v345 = vld [vmem:[#allocation0] sm:$0xff]
        %346 = vst [vmem:[%s344] sm:$0xff] %v345
        %s347 = smov [#allocation19]
        %v348 = vld [vmem:[#allocation2] sm:$0xff]
        %349 = vst [vmem:[%s347] sm:$0xff] %v348
        %s350 = smov [#allocation20]
        %v351 = vld [vmem:[#allocation4] sm:$0xff]
        %352 = vst [vmem:[%s350] sm:$0xff] %v351
        %s353 = smov [#allocation21]
        %v354 = vld [vmem:[#allocation6] sm:$0xff]
        %355 = vst [vmem:[%s353] sm:$0xff] %v354
        %356 = vst [vmem:[#allocation10] sm:$0xff] 0.0
        %357 = vst [vmem:[#allocation12] sm:$0xff] 0.0
        %358 = vst [vmem:[#allocation14] sm:$0xff] 0.0
        %359 = vst [vmem:[#allocation16] sm:$0xff] 0.0
        %s360 = smov [#allocation10]
        %v361 = vlaneseq
        %v362 = vand.u32 %v361, 127
        %v363 = vmov %v362
        %v364 = vlaneseq
        %v365 = vshrl.u32 %v364, 7
        %v366 = vmov %v365
        %v367 = vld [vmem:[%s360] sm:$0x3]
        %vm370 = vcmp.eq.s32.totalorder %v366, %v363
        %v371 = vsel %vm370, 1.0, %v367
        %372 = vst [vmem:[%s360] sm:$0x3] %v371
        %s373 = smov [#allocation16]
        %v374 = vlaneseq
        %v375 = vand.u32 %v374, 127
        %v376 = vmov %v375
        %v377 = vlaneseq
        %v378 = vshrl.u32 %v377, 7
        %v379 = vmov %v378
        %v380 = vld [vmem:[%s373] sm:$0x3]
        %vm383 = vcmp.eq.s32.totalorder %v379, %v376
        %v384 = vsel %vm383, 1.0, %v380
        %385 = vst [vmem:[%s373] sm:$0x3] %v384
        // While loop
        $region141: #{custom-call.2} parent=139 // loop_pre_header
          _
        $region142: #{custom-call.2} parent=139 // loop_header
          %s387 = sphi 0, %s929
          %v388 = vlaneseq
          %v389 = vand.u32 %v388, 127
          %v390 = vmov %v389
          %v391 = vlaneseq
          %v392 = vshrl.u32 %v391, 7
          %v393 = vmov %v392
          %s394 = smov [#allocation18]
          %v395 = vlaneseq
          %v396 = vand.u32 %v395, 127
          %vm397 = vcmp.ge.s32.totalorder %v396, 0
          %vm398 = vcmp.lt.s32.totalorder %v396, 2
          %vm399 = vmand %vm397, %vm398
          %v400 = vld [vmem:[%s394] sm:$0x3]
          %v401 = vsel %vm399, %v400, 0.0
          %v402 = vmul.f32 %v401, %v401
          %vm405 = vcmp.eq.s32.totalorder %v393, %v390
          %v406 = vsel %vm405, 0.0, %v402
          %v407 = vlaneseq
          %v408 = vand.u32 %v407, 127
          %v409 = vmov %v408
          %v410 = vlaneseq
          %v411 = vshrl.u32 %v410, 7
          %v412 = vmov %v411
          %s413 = smov [#allocation19]
          %v414 = vlaneseq
          %v415 = vand.u32 %v414, 127
          %vm416 = vcmp.ge.s32.totalorder %v415, 0
          %vm417 = vcmp.lt.s32.totalorder %v415, 2
          %vm418 = vmand %vm416, %vm417
          %v419 = vld [vmem:[%s413] sm:$0x3]
          %v420 = vsel %vm418, %v419, 0.0
          %v421 = vmul.f32 %v420, %v420
          %v422 = vadd.f32 %v406, %v421
          %v423 = vadd.f32 %v402, %v421
          %v424 = vlaneseq
          %v425 = vand.u32 %v424, 127
          %v426 = vmov %v425
          %v427 = vlaneseq
          %v428 = vshrl.u32 %v427, 7
          %v429 = vmov %v428
          %s430 = smov [#allocation20]
          %v431 = vlaneseq
          %v432 = vand.u32 %v431, 127
          %vm433 = vcmp.ge.s32.totalorder %v432, 0
          %vm434 = vcmp.lt.s32.totalorder %v432, 2
          %vm435 = vmand %vm433, %vm434
          %v436 = vld [vmem:[%s430] sm:$0x3]
          %v437 = vsel %vm435, %v436, 0.0
          %v438 = vmul.f32 %v437, %v437
          %v439 = vadd.f32 %v422, %v438
          %v440 = vadd.f32 %v423, %v438
          %v441 = vlaneseq
          %v442 = vand.u32 %v441, 127
          %v443 = vmov %v442
          %v444 = vlaneseq
          %v445 = vshrl.u32 %v444, 7
          %v446 = vmov %v445
          %s447 = smov [#allocation21]
          %v448 = vlaneseq
          %v449 = vand.u32 %v448, 127
          %vm450 = vcmp.ge.s32.totalorder %v449, 0
          %vm451 = vcmp.lt.s32.totalorder %v449, 2
          %vm452 = vmand %vm450, %vm451
          %v453 = vld [vmem:[%s447] sm:$0x3]
          %v454 = vsel %vm452, %v453, 0.0
          %v455 = vmul.f32 %v454, %v454
          %vm458 = vcmp.eq.s32.totalorder %v446, %v443
          %v459 = vsel %vm458, 0.0, %v455
          %v460 = vadd.f32 %v439, %v459
          %v461 = vadd.f32 %v440, %v455
          %462 = vadd.xlane.f32.xlu0 %v461
          %v463 = vpop.xlane.xlu0 %462
          %v464 = vrot.slane %v463, 4
          %v465 = vadd.f32 %v463, %v464
          %v466 = vrot.slane %v465, 2
          %v467 = vadd.f32 %v465, %v466
          %v468 = vrot.slane %v467, 1
          %v469 = vadd.f32 %v467, %v468
          %470 = vadd.xlane.f32.xlu0 %v460
          %v471 = vpop.xlane.xlu0 %470
          %v472 = vrot.slane %v471, 4
          %v473 = vadd.f32 %v471, %v472
          %v474 = vrot.slane %v473, 2
          %v475 = vadd.f32 %v473, %v474
          %v476 = vrot.slane %v475, 1
          %v477 = vadd.f32 %v475, %v476
          %s478 = vtos %v477
          %s479 = vtos %v469
          %s480 = smul.f32 1e-10, %s479
          %p481 = scmp.le.f32.partialorder %s478, %s480
          %p482 = scmp.ge.s32.totalorder %s387, 15
          %p483 = por %p481, %p482
        $region143: #{custom-call.2} parent=139 // loop_header_branch
          %931 = sbr.rel (%p483) target = $region147
        $region144: #{custom-call.2} parent=139 // loop_body
          loop: start=0, step=1, limit=3
          $region148: #{custom-call.2} parent=144 // loop_pre_header
            _
          $region149: #{custom-call.2} parent=144 // loop_header
            %s485 = sphi 0, %s489
            %p486 = scmp.ge.s32.totalorder %s485, 3
          $region150: #{custom-call.2} parent=144 // loop_header_branch
            %488 = sbr.rel (%p486) target = $region154
          $region151: #{custom-call.2} parent=144 // loop_body
            #allocation22 [shape = 'f32[1024]{0}', space=vmem, size = 0x1000, scoped, tag = 'a_tl_diag vmem']
            #allocation23 [shape = 'f32[1024]{0}', space=vmem, size = 0x1000, scoped, tag = 'a_tr_diag vmem']
            #allocation24 [shape = 'f32[1024]{0}', space=vmem, size = 0x1000, scoped, tag = 'a_br_diag vmem']
            #allocation25 [shape = 'f32[1024]{0}', space=vmem, size = 0x1000, scoped, tag = 'rt1 vmem']
            #allocation26 [shape = 'f32[1024]{0}', space=vmem, size = 0x1000, scoped, tag = 'rt2 vmem']
            #allocation27 [shape = 'f32[1024]{0}', space=vmem, size = 0x1000, scoped, tag = 'c vmem']
            #allocation28 [shape = 'f32[1024]{0}', space=vmem, size = 0x1000, scoped, tag = 's vmem']
            #allocation29 [shape = 'f32[4096]{0}', space=vmem, size = 0x4000, scoped, tag = 'c broadcast']
            #allocation30 [shape = 'f32[4096]{0}', space=vmem, size = 0x4000, scoped, tag = 's broadcast']
            %s490 = smov [#allocation18]
            %s491 = smov [#allocation22]
            %v492 = vlaneseq
            %v493 = vand.u32 %v492, 127
            %v494 = vmov %v493
            %v495 = vlaneseq
            %v496 = vshrl.u32 %v495, 7
            %v497 = vmov %v496
            %v498 = vld [vmem:[%s490] sm:$0x3]
            %vm501 = vcmp.eq.s32.totalorder %v497, %v494
            %v502 = vsel %vm501, %v498, 0.0
            %v503 = vrot.slane %v502, 4
            %v504 = vadd.f32 %v502, %v503
            %v505 = vrot.slane %v504, 2
            %v506 = vadd.f32 %v504, %v505
            %v507 = vrot.slane %v506, 1
            %v508 = vadd.f32 %v506, %v507
            %509 = vst [vmem:[%s491] sm:$0x1] %v508
            %s510 = smov [#allocation19]
            %s511 = smov [#allocation23]
            %v512 = vlaneseq
            %v513 = vand.u32 %v512, 127
            %v514 = vmov %v513
            %v515 = vlaneseq
            %v516 = vshrl.u32 %v515, 7
            %v517 = vmov %v516
            %v518 = vld [vmem:[%s510] sm:$0x3]
            %vm521 = vcmp.eq.s32.totalorder %v517, %v514
            %v522 = vsel %vm521, %v518, 0.0
            %v523 = vrot.slane %v522, 4
            %v524 = vadd.f32 %v522, %v523
            %v525 = vrot.slane %v524, 2
            %v526 = vadd.f32 %v524, %v525
            %v527 = vrot.slane %v526, 1
            %v528 = vadd.f32 %v526, %v527
            %529 = vst [vmem:[%s511] sm:$0x1] %v528
            %s530 = smov [#allocation21]
            %s531 = smov [#allocation24]
            %v532 = vlaneseq
            %v533 = vand.u32 %v532, 127
            %v534 = vmov %v533
            %v535 = vlaneseq
            %v536 = vshrl.u32 %v535, 7
            %v537 = vmov %v536
            %v538 = vld [vmem:[%s530] sm:$0x3]
            %vm541 = vcmp.eq.s32.totalorder %v537, %v534
            %v542 = vsel %vm541, %v538, 0.0
            %v543 = vrot.slane %v542, 4
            %v544 = vadd.f32 %v542, %v543
            %v545 = vrot.slane %v544, 2
            %v546 = vadd.f32 %v544, %v545
            %v547 = vrot.slane %v546, 1
            %v548 = vadd.f32 %v546, %v547
            %549 = vst [vmem:[%s531] sm:$0x1] %v548
            %s550 = smov [#allocation27]
            %s551 = smov [#allocation28]
            %s552 = smov [#allocation22]
            %v553 = vld [vmem:[%s552] sm:$0xff]
            %s554 = smov [#allocation23]
            %v555 = vld [vmem:[%s554] sm:$0xff]
            %s556 = smov [#allocation24]
            %v557 = vld [vmem:[%s556] sm:$0xff]
            %v558 = vsub.f32 %v557, %v553
            %v559 = vmul.f32 2.0, %v555
            %v560 = vrcp.pop %v559
            %v561 = vmul.f32 %v558, %v560
            %vm562 = vcmp.ge.f32.partialorder %v561, 0.0
            %v563 = vmul.f32 %v561, %v561
            %v564 = vadd.f32 1.0, %v563
            %v565 = vrsqrt.pop %v564
            %v566 = vmul.f32 %v564, %v565
            %vm567 = vcmp.eq.f32.partialorder %v564, inf
            %v568 = vsel %vm567, %v564, %v566
            %vm569 = vcmp.eq.f32.partialorder %v564, 0.0
            %v570 = vand.u32 %v564, 2147483648
            %v571 = vsel %vm569, %v570, %v568
            %v572 = vxor.u32 %v571, 2147483648
            %v573 = vsel %vm562, %v571, %v572
            %v574 = vadd.f32 %v561, %v573
            %v575 = vrcp.pop %v574
            %v576 = vand.u32 2147483647, %v553
            %v577 = vand.u32 2147483647, %v555
            %v578 = vand.u32 2147483647, %v557
            %v579 = vmin.f32 %v576, %v578
            %v580 = vmul.f32 1.1920929e-08, %v579
            %vm581 = vcmp.le.f32.partialorder %v577, %v580
            %v582 = vsel %vm581, 0.0, %v575
            %v583 = vmul.f32 %v582, %v582
            %v584 = vadd.f32 1.0, %v583
            %v585 = vrsqrt.pop %v584
            %v586 = vmul.f32 %v582, %v585
            %v587 = vmul.f32 %v582, %v555
            %v588 = vsub.f32 %v553, %v587
            %v589 = vmul.f32 %v582, %v555
            %v590 = vadd.f32 %v557, %v589
            %s591 = smov [#allocation25]
            %592 = vst [vmem:[%s591] sm:$0xff] %v588
            %s593 = smov [#allocation26]
            %594 = vst [vmem:[%s593] sm:$0xff] %v590
            %s595 = smov %s550
            %596 = vst [vmem:[%s595] sm:$0xff] %v585
            %s597 = smov %s551
            %598 = vst [vmem:[%s597] sm:$0xff] %v586
            %s599 = smov [#allocation27]
            %v600 = vld [vmem:[%s599] ss:$0 sm:$0xff]
            %v601 = vlaneseq
            %v602 = vand.u32 %v601, 127
            %v603 = vmov %v602
            %v604 = vlaneseq
            %v605 = vshrl.u32 %v604, 7
            %v606 = vmov %v605
            %vm608 = vcmp.eq.s32.totalorder %v606, %v603
            %v609 = vsel %vm608, %v600, 0.0
            %610 = vadd.xlane.f32.xlu0 %v609
            %v611 = vpop.xlane.xlu0 %610
            %s612 = smov [#allocation29]
            %613 = vst [vmem:[%s612] sm:$0xff] %v611
            %s614 = smov [#allocation28]
            %v615 = vld [vmem:[%s614] ss:$0 sm:$0xff]
            %v616 = vlaneseq
            %v617 = vand.u32 %v616, 127
            %v618 = vmov %v617
            %v619 = vlaneseq
            %v620 = vshrl.u32 %v619, 7
            %v621 = vmov %v620
            %vm623 = vcmp.eq.s32.totalorder %v621, %v618
            %v624 = vsel %vm623, %v615, 0.0
            %625 = vadd.xlane.f32.xlu0 %v624
            %v626 = vpop.xlane.xlu0 %625
            %s627 = smov [#allocation30]
            %628 = vst [vmem:[%s627] sm:$0xff] %v626
            %s629 = smov [#allocation29]
            %v630 = vld [vmem:[%s629] sm:$0xff]
            %s631 = smov [#allocation30]
            %v632 = vld [vmem:[%s631] sm:$0xff]
            %s633 = smov [#allocation18]
            %s634 = smov [#allocation19]
            %s635 = smov [#allocation20]
            %s636 = smov [#allocation21]
            %v637 = vld [vmem:[%s633] sm:$0x3]
            %v638 = vld [vmem:[%s634] sm:$0x3]
            %v639 = vld [vmem:[%s635] sm:$0x3]
            %v640 = vld [vmem:[%s636] sm:$0x3]
            %v641 = vmul.f32 %v630, %v637
            %v642 = vmul.f32 %v632, %v639
            %v643 = vsub.f32 %v641, %v642
            %v644 = vmul.f32 %v630, %v638
            %v645 = vmul.f32 %v632, %v640
            %v646 = vsub.f32 %v644, %v645
            %v647 = vmul.f32 %v632, %v637
            %v648 = vmul.f32 %v630, %v639
            %v649 = vadd.f32 %v647, %v648
            %v650 = vmul.f32 %v632, %v638
            %v651 = vmul.f32 %v630, %v640
            %v652 = vadd.f32 %v650, %v651
            %653 = vst [vmem:[%s633] sm:$0x3] %v643
            %654 = vst [vmem:[%s634] sm:$0x3] %v646
            %655 = vst [vmem:[%s635] sm:$0x3] %v649
            %656 = vst [vmem:[%s636] sm:$0x3] %v652
            %s657 = smov [#allocation27]
            %v658 = vld [vmem:[%s657] ss:$0 sm:$0xff]
            %s659 = smov [#allocation28]
            %v660 = vld [vmem:[%s659] ss:$0 sm:$0xff]
            %s661 = smov [#allocation18]
            %s662 = smov [#allocation19]
            %s663 = smov [#allocation20]
            %s664 = smov [#allocation21]
            %v665 = vld [vmem:[%s661] sm:$0x3]
            %v666 = vld [vmem:[%s662] sm:$0x3]
            %v667 = vld [vmem:[%s663] sm:$0x3]
            %v668 = vld [vmem:[%s664] sm:$0x3]
            %v669 = vmul.f32 %v658, %v665
            %v670 = vmul.f32 %v660, %v666
            %v671 = vsub.f32 %v669, %v670
            %v672 = vmul.f32 %v660, %v665
            %v673 = vmul.f32 %v658, %v666
            %v674 = vadd.f32 %v672, %v673
            %v675 = vmul.f32 %v658, %v667
            %v676 = vmul.f32 %v660, %v668
            %v677 = vsub.f32 %v675, %v676
            %v678 = vmul.f32 %v660, %v667
            %v679 = vmul.f32 %v658, %v668
            %v680 = vadd.f32 %v678, %v679
            %681 = vst [vmem:[%s661] sm:$0x3] %v671
            %682 = vst [vmem:[%s662] sm:$0x3] %v674
            %683 = vst [vmem:[%s663] sm:$0x3] %v677
            %684 = vst [vmem:[%s664] sm:$0x3] %v680
            %s685 = smov [#allocation18]
            %s686 = smov [#allocation25]
            %v687 = vlaneseq
            %v688 = vand.u32 %v687, 127
            %v689 = vmov %v688
            %v690 = vlaneseq
            %v691 = vshrl.u32 %v690, 7
            %v692 = vmov %v691
            %v693 = vld [vmem:[%s686] ss:$0 sm:$0xff]
            %v694 = vld [vmem:[%s685] sm:$0x3]
            %vm697 = vcmp.eq.s32.totalorder %v692, %v689
            %v698 = vsel %vm697, %v693, %v694
            %699 = vst [vmem:[%s685] sm:$0x3] %v698
            %s700 = smov [#allocation19]
            %v701 = vlaneseq
            %v702 = vand.u32 %v701, 127
            %v703 = vmov %v702
            %v704 = vlaneseq
            %v705 = vshrl.u32 %v704, 7
            %v706 = vmov %v705
            %v707 = vld [vmem:[%s700] sm:$0x3]
            %vm710 = vcmp.eq.s32.totalorder %v706, %v703
            %v711 = vsel %vm710, 0.0, %v707
            %712 = vst [vmem:[%s700] sm:$0x3] %v711
            %s713 = smov [#allocation20]
            %v714 = vlaneseq
            %v715 = vand.u32 %v714, 127
            %v716 = vmov %v715
            %v717 = vlaneseq
            %v718 = vshrl.u32 %v717, 7
            %v719 = vmov %v718
            %v720 = vld [vmem:[%s713] sm:$0x3]
            %vm723 = vcmp.eq.s32.totalorder %v719, %v716
            %v724 = vsel %vm723, 0.0, %v720
            %725 = vst [vmem:[%s713] sm:$0x3] %v724
            %s726 = smov [#allocation21]
            %s727 = smov [#allocation26]
            %v728 = vlaneseq
            %v729 = vand.u32 %v728, 127
            %v730 = vmov %v729
            %v731 = vlaneseq
            %v732 = vshrl.u32 %v731, 7
            %v733 = vmov %v732
            %v734 = vld [vmem:[%s727] ss:$0 sm:$0xff]
            %v735 = vld [vmem:[%s726] sm:$0x3]
            %vm738 = vcmp.eq.s32.totalorder %v733, %v730
            %v739 = vsel %vm738, %v734, %v735
            %740 = vst [vmem:[%s726] sm:$0x3] %v739
            %s741 = smov [#allocation18]
            %s742 = smov [#allocation19]
            %v743 = vld [vmem:[%s742] sm:$0x3]
            %744 = vrot.lane.b32.xlu0 %v743, 1
            %v745 = vpop.permute.xlu0 %744
            %v746 = vld [vmem:[%s741] sm:$0x3]
            %v747 = vld [vmem:[%s741] sm:$0x3]
            %748 = vrot.lane.b32.xlu0 %v747, 1
            %v749 = vpop.permute.xlu0 %748
            %v750 = vlaneseq
            %v751 = vand.u32 %v750, 127
            %vm752 = vcmp.eq.s32.totalorder %v751, 0
            %v753 = vsel %vm752, %v747, %v749
            %v754 = vlaneseq
            %v755 = vand.u32 %v754, 127
            %vm756 = vcmp.eq.s32.totalorder %v755, 1
            %v757 = vsel %vm756, %v745, %v753
            %v758 = vlaneseq
            %v759 = vand.u32 %v758, 127
            %vm760 = vcmp.ge.s32.totalorder %v759, 0
            %vm761 = vcmp.lt.s32.totalorder %v759, 2
            %vm762 = vmand %vm760, %vm761
            %v763 = vsel %vm762, %v757, 0.0
            %v764 = vld [vmem:[%s742] sm:$0x3]
            %765 = vrot.lane.b32.xlu0 %v764, 127
            %v766 = vpop.permute.xlu0 %765
            %v767 = vlaneseq
            %v768 = vand.u32 %v767, 127
            %vm769 = vcmp.eq.s32.totalorder %v768, 1
            %v770 = vsel %vm769, %v746, %v766
            %771 = vst [vmem:[%s741] sm:$0x3] %v763
            %772 = vst [vmem:[%s742] sm:$0x3] %v770
            %s773 = smov [#allocation20]
            %s774 = smov [#allocation21]
            %v775 = vld [vmem:[%s774] sm:$0x3]
            %776 = vrot.lane.b32.xlu0 %v775, 1
            %v777 = vpop.permute.xlu0 %776
            %v778 = vld [vmem:[%s773] sm:$0x3]
            %v779 = vld [vmem:[%s773] sm:$0x3]
            %780 = vrot.lane.b32.xlu0 %v779, 1
            %v781 = vpop.permute.xlu0 %780
            %v782 = vlaneseq
            %v783 = vand.u32 %v782, 127
            %vm784 = vcmp.eq.s32.totalorder %v783, 0
            %v785 = vsel %vm784, %v779, %v781
            %v786 = vlaneseq
            %v787 = vand.u32 %v786, 127
            %vm788 = vcmp.eq.s32.totalorder %v787, 1
            %v789 = vsel %vm788, %v777, %v785
            %v790 = vlaneseq
            %v791 = vand.u32 %v790, 127
            %vm792 = vcmp.ge.s32.totalorder %v791, 0
            %vm793 = vcmp.lt.s32.totalorder %v791, 2
            %vm794 = vmand %vm792, %vm793
            %v795 = vsel %vm794, %v789, 0.0
            %v796 = vld [vmem:[%s774] sm:$0x3]
            %797 = vrot.lane.b32.xlu0 %v796, 127
            %v798 = vpop.permute.xlu0 %797
            %v799 = vlaneseq
            %v800 = vand.u32 %v799, 127
            %vm801 = vcmp.eq.s32.totalorder %v800, 1
            %v802 = vsel %vm801, %v778, %v798
            %803 = vst [vmem:[%s773] sm:$0x3] %v795
            %804 = vst [vmem:[%s774] sm:$0x3] %v802
            %s805 = smov [#allocation18]
            %s806 = smov [#allocation20]
            %v807 = vld [vmem:[%s805] ss:$0 sm:$0xff]
            %s809 = scalar_lea.vmem %s805, 4294967295
            %v810 = vld [vmem:[%s809] sm:$0x2]
            %v811 = vlaneseq
            %v812 = vshrl.u32 %v811, 7
            %vm813 = vcmp.eq.s32.totalorder %v812, 0
            %v814 = vsel %vm813, %v807, %v810
            %s815 = scalar_lea.vmem %s805, 1
            %v816 = vld [vmem:[%s815] ss:$0 sm:$0xff]
            %817 = vst [vmem:[%s805] sm:$0x3] %v814
            %v818 = vld [vmem:[%s806] ss:$0 sm:$0xff]
            %s819 = scalar_lea.vmem %s805, 1
            %820 = vst [vmem:[%s819] sm:$0x1] %v818
            %s821 = scalar_lea.vmem %s806, 1
            %v822 = vld [vmem:[%s821] sm:$0x1]
            %v823 = vlaneseq
            %v824 = vshrl.u32 %v823, 7
            %vm825 = vcmp.eq.s32.totalorder %v824, 1
            %v826 = vsel %vm825, %v816, %v822
            %v827 = vld [vmem:[%s806] ss:$0 sm:$0xff]
            %828 = vst [vmem:[%s806] sm:$0x3] %v826
            %s829 = smov [#allocation19]
            %s830 = smov [#allocation21]
            %v831 = vld [vmem:[%s829] ss:$0 sm:$0xff]
            %s833 = scalar_lea.vmem %s829, 4294967295
            %v834 = vld [vmem:[%s833] sm:$0x2]
            %v835 = vlaneseq
            %v836 = vshrl.u32 %v835, 7
            %vm837 = vcmp.eq.s32.totalorder %v836, 0
            %v838 = vsel %vm837, %v831, %v834
            %s839 = scalar_lea.vmem %s829, 1
            %v840 = vld [vmem:[%s839] ss:$0 sm:$0xff]
            %841 = vst [vmem:[%s829] sm:$0x3] %v838
            %v842 = vld [vmem:[%s830] ss:$0 sm:$0xff]
            %s843 = scalar_lea.vmem %s829, 1
            %844 = vst [vmem:[%s843] sm:$0x1] %v842
            %s845 = scalar_lea.vmem %s830, 1
            %v846 = vld [vmem:[%s845] sm:$0x1]
            %v847 = vlaneseq
            %v848 = vshrl.u32 %v847, 7
            %vm849 = vcmp.eq.s32.totalorder %v848, 1
            %v850 = vsel %vm849, %v840, %v846
            %v851 = vld [vmem:[%s830] ss:$0 sm:$0xff]
            %852 = vst [vmem:[%s830] sm:$0x3] %v850
            %s853 = smov [#allocation29]
            %v854 = vld [vmem:[%s853] sm:$0xff]
            %s855 = smov [#allocation30]
            %v856 = vld [vmem:[%s855] sm:$0xff]
            %s857 = smov [#allocation10]
            %s858 = smov [#allocation12]
            %s859 = smov [#allocation14]
            %s860 = smov [#allocation16]
            %v861 = vld [vmem:[%s857] sm:$0x3]
            %v862 = vld [vmem:[%s858] sm:$0x3]
            %v863 = vld [vmem:[%s859] sm:$0x3]
            %v864 = vld [vmem:[%s860] sm:$0x3]
            %v865 = vmul.f32 %v854, %v861
            %v866 = vmul.f32 %v856, %v863
            %v867 = vsub.f32 %v865, %v866
            %v868 = vmul.f32 %v854, %v862
            %v869 = vmul.f32 %v856, %v864
            %v870 = vsub.f32 %v868, %v869
            %v871 = vmul.f32 %v856, %v861
            %v872 = vmul.f32 %v854, %v863
            %v873 = vadd.f32 %v871, %v872
            %v874 = vmul.f32 %v856, %v862
            %v875 = vmul.f32 %v854, %v864
            %v876 = vadd.f32 %v874, %v875
            %877 = vst [vmem:[%s857] sm:$0x3] %v867
            %878 = vst [vmem:[%s858] sm:$0x3] %v870
            %879 = vst [vmem:[%s859] sm:$0x3] %v873
            %880 = vst [vmem:[%s860] sm:$0x3] %v876
            %s881 = smov [#allocation10]
            %s882 = smov [#allocation14]
            %v883 = vld [vmem:[%s881] ss:$0 sm:$0xff]
            %s885 = scalar_lea.vmem %s881, 4294967295
            %v886 = vld [vmem:[%s885] sm:$0x2]
            %v887 = vlaneseq
            %v888 = vshrl.u32 %v887, 7
            %vm889 = vcmp.eq.s32.totalorder %v888, 0
            %v890 = vsel %vm889, %v883, %v886
            %s891 = scalar_lea.vmem %s881, 1
            %v892 = vld [vmem:[%s891] ss:$0 sm:$0xff]
            %893 = vst [vmem:[%s881] sm:$0x3] %v890
            %v894 = vld [vmem:[%s882] ss:$0 sm:$0xff]
            %s895 = scalar_lea.vmem %s881, 1
            %896 = vst [vmem:[%s895] sm:$0x1] %v894
            %s897 = scalar_lea.vmem %s882, 1
            %v898 = vld [vmem:[%s897] sm:$0x1]
            %v899 = vlaneseq
            %v900 = vshrl.u32 %v899, 7
            %vm901 = vcmp.eq.s32.totalorder %v900, 1
            %v902 = vsel %vm901, %v892, %v898
            %v903 = vld [vmem:[%s882] ss:$0 sm:$0xff]
            %904 = vst [vmem:[%s882] sm:$0x3] %v902
            %s905 = smov [#allocation12]
            %s906 = smov [#allocation16]
            %v907 = vld [vmem:[%s905] ss:$0 sm:$0xff]
            %s909 = scalar_lea.vmem %s905, 4294967295
            %v910 = vld [vmem:[%s909] sm:$0x2]
            %v911 = vlaneseq
            %v912 = vshrl.u32 %v911, 7
            %vm913 = vcmp.eq.s32.totalorder %v912, 0
            %v914 = vsel %vm913, %v907, %v910
            %s915 = scalar_lea.vmem %s905, 1
            %v916 = vld [vmem:[%s915] ss:$0 sm:$0xff]
            %917 = vst [vmem:[%s905] sm:$0x3] %v914
            %v918 = vld [vmem:[%s906] ss:$0 sm:$0xff]
            %s919 = scalar_lea.vmem %s905, 1
            %920 = vst [vmem:[%s919] sm:$0x1] %v918
            %s921 = scalar_lea.vmem %s906, 1
            %v922 = vld [vmem:[%s921] sm:$0x1]
            %v923 = vlaneseq
            %v924 = vshrl.u32 %v923, 7
            %vm925 = vcmp.eq.s32.totalorder %v924, 1
            %v926 = vsel %vm925, %v916, %v922
            %v927 = vld [vmem:[%s906] ss:$0 sm:$0xff]
            %928 = vst [vmem:[%s906] sm:$0x3] %v926
          $region152: #{custom-call.2} parent=144 // loop_footer
            %s489 = sadd.s32 1, %s485
          $region153: #{custom-call.2} parent=144 // loop_footer_branch
            %484 = sbr.rel target = $region149
          $region154: #{custom-call.2} parent=144 // loop_exit
            _
          %s929 = sadd.s32 %s387, 1
        $region145: #{custom-call.2} parent=139 // loop_footer
          _
        $region146: #{custom-call.2} parent=139 // loop_footer_branch
          %386 = sbr.rel target = $region142
        $region147: #{custom-call.2} parent=139 // loop_exit
          _
        %s932 = sand.u32 %s22, 7
        %s933 = scalar_lea.vmem %s303, %s932 [#allocation8]
        %s934 = sand.u32 %s22, 7
        %s935 = scalar_lea.vmem %s309, %s934 [#allocation9]
        %s936 = smov [#allocation18]
        %s937 = smov %s933
        %v938 = vlaneseq
        %v939 = vand.u32 %v938, 127
        %v940 = vmov %v939
        %v941 = vlaneseq
        %v942 = vshrl.u32 %v941, 7
        %v943 = vmov %v942
        %v944 = vld [vmem:[%s936] sm:$0x3]
        %vm947 = vcmp.eq.s32.totalorder %v943, %v940
        %v948 = vsel %vm947, %v944, 0.0
        %v949 = vrot.slane %v948, 4
        %v950 = vadd.f32 %v948, %v949
        %v951 = vrot.slane %v950, 2
        %v952 = vadd.f32 %v950, %v951
        %v953 = vrot.slane %v952, 1
        %v954 = vadd.f32 %v952, %v953
        %955 = vst [vmem:[%s937] sm:$0x1] %v954
        %s956 = smov [#allocation21]
        %s957 = smov %s935
        %v958 = vlaneseq
        %v959 = vand.u32 %v958, 127
        %v960 = vmov %v959
        %v961 = vlaneseq
        %v962 = vshrl.u32 %v961, 7
        %v963 = vmov %v962
        %v964 = vld [vmem:[%s956] sm:$0x3]
        %vm967 = vcmp.eq.s32.totalorder %v963, %v960
        %v968 = vsel %vm967, %v964, 0.0
        %v969 = vrot.slane %v968, 4
        %v970 = vadd.f32 %v968, %v969
        %v971 = vrot.slane %v970, 2
        %v972 = vadd.f32 %v970, %v971
        %v973 = vrot.slane %v972, 1
        %v974 = vadd.f32 %v972, %v973
        %975 = vst [vmem:[%s957] sm:$0x1] %v974
        %s977 = sshllo.u32 0, 2
        %v979 = vld [vmem:[#allocation10] sm:%s977]
        %s980 = sshllo.u32 0, 2
        %981 = vst [vmem:[%s313] sm:%s980] %v979
        %s983 = sshllo.u32 0, 2
        %v985 = vld [vmem:[#allocation12] sm:%s983]
        %s986 = sshllo.u32 0, 2
        %987 = vst [vmem:[%s317] sm:%s986] %v985
        %s989 = sshllo.u32 0, 2
        %v991 = vld [vmem:[#allocation14] sm:%s989]
        %s992 = sshllo.u32 0, 2
        %993 = vst [vmem:[%s321] sm:%s992] %v991
        %s995 = sshllo.u32 0, 2
        %v997 = vld [vmem:[#allocation16] sm:%s995]
        %s998 = sshllo.u32 0, 2
        %999 = vst [vmem:[%s325] sm:%s998] %v997
        %s1000 = sand.u32 %s41, 1
        %s1001 = sand.u32 %s41, 1
        %s1002 = smul.addr %s1001, 8
        %s1003 = scalar_lea.vmem [#allocation8], %s1002
        %s1004 = sand.u32 %s71, 1
        %s1005 = sand.u32 %s71, 1
        %s1006 = smul.addr %s1005, 8
        %s1007 = scalar_lea.vmem [#allocation9], %s1006
        %s1008 = sand.u32 %s17, 1
        %s1009 = sand.u32 %s17, 1
        %s1010 = smul.addr %s1009, 2
        %s1011 = scalar_lea.vmem [#allocation11], %s1010
        %s1012 = sand.u32 %s17, 1
        %s1013 = sand.u32 %s17, 1
        %s1014 = smul.addr %s1013, 2
        %s1015 = scalar_lea.vmem [#allocation13], %s1014
        %s1016 = sand.u32 %s17, 1
        %s1017 = sand.u32 %s17, 1
        %s1018 = smul.addr %s1017, 2
        %s1019 = scalar_lea.vmem [#allocation15], %s1018
        %s1020 = sand.u32 %s17, 1
        %s1021 = sand.u32 %s17, 1
        %s1022 = smul.addr %s1021, 2
        %s1023 = scalar_lea.vmem [#allocation17], %s1022
        // Predicated region
        $region155: #{custom-call.2} parent=139 // pred_check
          %p1024 = pneg %p51
        $region156: #{custom-call.2} parent=139 // pred_check_branch
          %1026 = sbr.rel (%p1024) target = $region158
        $region157: #{custom-call.2} parent=139 // pred_region
          %s1027 = sshrl.u32 %s22, 3
          %s1028 = smul.addr %s21, 8
          %s1029 = sadd.s32 %s1027, %s1028
          %s1030 = smul.addr %s1029, 8
          %s1031 = scalar_lea.vmem %s4, %s1030
          // Predicated region
          $region159: #{custom-call.2} parent=157 // pred_check
            _
          $region160: #{custom-call.2} parent=157 // pred_check_branch
            %1033 = sbr.rel (0) target = $region162
          $region161: #{custom-call.2} parent=157 // pred_region
            // Predicated region
            $region163: #{custom-call.2} parent=161 // pred_check
              _
            $region164: #{custom-call.2} parent=161 // pred_check_branch
              %1035 = sbr.rel (0) target = $region166
            $region165: #{custom-call.2} parent=161 // pred_region
              // Predicated region
              $region178: #{custom-call.2} parent=165 // pred_check
                _
              $region179: #{custom-call.2} parent=165 // pred_check_branch
                %1050 = sbr.rel (0) target = $region181
              $region180: #{custom-call.2} parent=165 // pred_region
                loop: start=0, step=1, limit=1
                $region182: #{custom-call.2} parent=180 // loop_pre_header
                  _
                $region183: #{custom-call.2} parent=180 // loop_header
                  %s1052 = sphi 0, %s1056
                  %p1053 = scmp.ge.s32.totalorder %s1052, 1
                  %s1057 = sphi %s1003, %s1003
                  %s1058 = sphi %s1031, %s1031
                $region184: #{custom-call.2} parent=180 // loop_header_branch
                  %1055 = sbr.rel (%p1053) target = $region188
                $region185: #{custom-call.2} parent=180 // loop_body
                  %v1059 = vld [vmem:[%s1057] sm:$0xff]
                  %1060 = vst [vmem:[%s1058] sm:$0xff] %v1059
                $region186: #{custom-call.2} parent=180 // loop_footer
                  %s1056 = sadd.s32 1, %s1052
                $region187: #{custom-call.2} parent=180 // loop_footer_branch
                  %1051 = sbr.rel target = $region183
                $region188: #{custom-call.2} parent=180 // loop_exit
                  _
              $region181: #{custom-call.2} parent=165 // pred_fallthru
                _
              // Predicated region
              $region189: #{custom-call.2} parent=165 // pred_check
                _
              $region190: #{custom-call.2} parent=165 // pred_check_branch
                %1062 = sbr.rel target = $region192
              $region191: #{custom-call.2} parent=165 // pred_region
                _
              $region192: #{custom-call.2} parent=165 // pred_fallthru
                _
            $region166: #{custom-call.2} parent=161 // pred_fallthru
              _
            // Predicated region
            $region167: #{custom-call.2} parent=161 // pred_check
              _
            $region168: #{custom-call.2} parent=161 // pred_check_branch
              %1037 = sbr.rel target = $region170
            $region169: #{custom-call.2} parent=161 // pred_region
              loop: start=0, step=1, limit=1
              $region171: #{custom-call.2} parent=169 // loop_pre_header
                _
              $region172: #{custom-call.2} parent=169 // loop_header
                %s1040 = sphi 0, %s1044
                %p1041 = scmp.ge.s32.totalorder %s1040, 1
                %s1045 = sphi %s1003, %s1003
                %s1046 = sphi %s1031, %s1031
              $region173: #{custom-call.2} parent=169 // loop_header_branch
                %1043 = sbr.rel (%p1041) target = $region177
              $region174: #{custom-call.2} parent=169 // loop_body
                %v1047 = vld [vmem:[%s1045] sm:$0xff]
                %1048 = vst [vmem:[%s1046] sm:$0xff] %v1047
              $region175: #{custom-call.2} parent=169 // loop_footer
                %s1044 = sadd.s32 1, %s1040
              $region176: #{custom-call.2} parent=169 // loop_footer_branch
                %1039 = sbr.rel target = $region172
              $region177: #{custom-call.2} parent=169 // loop_exit
                _
            $region170: #{custom-call.2} parent=161 // pred_fallthru
              _
          $region162: #{custom-call.2} parent=157 // pred_fallthru
            _
          %1063 = vnop
        $region158: #{custom-call.2} parent=139 // pred_fallthru
          _
        // Predicated region
        $region193: #{custom-call.2} parent=139 // pred_check
          %p1064 = pneg %p81
        $region194: #{custom-call.2} parent=139 // pred_check_branch
          %1066 = sbr.rel (%p1064) target = $region196
        $region195: #{custom-call.2} parent=139 // pred_region
          %s1067 = sshrl.u32 %s22, 3
          %s1068 = smul.addr %s21, 8
          %s1069 = sadd.s32 %s1067, %s1068
          %s1070 = smul.addr %s1069, 8
          %s1071 = scalar_lea.vmem %s5, %s1070
          // Predicated region
          $region197: #{custom-call.2} parent=195 // pred_check
            _
          $region198: #{custom-call.2} parent=195 // pred_check_branch
            %1073 = sbr.rel (0) target = $region200
          $region199: #{custom-call.2} parent=195 // pred_region
            // Predicated region
            $region201: #{custom-call.2} parent=199 // pred_check
              _
            $region202: #{custom-call.2} parent=199 // pred_check_branch
              %1075 = sbr.rel (0) target = $region204
            $region203: #{custom-call.2} parent=199 // pred_region
              // Predicated region
              $region216: #{custom-call.2} parent=203 // pred_check
                _
              $region217: #{custom-call.2} parent=203 // pred_check_branch
                %1090 = sbr.rel (0) target = $region219
              $region218: #{custom-call.2} parent=203 // pred_region
                loop: start=0, step=1, limit=1
                $region220: #{custom-call.2} parent=218 // loop_pre_header
                  _
                $region221: #{custom-call.2} parent=218 // loop_header
                  %s1092 = sphi 0, %s1096
                  %p1093 = scmp.ge.s32.totalorder %s1092, 1
                  %s1097 = sphi %s1007, %s1007
                  %s1098 = sphi %s1071, %s1071
                $region222: #{custom-call.2} parent=218 // loop_header_branch
                  %1095 = sbr.rel (%p1093) target = $region226
                $region223: #{custom-call.2} parent=218 // loop_body
                  %v1099 = vld [vmem:[%s1097] sm:$0xff]
                  %1100 = vst [vmem:[%s1098] sm:$0xff] %v1099
                $region224: #{custom-call.2} parent=218 // loop_footer
                  %s1096 = sadd.s32 1, %s1092
                $region225: #{custom-call.2} parent=218 // loop_footer_branch
                  %1091 = sbr.rel target = $region221
                $region226: #{custom-call.2} parent=218 // loop_exit
                  _
              $region219: #{custom-call.2} parent=203 // pred_fallthru
                _
              // Predicated region
              $region227: #{custom-call.2} parent=203 // pred_check
                _
              $region228: #{custom-call.2} parent=203 // pred_check_branch
                %1102 = sbr.rel target = $region230
              $region229: #{custom-call.2} parent=203 // pred_region
                _
              $region230: #{custom-call.2} parent=203 // pred_fallthru
                _
            $region204: #{custom-call.2} parent=199 // pred_fallthru
              _
            // Predicated region
            $region205: #{custom-call.2} parent=199 // pred_check
              _
            $region206: #{custom-call.2} parent=199 // pred_check_branch
              %1077 = sbr.rel target = $region208
            $region207: #{custom-call.2} parent=199 // pred_region
              loop: start=0, step=1, limit=1
              $region209: #{custom-call.2} parent=207 // loop_pre_header
                _
              $region210: #{custom-call.2} parent=207 // loop_header
                %s1080 = sphi 0, %s1084
                %p1081 = scmp.ge.s32.totalorder %s1080, 1
                %s1085 = sphi %s1007, %s1007
                %s1086 = sphi %s1071, %s1071
              $region211: #{custom-call.2} parent=207 // loop_header_branch
                %1083 = sbr.rel (%p1081) target = $region215
              $region212: #{custom-call.2} parent=207 // loop_body
                %v1087 = vld [vmem:[%s1085] sm:$0xff]
                %1088 = vst [vmem:[%s1086] sm:$0xff] %v1087
              $region213: #{custom-call.2} parent=207 // loop_footer
                %s1084 = sadd.s32 1, %s1080
              $region214: #{custom-call.2} parent=207 // loop_footer_branch
                %1079 = sbr.rel target = $region210
              $region215: #{custom-call.2} parent=207 // loop_exit
                _
            $region208: #{custom-call.2} parent=199 // pred_fallthru
              _
          $region200: #{custom-call.2} parent=195 // pred_fallthru
            _
          %1103 = vnop
        $region196: #{custom-call.2} parent=139 // pred_fallthru
          _
        %s1104 = smul.addr %s21, 64
        %s1105 = sadd.s32 %s22, %s1104
        %s1106 = smul.addr %s1105, 2
        %s1107 = scalar_lea.vmem %s6, %s1106
        // Predicated region
        $region231: #{custom-call.2} parent=139 // pred_check
          _
        $region232: #{custom-call.2} parent=139 // pred_check_branch
          %1109 = sbr.rel (0) target = $region234
        $region233: #{custom-call.2} parent=139 // pred_region
          // Predicated region
          $region235: #{custom-call.2} parent=233 // pred_check
            _
          $region236: #{custom-call.2} parent=233 // pred_check_branch
            %1111 = sbr.rel target = $region238
          $region237: #{custom-call.2} parent=233 // pred_region
            // Predicated region
            $region250: #{custom-call.2} parent=237 // pred_check
              _
            $region251: #{custom-call.2} parent=237 // pred_check_branch
              %1126 = sbr.rel (0) target = $region253
            $region252: #{custom-call.2} parent=237 // pred_region
              loop: start=0, step=1, limit=1
              $region254: #{custom-call.2} parent=252 // loop_pre_header
                _
              $region255: #{custom-call.2} parent=252 // loop_header
                %s1129 = sphi 0, %s1133
                %p1130 = scmp.ge.s32.totalorder %s1129, 1
                %s1134 = sphi %s1011, %s1011
                %s1135 = sphi %s1107, %s1107
              $region256: #{custom-call.2} parent=252 // loop_header_branch
                %1132 = sbr.rel (%p1130) target = $region260
              $region257: #{custom-call.2} parent=252 // loop_body
                %v1136 = vld [vmem:[%s1134] sm:$0x3]
                %1137 = vst [vmem:[%s1135] sm:$0x3] %v1136
              $region258: #{custom-call.2} parent=252 // loop_footer
                %s1133 = sadd.s32 1, %s1129
              $region259: #{custom-call.2} parent=252 // loop_footer_branch
                %1128 = sbr.rel target = $region255
              $region260: #{custom-call.2} parent=252 // loop_exit
                _
            $region253: #{custom-call.2} parent=237 // pred_fallthru
              _
          $region238: #{custom-call.2} parent=233 // pred_fallthru
            _
          // Predicated region
          $region239: #{custom-call.2} parent=233 // pred_check
            _
          $region240: #{custom-call.2} parent=233 // pred_check_branch
            %1113 = sbr.rel (0) target = $region242
          $region241: #{custom-call.2} parent=233 // pred_region
            loop: start=0, step=1, limit=1
            $region243: #{custom-call.2} parent=241 // loop_pre_header
              _
            $region244: #{custom-call.2} parent=241 // loop_header
              %s1116 = sphi 0, %s1120
              %p1117 = scmp.ge.s32.totalorder %s1116, 1
              %s1121 = sphi %s1011, %s1011
              %s1122 = sphi %s1107, %s1107
            $region245: #{custom-call.2} parent=241 // loop_header_branch
              %1119 = sbr.rel (%p1117) target = $region249
            $region246: #{custom-call.2} parent=241 // loop_body
              %v1123 = vld [vmem:[%s1121] sm:$0x3]
              %1124 = vst [vmem:[%s1122] sm:$0x3] %v1123
            $region247: #{custom-call.2} parent=241 // loop_footer
              %s1120 = sadd.s32 1, %s1116
            $region248: #{custom-call.2} parent=241 // loop_footer_branch
              %1115 = sbr.rel target = $region244
            $region249: #{custom-call.2} parent=241 // loop_exit
              _
          $region242: #{custom-call.2} parent=233 // pred_fallthru
            _
        $region234: #{custom-call.2} parent=139 // pred_fallthru
          _
        %1138 = vnop
        %s1139 = smul.addr %s21, 64
        %s1140 = sadd.s32 %s22, %s1139
        %s1141 = smul.addr %s1140, 2
        %s1142 = scalar_lea.vmem %s7, %s1141
        // Predicated region
        $region261: #{custom-call.2} parent=139 // pred_check
          _
        $region262: #{custom-call.2} parent=139 // pred_check_branch
          %1144 = sbr.rel (0) target = $region264
        $region263: #{custom-call.2} parent=139 // pred_region
          // Predicated region
          $region265: #{custom-call.2} parent=263 // pred_check
            _
          $region266: #{custom-call.2} parent=263 // pred_check_branch
            %1146 = sbr.rel target = $region268
          $region267: #{custom-call.2} parent=263 // pred_region
            // Predicated region
            $region280: #{custom-call.2} parent=267 // pred_check
              _
            $region281: #{custom-call.2} parent=267 // pred_check_branch
              %1161 = sbr.rel (0) target = $region283
            $region282: #{custom-call.2} parent=267 // pred_region
              loop: start=0, step=1, limit=1
              $region284: #{custom-call.2} parent=282 // loop_pre_header
                _
              $region285: #{custom-call.2} parent=282 // loop_header
                %s1164 = sphi 0, %s1168
                %p1165 = scmp.ge.s32.totalorder %s1164, 1
                %s1169 = sphi %s1015, %s1015
                %s1170 = sphi %s1142, %s1142
              $region286: #{custom-call.2} parent=282 // loop_header_branch
                %1167 = sbr.rel (%p1165) target = $region290
              $region287: #{custom-call.2} parent=282 // loop_body
                %v1171 = vld [vmem:[%s1169] sm:$0x3]
                %1172 = vst [vmem:[%s1170] sm:$0x3] %v1171
              $region288: #{custom-call.2} parent=282 // loop_footer
                %s1168 = sadd.s32 1, %s1164
              $region289: #{custom-call.2} parent=282 // loop_footer_branch
                %1163 = sbr.rel target = $region285
              $region290: #{custom-call.2} parent=282 // loop_exit
                _
            $region283: #{custom-call.2} parent=267 // pred_fallthru
              _
          $region268: #{custom-call.2} parent=263 // pred_fallthru
            _
          // Predicated region
          $region269: #{custom-call.2} parent=263 // pred_check
            _
          $region270: #{custom-call.2} parent=263 // pred_check_branch
            %1148 = sbr.rel (0) target = $region272
          $region271: #{custom-call.2} parent=263 // pred_region
            loop: start=0, step=1, limit=1
            $region273: #{custom-call.2} parent=271 // loop_pre_header
              _
            $region274: #{custom-call.2} parent=271 // loop_header
              %s1151 = sphi 0, %s1155
              %p1152 = scmp.ge.s32.totalorder %s1151, 1
              %s1156 = sphi %s1015, %s1015
              %s1157 = sphi %s1142, %s1142
            $region275: #{custom-call.2} parent=271 // loop_header_branch
              %1154 = sbr.rel (%p1152) target = $region279
            $region276: #{custom-call.2} parent=271 // loop_body
              %v1158 = vld [vmem:[%s1156] sm:$0x3]
              %1159 = vst [vmem:[%s1157] sm:$0x3] %v1158
            $region277: #{custom-call.2} parent=271 // loop_footer
              %s1155 = sadd.s32 1, %s1151
            $region278: #{custom-call.2} parent=271 // loop_footer_branch
              %1150 = sbr.rel target = $region274
            $region279: #{custom-call.2} parent=271 // loop_exit
              _
          $region272: #{custom-call.2} parent=263 // pred_fallthru
            _
        $region264: #{custom-call.2} parent=139 // pred_fallthru
          _
        %1173 = vnop
        %s1174 = smul.addr %s21, 64
        %s1175 = sadd.s32 %s22, %s1174
        %s1176 = smul.addr %s1175, 2
        %s1177 = scalar_lea.vmem %s8, %s1176
        // Predicated region
        $region291: #{custom-call.2} parent=139 // pred_check
          _
        $region292: #{custom-call.2} parent=139 // pred_check_branch
          %1179 = sbr.rel (0) target = $region294
        $region293: #{custom-call.2} parent=139 // pred_region
          // Predicated region
          $region295: #{custom-call.2} parent=293 // pred_check
            _
          $region296: #{custom-call.2} parent=293 // pred_check_branch
            %1181 = sbr.rel target = $region298
          $region297: #{custom-call.2} parent=293 // pred_region
            // Predicated region
            $region310: #{custom-call.2} parent=297 // pred_check
              _
            $region311: #{custom-call.2} parent=297 // pred_check_branch
              %1196 = sbr.rel (0) target = $region313
            $region312: #{custom-call.2} parent=297 // pred_region
              loop: start=0, step=1, limit=1
              $region314: #{custom-call.2} parent=312 // loop_pre_header
                _
              $region315: #{custom-call.2} parent=312 // loop_header
                %s1199 = sphi 0, %s1203
                %p1200 = scmp.ge.s32.totalorder %s1199, 1
                %s1204 = sphi %s1019, %s1019
                %s1205 = sphi %s1177, %s1177
              $region316: #{custom-call.2} parent=312 // loop_header_branch
                %1202 = sbr.rel (%p1200) target = $region320
              $region317: #{custom-call.2} parent=312 // loop_body
                %v1206 = vld [vmem:[%s1204] sm:$0x3]
                %1207 = vst [vmem:[%s1205] sm:$0x3] %v1206
              $region318: #{custom-call.2} parent=312 // loop_footer
                %s1203 = sadd.s32 1, %s1199
              $region319: #{custom-call.2} parent=312 // loop_footer_branch
                %1198 = sbr.rel target = $region315
              $region320: #{custom-call.2} parent=312 // loop_exit
                _
            $region313: #{custom-call.2} parent=297 // pred_fallthru
              _
          $region298: #{custom-call.2} parent=293 // pred_fallthru
            _
          // Predicated region
          $region299: #{custom-call.2} parent=293 // pred_check
            _
          $region300: #{custom-call.2} parent=293 // pred_check_branch
            %1183 = sbr.rel (0) target = $region302
          $region301: #{custom-call.2} parent=293 // pred_region
            loop: start=0, step=1, limit=1
            $region303: #{custom-call.2} parent=301 // loop_pre_header
              _
            $region304: #{custom-call.2} parent=301 // loop_header
              %s1186 = sphi 0, %s1190
              %p1187 = scmp.ge.s32.totalorder %s1186, 1
              %s1191 = sphi %s1019, %s1019
              %s1192 = sphi %s1177, %s1177
            $region305: #{custom-call.2} parent=301 // loop_header_branch
              %1189 = sbr.rel (%p1187) target = $region309
            $region306: #{custom-call.2} parent=301 // loop_body
              %v1193 = vld [vmem:[%s1191] sm:$0x3]
              %1194 = vst [vmem:[%s1192] sm:$0x3] %v1193
            $region307: #{custom-call.2} parent=301 // loop_footer
              %s1190 = sadd.s32 1, %s1186
            $region308: #{custom-call.2} parent=301 // loop_footer_branch
              %1185 = sbr.rel target = $region304
            $region309: #{custom-call.2} parent=301 // loop_exit
              _
          $region302: #{custom-call.2} parent=293 // pred_fallthru
            _
        $region294: #{custom-call.2} parent=139 // pred_fallthru
          _
        %1208 = vnop
        %s1209 = smul.addr %s21, 64
        %s1210 = sadd.s32 %s22, %s1209
        %s1211 = smul.addr %s1210, 2
        %s1212 = scalar_lea.vmem %s9, %s1211
        // Predicated region
        $region321: #{custom-call.2} parent=139 // pred_check
          _
        $region322: #{custom-call.2} parent=139 // pred_check_branch
          %1214 = sbr.rel (0) target = $region324
        $region323: #{custom-call.2} parent=139 // pred_region
          // Predicated region
          $region325: #{custom-call.2} parent=323 // pred_check
            _
          $region326: #{custom-call.2} parent=323 // pred_check_branch
            %1216 = sbr.rel target = $region328
          $region327: #{custom-call.2} parent=323 // pred_region
            // Predicated region
            $region340: #{custom-call.2} parent=327 // pred_check
              _
            $region341: #{custom-call.2} parent=327 // pred_check_branch
              %1231 = sbr.rel (0) target = $region343
            $region342: #{custom-call.2} parent=327 // pred_region
              loop: start=0, step=1, limit=1
              $region344: #{custom-call.2} parent=342 // loop_pre_header
                _
              $region345: #{custom-call.2} parent=342 // loop_header
                %s1234 = sphi 0, %s1238
                %p1235 = scmp.ge.s32.totalorder %s1234, 1
                %s1239 = sphi %s1023, %s1023
                %s1240 = sphi %s1212, %s1212
              $region346: #{custom-call.2} parent=342 // loop_header_branch
                %1237 = sbr.rel (%p1235) target = $region350
              $region347: #{custom-call.2} parent=342 // loop_body
                %v1241 = vld [vmem:[%s1239] sm:$0x3]
                %1242 = vst [vmem:[%s1240] sm:$0x3] %v1241
              $region348: #{custom-call.2} parent=342 // loop_footer
                %s1238 = sadd.s32 1, %s1234
              $region349: #{custom-call.2} parent=342 // loop_footer_branch
                %1233 = sbr.rel target = $region345
              $region350: #{custom-call.2} parent=342 // loop_exit
                _
            $region343: #{custom-call.2} parent=327 // pred_fallthru
              _
          $region328: #{custom-call.2} parent=323 // pred_fallthru
            _
          // Predicated region
          $region329: #{custom-call.2} parent=323 // pred_check
            _
          $region330: #{custom-call.2} parent=323 // pred_check_branch
            %1218 = sbr.rel (0) target = $region332
          $region331: #{custom-call.2} parent=323 // pred_region
            loop: start=0, step=1, limit=1
            $region333: #{custom-call.2} parent=331 // loop_pre_header
              _
            $region334: #{custom-call.2} parent=331 // loop_header
              %s1221 = sphi 0, %s1225
              %p1222 = scmp.ge.s32.totalorder %s1221, 1
              %s1226 = sphi %s1023, %s1023
              %s1227 = sphi %s1212, %s1212
            $region335: #{custom-call.2} parent=331 // loop_header_branch
              %1224 = sbr.rel (%p1222) target = $region339
            $region336: #{custom-call.2} parent=331 // loop_body
              %v1228 = vld [vmem:[%s1226] sm:$0x3]
              %1229 = vst [vmem:[%s1227] sm:$0x3] %v1228
            $region337: #{custom-call.2} parent=331 // loop_footer
              %s1225 = sadd.s32 1, %s1221
            $region338: #{custom-call.2} parent=331 // loop_footer_branch
              %1220 = sbr.rel target = $region334
            $region339: #{custom-call.2} parent=331 // loop_exit
              _
          $region332: #{custom-call.2} parent=323 // pred_fallthru
            _
        $region324: #{custom-call.2} parent=139 // pred_fallthru
          _
        %1243 = vnop
      $region140: #{custom-call.2} parent=5 // pred_fallthru
        _
      %p1244 = scmp.le.s32.totalorder 2, %s12
      // Predicated region
      $region351: #{custom-call.2} parent=5 // pred_check
        %p1245 = pneg %p1244
      $region352: #{custom-call.2} parent=5 // pred_check_branch
        %1247 = sbr.rel (%p1245) target = $region354
      $region353: #{custom-call.2} parent=5 // pred_region
        %s1248 = ssub.s32 %s12, 2
        // Predicated region
        $region355: #{custom-call.2} parent=353 // pred_check
          %p1249 = pneg %p57
        $region356: #{custom-call.2} parent=353 // pred_check_branch
          %1251 = sbr.rel (%p1249) target = $region358
        $region357: #{custom-call.2} parent=353 // pred_region
          %s1252 = sand.u32 %s42, 1
          %s1253 = sand.u32 %s42, 1
          %s1254 = smul.addr %s1253, 8
          %s1255 = scalar_lea.vmem [#allocation8], %s1254
        $region358: #{custom-call.2} parent=353 // pred_fallthru
          _
        // Predicated region
        $region359: #{custom-call.2} parent=353 // pred_check
          %p1256 = pneg %p87
        $region360: #{custom-call.2} parent=353 // pred_check_branch
          %1258 = sbr.rel (%p1256) target = $region362
        $region361: #{custom-call.2} parent=353 // pred_region
          %s1259 = sand.u32 %s72, 1
          %s1260 = sand.u32 %s72, 1
          %s1261 = smul.addr %s1260, 8
          %s1262 = scalar_lea.vmem [#allocation9], %s1261
        $region362: #{custom-call.2} parent=353 // pred_fallthru
          _
        %s1263 = sand.u32 %s18, 1
        %s1264 = sand.u32 %s18, 1
        %s1265 = smul.addr %s1264, 2
        %s1266 = scalar_lea.vmem [#allocation11], %s1265
        %s1267 = sand.u32 %s18, 1
        %s1268 = sand.u32 %s18, 1
        %s1269 = smul.addr %s1268, 2
        %s1270 = scalar_lea.vmem [#allocation13], %s1269
        %s1271 = sand.u32 %s18, 1
        %s1272 = sand.u32 %s18, 1
        %s1273 = smul.addr %s1272, 2
        %s1274 = scalar_lea.vmem [#allocation15], %s1273
        %s1275 = sand.u32 %s18, 1
        %s1276 = sand.u32 %s18, 1
        %s1277 = smul.addr %s1276, 2
        %s1278 = scalar_lea.vmem [#allocation17], %s1277
      $region354: #{custom-call.2} parent=5 // pred_fallthru
        _
    $region6: #{custom-call.2} parent=1 // loop_footer
      %s16 = sadd.s32 1, %s12
    $region7: #{custom-call.2} parent=1 // loop_footer_branch
      %11 = sbr.rel target = $region3
    $region8: #{custom-call.2} parent=1 // loop_exit
      _

// kernel: geometric_feature_extraction.4
$region0: #{geometric_feature_extraction.4}
  #allocation0 [shape = 'u32[]', space=smem, size = 0x4, offset = 0x4, fixed_abs, tag = 'smem constant byte address 0x4 - core index']
  #allocation1 [shape = 'u32[144,128]{1,0:T(1,128)}', space=vmem, size = 0x12000, scoped, tag = 'internal scratch']
  %s0 = inlined_call_operand.vmem [shape: f32[2,32,64], index: 0, kind: input, shape index: {}]
  %s1 = inlined_call_operand.vmem [shape: f32[2,3,64], index: 1, kind: input, shape index: {}]
  %s2 = inlined_call_operand.vmem [shape: bf16[32,32], index: 2, kind: input, shape index: {}]
  %s3 = inlined_call_operand.vmem [shape: bf16[32,3], index: 3, kind: input, shape index: {}]
  %s4 = inlined_call_operand.vmem [shape: f32[1,32,1], index: 4, kind: output, shape index: {0}]
  %s5 = inlined_call_operand.vmem [shape: f32[1,32,1], index: 5, kind: output, shape index: {1}]
  %6 = xla_tuple %s4, %s5
  %s7 = sld [smem:[#allocation0]]
  $region38: #{geometric_feature_extraction.4} parent=0
    _
  %s9 = ssub.s32 1, %s7
  %s10 = scalar_select 0, %s9, %s7
  // Predicated region
  $region2: #{geometric_feature_extraction.4} parent=0 // pred_check
    _
  $region3: #{geometric_feature_extraction.4} parent=0 // pred_check_branch
    %12 = sbr.rel (0) target = $region5
  $region4: #{geometric_feature_extraction.4} parent=0 // pred_region
    _
  $region5: #{geometric_feature_extraction.4} parent=0 // pred_fallthru
    _
  // Predicated region
  $region6: #{geometric_feature_extraction.4} parent=0 // pred_check
    _
  $region7: #{geometric_feature_extraction.4} parent=0 // pred_check_branch
    %14 = sbr.rel (0) target = $region9
  $region8: #{geometric_feature_extraction.4} parent=0 // pred_region
    _
  $region9: #{geometric_feature_extraction.4} parent=0 // pred_fallthru
    _
  // Predicated region
  $region10: #{geometric_feature_extraction.4} parent=0 // pred_check
    _
  $region11: #{geometric_feature_extraction.4} parent=0 // pred_check_branch
    %16 = sbr.rel (0) target = $region13
  $region12: #{geometric_feature_extraction.4} parent=0 // pred_region
    _
  $region13: #{geometric_feature_extraction.4} parent=0 // pred_fallthru
    _
  // Predicated region
  $region14: #{geometric_feature_extraction.4} parent=0 // pred_check
    _
  $region15: #{geometric_feature_extraction.4} parent=0 // pred_check_branch
    %18 = sbr.rel (0) target = $region17
  $region16: #{geometric_feature_extraction.4} parent=0 // pred_region
    _
  $region17: #{geometric_feature_extraction.4} parent=0 // pred_fallthru
    _
  %p20 = scmp.eq.s32.totalorder 0, 0
  // Predicated region
  $region18: #{geometric_feature_extraction.4} parent=0 // pred_check
    %p21 = pneg %p20
  $region19: #{geometric_feature_extraction.4} parent=0 // pred_check_branch
    %23 = sbr.rel (%p21) target = $region21
  $region20: #{geometric_feature_extraction.4} parent=0 // pred_region
    %vm24 = vcmask 7168
    %25 = vst.msk [vmem:[%s4] sm:$0xff] %vm24, 0.0
    %26 = vst.msk [vmem:[%s4 + $0x8] sm:$0xff] %vm24, 0.0
    %27 = vst.msk [vmem:[%s4 + $0x10] sm:$0xff] %vm24, 0.0
    %28 = vst.msk [vmem:[%s4 + $0x18] sm:$0xff] %vm24, 0.0
    %29 = vst.msk [vmem:[%s5] sm:$0xff] %vm24, 0.0
    %30 = vst.msk [vmem:[%s5 + $0x8] sm:$0xff] %vm24, 0.0
    %31 = vst.msk [vmem:[%s5 + $0x10] sm:$0xff] %vm24, 0.0
    %32 = vst.msk [vmem:[%s5 + $0x18] sm:$0xff] %vm24, 0.0
  $region21: #{geometric_feature_extraction.4} parent=0 // pred_fallthru
    _
  %v33 = vld [vmem:[%s2] sm:$0xf]
  %v34 = vld [vmem:[%s2 + $0x4] sm:$0xf]
  %v35 = vld [vmem:[%s2 + $0x8] sm:$0xf]
  %v36 = vld [vmem:[%s2 + $0xc] sm:$0xf]
  %v37 = vld [vmem:[%s0] sm:$0xff]
  %v38 = vld [vmem:[%s0 + $0x8] sm:$0xff]
  %v39 = vld [vmem:[%s0 + $0x10] sm:$0xff]
  %v40 = vld [vmem:[%s0 + $0x18] sm:$0xff]
  %v41 = vpack.c.bf16 %v38, %v37
  %v42 = vpack.c.bf16 %v40, %v39
  %v43 = vld [vmem:[%s3] sm:$0xf]
  %v44 = vld [vmem:[%s3 + $0x4] sm:$0xf]
  %v45 = vld [vmem:[%s3 + $0x8] sm:$0xf]
  %v46 = vld [vmem:[%s3 + $0xc] sm:$0xf]
  %v47 = vld [vmem:[%s1] sm:$0x7]
  %v48 = vpack.c.bf16 %v47, %v47
  %v53 = vunpack.c.l.b16 %v43
  %v54 = vunpack.c.l.b16 %v44
  %v55 = vunpack.c.l.b16 %v45
  %v56 = vunpack.c.l.b16 %v46
  %v57 = vpack.c.b16 %v54, %v53
  %v58 = vpack.c.b16 %v56, %v55
  %vm59 = vcmask 23552
  %v61 = vsel %vm59, %v57, 0
  %v64 = vsel %vm59, %v58, 0
  %vm66 = vcmask 1040384
  %vm67 = vcmask 1041408
  %v68 = vsel %vm66, 4294967295, 65535
  %v69 = vsel %vm67, %v68, 0
  %v71 = vand.u32 %v48, %v69
  %73 = vmatprep.subr.bf16.mxu0 0
  %74 = vmatpush1.bf16.msra.mxu0 %v71
  %75 = vmatprep.subr.bf16.mxu0 0
  %76 = vmatpush1.bf16.msra.mxu0 0
  %77 = vmatprep.subr.bf16.mxu0 0
  %78 = vmatpush1.bf16.msra.mxu0 0
  %79 = vmatprep.subr.bf16.mxu0 0
  %80 = vmatpush1.bf16.msra.mxu0 0
  %81 = vmatprep.subr.bf16.mxu0 0
  %82 = vmatpush1.bf16.msra.mxu0 0
  %83 = vmatprep.subr.bf16.mxu0 0
  %84 = vmatpush1.bf16.msra.mxu0 0
  %85 = vmatprep.subr.bf16.mxu0 0
  %86 = vmatpush1.bf16.msra.mxu0 0
  %87 = vmatprep.subr.bf16.mxu0 0
  %88 = vmatpush1.bf16.msra.mxu0 0
  %89 = vmatprep.subr.bf16.mxu0 0
  %90 = vmatpush1.bf16.msra.mxu0 0
  %91 = vmatprep.subr.bf16.mxu0 0
  %92 = vmatpush1.bf16.msra.mxu0 0
  %93 = vmatprep.subr.bf16.mxu0 0
  %94 = vmatpush1.bf16.msra.mxu0 0
  %95 = vmatprep.subr.bf16.mxu0 0
  %96 = vmatpush1.bf16.msra.mxu0 0
  %97 = vmatprep.subr.bf16.mxu0 0
  %98 = vmatpush1.bf16.msra.mxu0 0
  %99 = vmatprep.subr.bf16.mxu0 0
  %100 = vmatpush1.bf16.msra.mxu0 0
  %101 = vmatprep.subr.bf16.mxu0 0
  %102 = vmatpush1.bf16.msra.mxu0 0
  %103 = vmatprep.subr.bf16.mxu0 0
  %104 = vmatpush1.bf16.msra.mxu0 0
  %105 = vmatprep.mubr.bf16.mxu0 0
  %106 = vmatmul.mubr.bf16.gmra.mrb[0].mxu0 %v61
  %v107 = vpop.f32.mrb[0].mxu0
  %v108 = vadd.f32 0.0, %v107
  %v109 = vpop.f32.mrb[0].mxu0
  %v110 = vpop.f32.mrb[0].mxu0
  %v111 = vadd.f32 0.0, %v110
  %v112 = vpop.f32.mrb[0].mxu0
  %113 = vmatprep.mubr.bf16.mxu0 0
  %114 = vmatmul.mubr.bf16.gmra.mrb[0].mxu0 %v64
  %v115 = vpop.f32.mrb[0].mxu0
  %v116 = vadd.f32 0.0, %v115
  %v117 = vpop.f32.mrb[0].mxu0
  %v118 = vpop.f32.mrb[0].mxu0
  %v119 = vadd.f32 0.0, %v118
  %v120 = vpop.f32.mrb[0].mxu0
  %121 = vdwg.mxu0
  %v126 = vunpack.c.l.b16 %v33
  %v127 = vunpack.c.l.b16 %v34
  %v128 = vunpack.c.l.b16 %v35
  %v129 = vunpack.c.l.b16 %v36
  %v130 = vpack.c.b16 %v127, %v126
  %v131 = vpack.c.b16 %v129, %v128
  %vm132 = vcmask 261120
  %v134 = vsel %vm132, %v130, 0
  %v137 = vsel %vm132, %v131, 0
  %139 = vmatprep.subr.bf16.mxu0 0
  %140 = vmatpush1.bf16.msra.mxu0 %v41
  %141 = vmatprep.subr.bf16.mxu0 0
  %142 = vmatpush1.bf16.msra.mxu0 %v42
  %143 = vmatprep.subr.bf16.mxu0 0
  %144 = vmatpush1.bf16.msra.mxu0 0
  %145 = vmatprep.subr.bf16.mxu0 0
  %146 = vmatpush1.bf16.msra.mxu0 0
  %147 = vmatprep.subr.bf16.mxu0 0
  %148 = vmatpush1.bf16.msra.mxu0 0
  %149 = vmatprep.subr.bf16.mxu0 0
  %150 = vmatpush1.bf16.msra.mxu0 0
  %151 = vmatprep.subr.bf16.mxu0 0
  %152 = vmatpush1.bf16.msra.mxu0 0
  %153 = vmatprep.subr.bf16.mxu0 0
  %154 = vmatpush1.bf16.msra.mxu0 0
  %155 = vmatprep.subr.bf16.mxu0 0
  %156 = vmatpush1.bf16.msra.mxu0 0
  %157 = vmatprep.subr.bf16.mxu0 0
  %158 = vmatpush1.bf16.msra.mxu0 0
  %159 = vmatprep.subr.bf16.mxu0 0
  %160 = vmatpush1.bf16.msra.mxu0 0
  %161 = vmatprep.subr.bf16.mxu0 0
  %162 = vmatpush1.bf16.msra.mxu0 0
  %163 = vmatprep.subr.bf16.mxu0 0
  %164 = vmatpush1.bf16.msra.mxu0 0
  %165 = vmatprep.subr.bf16.mxu0 0
  %166 = vmatpush1.bf16.msra.mxu0 0
  %167 = vmatprep.subr.bf16.mxu0 0
  %168 = vmatpush1.bf16.msra.mxu0 0
  %169 = vmatprep.subr.bf16.mxu0 0
  %170 = vmatpush1.bf16.msra.mxu0 0
  %171 = vmatprep.mubr.bf16.mxu0 0
  %172 = vmatmul.mubr.bf16.gmra.mrb[0].mxu0 %v134
  %v173 = vpop.f32.mrb[0].mxu0
  %v174 = vadd.f32 %v108, %v173
  %v175 = vpop.f32.mrb[0].mxu0
  %v176 = vpop.f32.mrb[0].mxu0
  %v177 = vadd.f32 %v111, %v176
  %v178 = vpop.f32.mrb[0].mxu0
  %179 = vmatprep.mubr.bf16.mxu0 0
  %180 = vmatmul.mubr.bf16.gmra.mrb[0].mxu0 %v137
  %v181 = vpop.f32.mrb[0].mxu0
  %v182 = vadd.f32 %v116, %v181
  %v183 = vpop.f32.mrb[0].mxu0
  %v184 = vpop.f32.mrb[0].mxu0
  %v185 = vadd.f32 %v119, %v184
  %v186 = vpop.f32.mrb[0].mxu0
  %187 = vdwg.mxu0
  %vm188 = vcmask 523264
  %v189 = vsel %vm188, %v174, 0.0
  %190 = vadd.xlane.f32.xlu0 %v189
  %v191 = vpop.xlane.xlu0 %190
  %v192 = vsel %vm188, %v177, 0.0
  %193 = vadd.xlane.f32.xlu0 %v192
  %v194 = vpop.xlane.xlu0 %193
  %v195 = vsel %vm188, %v182, 0.0
  %196 = vadd.xlane.f32.xlu0 %v195
  %v197 = vpop.xlane.xlu0 %196
  %v198 = vsel %vm188, %v185, 0.0
  %199 = vadd.xlane.f32.xlu0 %v198
  %v200 = vpop.xlane.xlu0 %199
  %v201 = vadd.f32 %v191, 0.0
  %v202 = vadd.f32 %v194, 0.0
  %v203 = vadd.f32 %v197, 0.0
  %v204 = vadd.f32 %v200, 0.0
  %v205 = vmul.f32 %v174, %v174
  %v206 = vmul.f32 %v177, %v177
  %v207 = vmul.f32 %v182, %v182
  %v208 = vmul.f32 %v185, %v185
  %v209 = vsel %vm188, %v205, 0.0
  %210 = vadd.xlane.f32.xlu0 %v209
  %v211 = vpop.xlane.xlu0 %210
  %v212 = vsel %vm188, %v206, 0.0
  %213 = vadd.xlane.f32.xlu0 %v212
  %v214 = vpop.xlane.xlu0 %213
  %v215 = vsel %vm188, %v207, 0.0
  %216 = vadd.xlane.f32.xlu0 %v215
  %v217 = vpop.xlane.xlu0 %216
  %v218 = vsel %vm188, %v208, 0.0
  %219 = vadd.xlane.f32.xlu0 %v218
  %v220 = vpop.xlane.xlu0 %219
  %v221 = vadd.f32 %v211, 0.0
  %v222 = vadd.f32 %v214, 0.0
  %v223 = vadd.f32 %v217, 0.0
  %v224 = vadd.f32 %v220, 0.0
  %s225 = scalar_lea.vmem %s0, 32
  %v226 = vld [vmem:[%s225] sm:$0xff]
  %v227 = vld [vmem:[%s225 + $0x8] sm:$0xff]
  %v228 = vld [vmem:[%s225 + $0x10] sm:$0xff]
  %v229 = vld [vmem:[%s225 + $0x18] sm:$0xff]
  %v230 = vpack.c.bf16 %v227, %v226
  %v231 = vpack.c.bf16 %v229, %v228
  %s232 = scalar_lea.vmem %s1, 4
  %v233 = vld [vmem:[%s232] sm:$0x7]
  %v234 = vpack.c.bf16 %v233, %v233
  %v236 = vand.u32 %v234, %v69
  %238 = vmatprep.subr.bf16.mxu0 0
  %239 = vmatpush1.bf16.msra.mxu0 %v236
  %240 = vmatprep.subr.bf16.mxu0 0
  %241 = vmatpush1.bf16.msra.mxu0 0
  %242 = vmatprep.subr.bf16.mxu0 0
  %243 = vmatpush1.bf16.msra.mxu0 0
  %244 = vmatprep.subr.bf16.mxu0 0
  %245 = vmatpush1.bf16.msra.mxu0 0
  %246 = vmatprep.subr.bf16.mxu0 0
  %247 = vmatpush1.bf16.msra.mxu0 0
  %248 = vmatprep.subr.bf16.mxu0 0
  %249 = vmatpush1.bf16.msra.mxu0 0
  %250 = vmatprep.subr.bf16.mxu0 0
  %251 = vmatpush1.bf16.msra.mxu0 0
  %252 = vmatprep.subr.bf16.mxu0 0
  %253 = vmatpush1.bf16.msra.mxu0 0
  %254 = vmatprep.subr.bf16.mxu0 0
  %255 = vmatpush1.bf16.msra.mxu0 0
  %256 = vmatprep.subr.bf16.mxu0 0
  %257 = vmatpush1.bf16.msra.mxu0 0
  %258 = vmatprep.subr.bf16.mxu0 0
  %259 = vmatpush1.bf16.msra.mxu0 0
  %260 = vmatprep.subr.bf16.mxu0 0
  %261 = vmatpush1.bf16.msra.mxu0 0
  %262 = vmatprep.subr.bf16.mxu0 0
  %263 = vmatpush1.bf16.msra.mxu0 0
  %264 = vmatprep.subr.bf16.mxu0 0
  %265 = vmatpush1.bf16.msra.mxu0 0
  %266 = vmatprep.subr.bf16.mxu0 0
  %267 = vmatpush1.bf16.msra.mxu0 0
  %268 = vmatprep.subr.bf16.mxu0 0
  %269 = vmatpush1.bf16.msra.mxu0 0
  %270 = vmatprep.mubr.bf16.mxu0 0
  %271 = vmatmul.mubr.bf16.gmra.mrb[0].mxu0 %v61
  %v272 = vpop.f32.mrb[0].mxu0
  %v273 = vadd.f32 0.0, %v272
  %v274 = vpop.f32.mrb[0].mxu0
  %v275 = vpop.f32.mrb[0].mxu0
  %v276 = vadd.f32 0.0, %v275
  %v277 = vpop.f32.mrb[0].mxu0
  %278 = vmatprep.mubr.bf16.mxu0 0
  %279 = vmatmul.mubr.bf16.gmra.mrb[0].mxu0 %v64
  %v280 = vpop.f32.mrb[0].mxu0
  %v281 = vadd.f32 0.0, %v280
  %v282 = vpop.f32.mrb[0].mxu0
  %v283 = vpop.f32.mrb[0].mxu0
  %v284 = vadd.f32 0.0, %v283
  %v285 = vpop.f32.mrb[0].mxu0
  %286 = vdwg.mxu0
  %287 = vmatprep.subr.bf16.mxu0 0
  %288 = vmatpush1.bf16.msra.mxu0 %v230
  %289 = vmatprep.subr.bf16.mxu0 0
  %290 = vmatpush1.bf16.msra.mxu0 %v231
  %291 = vmatprep.subr.bf16.mxu0 0
  %292 = vmatpush1.bf16.msra.mxu0 0
  %293 = vmatprep.subr.bf16.mxu0 0
  %294 = vmatpush1.bf16.msra.mxu0 0
  %295 = vmatprep.subr.bf16.mxu0 0
  %296 = vmatpush1.bf16.msra.mxu0 0
  %297 = vmatprep.subr.bf16.mxu0 0
  %298 = vmatpush1.bf16.msra.mxu0 0
  %299 = vmatprep.subr.bf16.mxu0 0
  %300 = vmatpush1.bf16.msra.mxu0 0
  %301 = vmatprep.subr.bf16.mxu0 0
  %302 = vmatpush1.bf16.msra.mxu0 0
  %303 = vmatprep.subr.bf16.mxu0 0
  %304 = vmatpush1.bf16.msra.mxu0 0
  %305 = vmatprep.subr.bf16.mxu0 0
  %306 = vmatpush1.bf16.msra.mxu0 0
  %307 = vmatprep.subr.bf16.mxu0 0
  %308 = vmatpush1.bf16.msra.mxu0 0
  %309 = vmatprep.subr.bf16.mxu0 0
  %310 = vmatpush1.bf16.msra.mxu0 0
  %311 = vmatprep.subr.bf16.mxu0 0
  %312 = vmatpush1.bf16.msra.mxu0 0
  %313 = vmatprep.subr.bf16.mxu0 0
  %314 = vmatpush1.bf16.msra.mxu0 0
  %315 = vmatprep.subr.bf16.mxu0 0
  %316 = vmatpush1.bf16.msra.mxu0 0
  %317 = vmatprep.subr.bf16.mxu0 0
  %318 = vmatpush1.bf16.msra.mxu0 0
  %319 = vmatprep.mubr.bf16.mxu0 0
  %320 = vmatmul.mubr.bf16.gmra.mrb[0].mxu0 %v134
  %v321 = vpop.f32.mrb[0].mxu0
  %v322 = vadd.f32 %v273, %v321
  %v323 = vpop.f32.mrb[0].mxu0
  %v324 = vpop.f32.mrb[0].mxu0
  %v325 = vadd.f32 %v276, %v324
  %v326 = vpop.f32.mrb[0].mxu0
  %327 = vmatprep.mubr.bf16.mxu0 0
  %328 = vmatmul.mubr.bf16.gmra.mrb[0].mxu0 %v137
  %v329 = vpop.f32.mrb[0].mxu0
  %v330 = vadd.f32 %v281, %v329
  %v331 = vpop.f32.mrb[0].mxu0
  %v332 = vpop.f32.mrb[0].mxu0
  %v333 = vadd.f32 %v284, %v332
  %v334 = vpop.f32.mrb[0].mxu0
  %335 = vdwg.mxu0
  %v336 = vsel %vm188, %v322, 0.0
  %337 = vadd.xlane.f32.xlu0 %v336
  %v338 = vpop.xlane.xlu0 %337
  %v339 = vsel %vm188, %v325, 0.0
  %340 = vadd.xlane.f32.xlu0 %v339
  %v341 = vpop.xlane.xlu0 %340
  %v342 = vsel %vm188, %v330, 0.0
  %343 = vadd.xlane.f32.xlu0 %v342
  %v344 = vpop.xlane.xlu0 %343
  %v345 = vsel %vm188, %v333, 0.0
  %346 = vadd.xlane.f32.xlu0 %v345
  %v347 = vpop.xlane.xlu0 %346
  %v348 = vadd.f32 %v201, %v338
  %v349 = vadd.f32 %v202, %v341
  %v350 = vadd.f32 %v203, %v344
  %v351 = vadd.f32 %v204, %v347
  %v352 = vmul.f32 %v322, %v322
  %v353 = vmul.f32 %v325, %v325
  %v354 = vmul.f32 %v330, %v330
  %v355 = vmul.f32 %v333, %v333
  %v356 = vsel %vm188, %v352, 0.0
  %357 = vadd.xlane.f32.xlu0 %v356
  %v358 = vpop.xlane.xlu0 %357
  %v359 = vsel %vm188, %v353, 0.0
  %360 = vadd.xlane.f32.xlu0 %v359
  %v361 = vpop.xlane.xlu0 %360
  %v362 = vsel %vm188, %v354, 0.0
  %363 = vadd.xlane.f32.xlu0 %v362
  %v364 = vpop.xlane.xlu0 %363
  %v365 = vsel %vm188, %v355, 0.0
  %366 = vadd.xlane.f32.xlu0 %v365
  %v367 = vpop.xlane.xlu0 %366
  %v368 = vadd.f32 %v221, %v358
  %v369 = vadd.f32 %v222, %v361
  %v370 = vadd.f32 %v223, %v364
  %v371 = vadd.f32 %v224, %v367
  %v372 = vld [vmem:[%s4] sm:$0xff]
  %v373 = vld [vmem:[%s4 + $0x8] sm:$0xff]
  %v374 = vld [vmem:[%s4 + $0x10] sm:$0xff]
  %v375 = vld [vmem:[%s4 + $0x18] sm:$0xff]
  %v376 = vadd.f32 %v372, %v348
  %v377 = vadd.f32 %v373, %v349
  %v378 = vadd.f32 %v374, %v350
  %v379 = vadd.f32 %v375, %v351
  %vm380 = vcmask 7168
  %381 = vst.msk [vmem:[%s4] sm:$0xff] %vm380, %v376
  %382 = vst.msk [vmem:[%s4 + $0x8] sm:$0xff] %vm380, %v377
  %383 = vst.msk [vmem:[%s4 + $0x10] sm:$0xff] %vm380, %v378
  %384 = vst.msk [vmem:[%s4 + $0x18] sm:$0xff] %vm380, %v379
  %v385 = vld [vmem:[%s5] sm:$0xff]
  %v386 = vld [vmem:[%s5 + $0x8] sm:$0xff]
  %v387 = vld [vmem:[%s5 + $0x10] sm:$0xff]
  %v388 = vld [vmem:[%s5 + $0x18] sm:$0xff]
  %v389 = vadd.f32 %v385, %v368
  %v390 = vadd.f32 %v386, %v369
  %v391 = vadd.f32 %v387, %v370
  %v392 = vadd.f32 %v388, %v371
  %393 = vst.msk [vmem:[%s5] sm:$0xff] %vm380, %v389
  %394 = vst.msk [vmem:[%s5 + $0x8] sm:$0xff] %vm380, %v390
  %395 = vst.msk [vmem:[%s5 + $0x10] sm:$0xff] %vm380, %v391
  %396 = vst.msk [vmem:[%s5 + $0x18] sm:$0xff] %vm380, %v392
  // Predicated region
  $region22: #{geometric_feature_extraction.4} parent=0 // pred_check
    _
  $region23: #{geometric_feature_extraction.4} parent=0 // pred_check_branch
    %398 = sbr.rel (0) target = $region25
  $region24: #{geometric_feature_extraction.4} parent=0 // pred_region
    _
  $region25: #{geometric_feature_extraction.4} parent=0 // pred_fallthru
    _
  // Predicated region
  $region26: #{geometric_feature_extraction.4} parent=0 // pred_check
    _
  $region27: #{geometric_feature_extraction.4} parent=0 // pred_check_branch
    %400 = sbr.rel (0) target = $region29
  $region28: #{geometric_feature_extraction.4} parent=0 // pred_region
    _
  $region29: #{geometric_feature_extraction.4} parent=0 // pred_fallthru
    _
  // Predicated region
  $region30: #{geometric_feature_extraction.4} parent=0 // pred_check
    _
  $region31: #{geometric_feature_extraction.4} parent=0 // pred_check_branch
    %402 = sbr.rel (0) target = $region33
  $region32: #{geometric_feature_extraction.4} parent=0 // pred_region
    _
  $region33: #{geometric_feature_extraction.4} parent=0 // pred_fallthru
    _
  // Predicated region
  $region34: #{geometric_feature_extraction.4} parent=0 // pred_check
    _
  $region35: #{geometric_feature_extraction.4} parent=0 // pred_check_branch
    %404 = sbr.rel (0) target = $region37
  $region36: #{geometric_feature_extraction.4} parent=0 // pred_region
    _
  $region37: #{geometric_feature_extraction.4} parent=0 // pred_fallthru
    _

// kernel: geometric_feature_extraction.5
$region0: #{geometric_feature_extraction.5}
  #allocation0 [shape = 'u32[]', space=smem, size = 0x4, offset = 0x4, fixed_abs, tag = 'smem constant byte address 0x4 - core index']
  #allocation1 [shape = 'u32[144,128]{1,0:T(1,128)}', space=vmem, size = 0x12000, scoped, tag = 'internal scratch']
  %s0 = inlined_call_operand.vmem [shape: f32[2,32,64], index: 0, kind: input, shape index: {}]
  %s1 = inlined_call_operand.vmem [shape: f32[2,3,64], index: 1, kind: input, shape index: {}]
  %s2 = inlined_call_operand.vmem [shape: bf16[32,32], index: 2, kind: input, shape index: {}]
  %s3 = inlined_call_operand.vmem [shape: bf16[32,3], index: 3, kind: input, shape index: {}]
  %s4 = inlined_call_operand.vmem [shape: f32[32,1], index: 4, kind: input, shape index: {}]
  %s5 = inlined_call_operand.vmem [shape: bf16[32,32], index: 5, kind: input, shape index: {}]
  %s6 = inlined_call_operand.vmem [shape: f32[32,1], index: 6, kind: input, shape index: {}]
  %s7 = inlined_call_operand.hbm [shape: f32[2,32,64], index: 7, kind: output, shape index: {}]
  %s8 = sld [smem:[#allocation0]]
  $region38: #{geometric_feature_extraction.5} parent=0
    _
  %s10 = ssub.s32 1, %s8
  %s11 = scalar_select 0, %s10, %s8
  $region1: #{geometric_feature_extraction.5} parent=0
    #allocation2 [shape = 'u8[32768]{0}', space=vmem, size = 0x8000, scoped, tag = 'output window, operand 0, single buffered']
    #allocation3 [shape = 's32[1]{0}', space=sflag, size = 0x4, scoped, tag = 'scoped memory for geometric_feature_extraction.5']
    %12 = vsyncpa [#allocation3], 0
    // Predicated region
    $region2: #{geometric_feature_extraction.5} parent=1 // pred_check
      _
    $region3: #{geometric_feature_extraction.5} parent=1 // pred_check_branch
      %14 = sbr.rel (0) target = $region5
    $region4: #{geometric_feature_extraction.5} parent=1 // pred_region
      _
    $region5: #{geometric_feature_extraction.5} parent=1 // pred_fallthru
      _
    // Predicated region
    $region6: #{geometric_feature_extraction.5} parent=1 // pred_check
      _
    $region7: #{geometric_feature_extraction.5} parent=1 // pred_check_branch
      %16 = sbr.rel (0) target = $region9
    $region8: #{geometric_feature_extraction.5} parent=1 // pred_region
      _
    $region9: #{geometric_feature_extraction.5} parent=1 // pred_fallthru
      _
    // Predicated region
    $region10: #{geometric_feature_extraction.5} parent=1 // pred_check
      _
    $region11: #{geometric_feature_extraction.5} parent=1 // pred_check_branch
      %18 = sbr.rel (0) target = $region13
    $region12: #{geometric_feature_extraction.5} parent=1 // pred_region
      _
    $region13: #{geometric_feature_extraction.5} parent=1 // pred_fallthru
      _
    // Predicated region
    $region14: #{geometric_feature_extraction.5} parent=1 // pred_check
      _
    $region15: #{geometric_feature_extraction.5} parent=1 // pred_check_branch
      %20 = sbr.rel (0) target = $region17
    $region16: #{geometric_feature_extraction.5} parent=1 // pred_region
      _
    $region17: #{geometric_feature_extraction.5} parent=1 // pred_fallthru
      _
    // Predicated region
    $region18: #{geometric_feature_extraction.5} parent=1 // pred_check
      _
    $region19: #{geometric_feature_extraction.5} parent=1 // pred_check_branch
      %22 = sbr.rel (0) target = $region21
    $region20: #{geometric_feature_extraction.5} parent=1 // pred_region
      _
    $region21: #{geometric_feature_extraction.5} parent=1 // pred_fallthru
      _
    // Predicated region
    $region22: #{geometric_feature_extraction.5} parent=1 // pred_check
      _
    $region23: #{geometric_feature_extraction.5} parent=1 // pred_check_branch
      %24 = sbr.rel (0) target = $region25
    $region24: #{geometric_feature_extraction.5} parent=1 // pred_region
      _
    $region25: #{geometric_feature_extraction.5} parent=1 // pred_fallthru
      _
    // Predicated region
    $region26: #{geometric_feature_extraction.5} parent=1 // pred_check
      _
    $region27: #{geometric_feature_extraction.5} parent=1 // pred_check_branch
      %26 = sbr.rel (0) target = $region29
    $region28: #{geometric_feature_extraction.5} parent=1 // pred_region
      _
    $region29: #{geometric_feature_extraction.5} parent=1 // pred_fallthru
      _
    %v28 = vld [vmem:[%s2] sm:$0xf]
    %v29 = vld [vmem:[%s2 + $0x4] sm:$0xf]
    %v30 = vld [vmem:[%s2 + $0x8] sm:$0xf]
    %v31 = vld [vmem:[%s2 + $0xc] sm:$0xf]
    %v32 = vld [vmem:[%s0] sm:$0xff]
    %v33 = vld [vmem:[%s0 + $0x8] sm:$0xff]
    %v34 = vld [vmem:[%s0 + $0x10] sm:$0xff]
    %v35 = vld [vmem:[%s0 + $0x18] sm:$0xff]
    %v36 = vpack.c.bf16 %v33, %v32
    %v37 = vpack.c.bf16 %v35, %v34
    %v38 = vld [vmem:[%s3] sm:$0xf]
    %v39 = vld [vmem:[%s3 + $0x4] sm:$0xf]
    %v40 = vld [vmem:[%s3 + $0x8] sm:$0xf]
    %v41 = vld [vmem:[%s3 + $0xc] sm:$0xf]
    %v42 = vld [vmem:[%s1] sm:$0x7]
    %v43 = vpack.c.bf16 %v42, %v42
    %v48 = vunpack.c.l.b16 %v38
    %v49 = vunpack.c.l.b16 %v39
    %v50 = vunpack.c.l.b16 %v40
    %v51 = vunpack.c.l.b16 %v41
    %v52 = vpack.c.b16 %v49, %v48
    %v53 = vpack.c.b16 %v51, %v50
    %vm54 = vcmask 23552
    %v56 = vsel %vm54, %v52, 0
    %v59 = vsel %vm54, %v53, 0
    %vm61 = vcmask 1040384
    %vm62 = vcmask 1041408
    %v63 = vsel %vm61, 4294967295, 65535
    %v64 = vsel %vm62, %v63, 0
    %v66 = vand.u32 %v43, %v64
    %68 = vmatprep.subr.bf16.mxu0 0
    %69 = vmatpush1.bf16.msra.mxu0 %v66
    %70 = vmatprep.subr.bf16.mxu0 0
    %71 = vmatpush1.bf16.msra.mxu0 0
    %72 = vmatprep.subr.bf16.mxu0 0
    %73 = vmatpush1.bf16.msra.mxu0 0
    %74 = vmatprep.subr.bf16.mxu0 0
    %75 = vmatpush1.bf16.msra.mxu0 0
    %76 = vmatprep.subr.bf16.mxu0 0
    %77 = vmatpush1.bf16.msra.mxu0 0
    %78 = vmatprep.subr.bf16.mxu0 0
    %79 = vmatpush1.bf16.msra.mxu0 0
    %80 = vmatprep.subr.bf16.mxu0 0
    %81 = vmatpush1.bf16.msra.mxu0 0
    %82 = vmatprep.subr.bf16.mxu0 0
    %83 = vmatpush1.bf16.msra.mxu0 0
    %84 = vmatprep.subr.bf16.mxu0 0
    %85 = vmatpush1.bf16.msra.mxu0 0
    %86 = vmatprep.subr.bf16.mxu0 0
    %87 = vmatpush1.bf16.msra.mxu0 0
    %88 = vmatprep.subr.bf16.mxu0 0
    %89 = vmatpush1.bf16.msra.mxu0 0
    %90 = vmatprep.subr.bf16.mxu0 0
    %91 = vmatpush1.bf16.msra.mxu0 0
    %92 = vmatprep.subr.bf16.mxu0 0
    %93 = vmatpush1.bf16.msra.mxu0 0
    %94 = vmatprep.subr.bf16.mxu0 0
    %95 = vmatpush1.bf16.msra.mxu0 0
    %96 = vmatprep.subr.bf16.mxu0 0
    %97 = vmatpush1.bf16.msra.mxu0 0
    %98 = vmatprep.subr.bf16.mxu0 0
    %99 = vmatpush1.bf16.msra.mxu0 0
    %100 = vmatprep.mubr.bf16.mxu0 0
    %101 = vmatmul.mubr.bf16.gmra.mrb[0].mxu0 %v56
    %v102 = vpop.f32.mrb[0].mxu0
    %v103 = vadd.f32 0.0, %v102
    %v104 = vpop.f32.mrb[0].mxu0
    %v105 = vpop.f32.mrb[0].mxu0
    %v106 = vadd.f32 0.0, %v105
    %v107 = vpop.f32.mrb[0].mxu0
    %108 = vmatprep.mubr.bf16.mxu0 0
    %109 = vmatmul.mubr.bf16.gmra.mrb[0].mxu0 %v59
    %v110 = vpop.f32.mrb[0].mxu0
    %v111 = vadd.f32 0.0, %v110
    %v112 = vpop.f32.mrb[0].mxu0
    %v113 = vpop.f32.mrb[0].mxu0
    %v114 = vadd.f32 0.0, %v113
    %v115 = vpop.f32.mrb[0].mxu0
    %116 = vdwg.mxu0
    %v121 = vunpack.c.l.b16 %v28
    %v122 = vunpack.c.l.b16 %v29
    %v123 = vunpack.c.l.b16 %v30
    %v124 = vunpack.c.l.b16 %v31
    %v125 = vpack.c.b16 %v122, %v121
    %v126 = vpack.c.b16 %v124, %v123
    %vm127 = vcmask 261120
    %v129 = vsel %vm127, %v125, 0
    %v132 = vsel %vm127, %v126, 0
    %134 = vmatprep.subr.bf16.mxu0 0
    %135 = vmatpush1.bf16.msra.mxu0 %v36
    %136 = vmatprep.subr.bf16.mxu0 0
    %137 = vmatpush1.bf16.msra.mxu0 %v37
    %138 = vmatprep.subr.bf16.mxu0 0
    %139 = vmatpush1.bf16.msra.mxu0 0
    %140 = vmatprep.subr.bf16.mxu0 0
    %141 = vmatpush1.bf16.msra.mxu0 0
    %142 = vmatprep.subr.bf16.mxu0 0
    %143 = vmatpush1.bf16.msra.mxu0 0
    %144 = vmatprep.subr.bf16.mxu0 0
    %145 = vmatpush1.bf16.msra.mxu0 0
    %146 = vmatprep.subr.bf16.mxu0 0
    %147 = vmatpush1.bf16.msra.mxu0 0
    %148 = vmatprep.subr.bf16.mxu0 0
    %149 = vmatpush1.bf16.msra.mxu0 0
    %150 = vmatprep.subr.bf16.mxu0 0
    %151 = vmatpush1.bf16.msra.mxu0 0
    %152 = vmatprep.subr.bf16.mxu0 0
    %153 = vmatpush1.bf16.msra.mxu0 0
    %154 = vmatprep.subr.bf16.mxu0 0
    %155 = vmatpush1.bf16.msra.mxu0 0
    %156 = vmatprep.subr.bf16.mxu0 0
    %157 = vmatpush1.bf16.msra.mxu0 0
    %158 = vmatprep.subr.bf16.mxu0 0
    %159 = vmatpush1.bf16.msra.mxu0 0
    %160 = vmatprep.subr.bf16.mxu0 0
    %161 = vmatpush1.bf16.msra.mxu0 0
    %162 = vmatprep.subr.bf16.mxu0 0
    %163 = vmatpush1.bf16.msra.mxu0 0
    %164 = vmatprep.subr.bf16.mxu0 0
    %165 = vmatpush1.bf16.msra.mxu0 0
    %166 = vmatprep.mubr.bf16.mxu0 0
    %167 = vmatmul.mubr.bf16.gmra.mrb[0].mxu0 %v129
    %v168 = vpop.f32.mrb[0].mxu0
    %v169 = vadd.f32 %v103, %v168
    %v170 = vpop.f32.mrb[0].mxu0
    %v171 = vpop.f32.mrb[0].mxu0
    %v172 = vadd.f32 %v106, %v171
    %v173 = vpop.f32.mrb[0].mxu0
    %174 = vmatprep.mubr.bf16.mxu0 0
    %175 = vmatmul.mubr.bf16.gmra.mrb[0].mxu0 %v132
    %v176 = vpop.f32.mrb[0].mxu0
    %v177 = vadd.f32 %v111, %v176
    %v178 = vpop.f32.mrb[0].mxu0
    %v179 = vpop.f32.mrb[0].mxu0
    %v180 = vadd.f32 %v114, %v179
    %v181 = vpop.f32.mrb[0].mxu0
    %182 = vdwg.mxu0
    %v183 = vld [vmem:[%s4] sm:$0xff]
    %v184 = vld [vmem:[%s4 + $0x8] sm:$0xff]
    %v185 = vld [vmem:[%s4 + $0x10] sm:$0xff]
    %v186 = vld [vmem:[%s4 + $0x18] sm:$0xff]
    %188 = vset.pattern.permute.xlu0 0
    %189 = vperm.xlu0 %188, %v183
    %v190 = vpop.permute.xlu0 %189
    %193 = vset.pattern.permute.xlu0 0
    %194 = vperm.xlu0 %193, %v184
    %v195 = vpop.permute.xlu0 %194
    %198 = vset.pattern.permute.xlu0 0
    %199 = vperm.xlu0 %198, %v185
    %v200 = vpop.permute.xlu0 %199
    %203 = vset.pattern.permute.xlu0 0
    %204 = vperm.xlu0 %203, %v186
    %v205 = vpop.permute.xlu0 %204
    %v207 = vadd.f32 %v169, %v190
    %v208 = vadd.f32 %v172, %v195
    %v209 = vadd.f32 %v177, %v200
    %v210 = vadd.f32 %v180, %v205
    %v211 = vmax.f32 %v207, 0.0
    %v212 = vmax.f32 %v208, 0.0
    %v213 = vmax.f32 %v209, 0.0
    %v214 = vmax.f32 %v210, 0.0
    %v215 = vld [vmem:[%s5] sm:$0xf]
    %v216 = vld [vmem:[%s5 + $0x4] sm:$0xf]
    %v217 = vld [vmem:[%s5 + $0x8] sm:$0xf]
    %v218 = vld [vmem:[%s5 + $0xc] sm:$0xf]
    %v219 = vpack.c.bf16 %v212, %v211
    %v220 = vpack.c.bf16 %v214, %v213
    %v221 = vld [vmem:[%s6] sm:$0xff]
    %v222 = vld [vmem:[%s6 + $0x8] sm:$0xff]
    %v223 = vld [vmem:[%s6 + $0x10] sm:$0xff]
    %v224 = vld [vmem:[%s6 + $0x18] sm:$0xff]
    %226 = vset.pattern.permute.xlu0 0
    %227 = vperm.xlu0 %226, %v221
    %v228 = vpop.permute.xlu0 %227
    %231 = vset.pattern.permute.xlu0 0
    %232 = vperm.xlu0 %231, %v222
    %v233 = vpop.permute.xlu0 %232
    %236 = vset.pattern.permute.xlu0 0
    %237 = vperm.xlu0 %236, %v223
    %v238 = vpop.permute.xlu0 %237
    %241 = vset.pattern.permute.xlu0 0
    %242 = vperm.xlu0 %241, %v224
    %v243 = vpop.permute.xlu0 %242
    %v249 = vunpack.c.l.b16 %v215
    %v250 = vunpack.c.l.b16 %v216
    %v251 = vunpack.c.l.b16 %v217
    %v252 = vunpack.c.l.b16 %v218
    %v253 = vpack.c.b16 %v250, %v249
    %v254 = vpack.c.b16 %v252, %v251
    %v256 = vsel %vm127, %v253, 0
    %v259 = vsel %vm127, %v254, 0
    %261 = vmatprep.subr.bf16.mxu0 0
    %262 = vmatpush1.bf16.msra.mxu0 %v219
    %263 = vmatprep.subr.bf16.mxu0 0
    %264 = vmatpush1.bf16.msra.mxu0 %v220
    %265 = vmatprep.subr.bf16.mxu0 0
    %266 = vmatpush1.bf16.msra.mxu0 0
    %267 = vmatprep.subr.bf16.mxu0 0
    %268 = vmatpush1.bf16.msra.mxu0 0
    %269 = vmatprep.subr.bf16.mxu0 0
    %270 = vmatpush1.bf16.msra.mxu0 0
    %271 = vmatprep.subr.bf16.mxu0 0
    %272 = vmatpush1.bf16.msra.mxu0 0
    %273 = vmatprep.subr.bf16.mxu0 0
    %274 = vmatpush1.bf16.msra.mxu0 0
    %275 = vmatprep.subr.bf16.mxu0 0
    %276 = vmatpush1.bf16.msra.mxu0 0
    %277 = vmatprep.subr.bf16.mxu0 0
    %278 = vmatpush1.bf16.msra.mxu0 0
    %279 = vmatprep.subr.bf16.mxu0 0
    %280 = vmatpush1.bf16.msra.mxu0 0
    %281 = vmatprep.subr.bf16.mxu0 0
    %282 = vmatpush1.bf16.msra.mxu0 0
    %283 = vmatprep.subr.bf16.mxu0 0
    %284 = vmatpush1.bf16.msra.mxu0 0
    %285 = vmatprep.subr.bf16.mxu0 0
    %286 = vmatpush1.bf16.msra.mxu0 0
    %287 = vmatprep.subr.bf16.mxu0 0
    %288 = vmatpush1.bf16.msra.mxu0 0
    %289 = vmatprep.subr.bf16.mxu0 0
    %290 = vmatpush1.bf16.msra.mxu0 0
    %291 = vmatprep.subr.bf16.mxu0 0
    %292 = vmatpush1.bf16.msra.mxu0 0
    %293 = vmatprep.mubr.bf16.mxu0 0
    %294 = vmatmul.mubr.bf16.gmra.mrb[0].mxu0 %v256
    %v295 = vpop.f32.mrb[0].mxu0
    %v296 = vadd.f32 %v228, %v295
    %v297 = vpop.f32.mrb[0].mxu0
    %v298 = vpop.f32.mrb[0].mxu0
    %v299 = vadd.f32 %v233, %v298
    %v300 = vpop.f32.mrb[0].mxu0
    %301 = vmatprep.mubr.bf16.mxu0 0
    %302 = vmatmul.mubr.bf16.gmra.mrb[0].mxu0 %v259
    %v303 = vpop.f32.mrb[0].mxu0
    %v304 = vadd.f32 %v238, %v303
    %v305 = vpop.f32.mrb[0].mxu0
    %v306 = vpop.f32.mrb[0].mxu0
    %v307 = vadd.f32 %v243, %v306
    %v308 = vpop.f32.mrb[0].mxu0
    %309 = vdwg.mxu0
    %vm310 = vcmask 523264
    %311 = vst.msk [vmem:[#allocation2] sm:$0xff] %vm310, %v296
    %312 = vst.msk [vmem:[#allocation2 + $0x8] sm:$0xff] %vm310, %v299
    %313 = vst.msk [vmem:[#allocation2 + $0x10] sm:$0xff] %vm310, %v304
    %314 = vst.msk [vmem:[#allocation2 + $0x18] sm:$0xff] %vm310, %v307
    %v315 = vld [vmem:[%s2] sm:$0xf]
    %v316 = vld [vmem:[%s2 + $0x4] sm:$0xf]
    %v317 = vld [vmem:[%s2 + $0x8] sm:$0xf]
    %v318 = vld [vmem:[%s2 + $0xc] sm:$0xf]
    %s319 = scalar_lea.vmem %s0, 32
    %v320 = vld [vmem:[%s319] sm:$0xff]
    %v321 = vld [vmem:[%s319 + $0x8] sm:$0xff]
    %v322 = vld [vmem:[%s319 + $0x10] sm:$0xff]
    %v323 = vld [vmem:[%s319 + $0x18] sm:$0xff]
    %v324 = vpack.c.bf16 %v321, %v320
    %v325 = vpack.c.bf16 %v323, %v322
    %v326 = vld [vmem:[%s3] sm:$0xf]
    %v327 = vld [vmem:[%s3 + $0x4] sm:$0xf]
    %v328 = vld [vmem:[%s3 + $0x8] sm:$0xf]
    %v329 = vld [vmem:[%s3 + $0xc] sm:$0xf]
    %s330 = scalar_lea.vmem %s1, 4
    %v331 = vld [vmem:[%s330] sm:$0x7]
    %v332 = vpack.c.bf16 %v331, %v331
    %v337 = vunpack.c.l.b16 %v326
    %v338 = vunpack.c.l.b16 %v327
    %v339 = vunpack.c.l.b16 %v328
    %v340 = vunpack.c.l.b16 %v329
    %v341 = vpack.c.b16 %v338, %v337
    %v342 = vpack.c.b16 %v340, %v339
    %v344 = vsel %vm54, %v341, 0
    %v347 = vsel %vm54, %v342, 0
    %v350 = vand.u32 %v332, %v64
    %352 = vmatprep.subr.bf16.mxu0 0
    %353 = vmatpush1.bf16.msra.mxu0 %v350
    %354 = vmatprep.subr.bf16.mxu0 0
    %355 = vmatpush1.bf16.msra.mxu0 0
    %356 = vmatprep.subr.bf16.mxu0 0
    %357 = vmatpush1.bf16.msra.mxu0 0
    %358 = vmatprep.subr.bf16.mxu0 0
    %359 = vmatpush1.bf16.msra.mxu0 0
    %360 = vmatprep.subr.bf16.mxu0 0
    %361 = vmatpush1.bf16.msra.mxu0 0
    %362 = vmatprep.subr.bf16.mxu0 0
    %363 = vmatpush1.bf16.msra.mxu0 0
    %364 = vmatprep.subr.bf16.mxu0 0
    %365 = vmatpush1.bf16.msra.mxu0 0
    %366 = vmatprep.subr.bf16.mxu0 0
    %367 = vmatpush1.bf16.msra.mxu0 0
    %368 = vmatprep.subr.bf16.mxu0 0
    %369 = vmatpush1.bf16.msra.mxu0 0
    %370 = vmatprep.subr.bf16.mxu0 0
    %371 = vmatpush1.bf16.msra.mxu0 0
    %372 = vmatprep.subr.bf16.mxu0 0
    %373 = vmatpush1.bf16.msra.mxu0 0
    %374 = vmatprep.subr.bf16.mxu0 0
    %375 = vmatpush1.bf16.msra.mxu0 0
    %376 = vmatprep.subr.bf16.mxu0 0
    %377 = vmatpush1.bf16.msra.mxu0 0
    %378 = vmatprep.subr.bf16.mxu0 0
    %379 = vmatpush1.bf16.msra.mxu0 0
    %380 = vmatprep.subr.bf16.mxu0 0
    %381 = vmatpush1.bf16.msra.mxu0 0
    %382 = vmatprep.subr.bf16.mxu0 0
    %383 = vmatpush1.bf16.msra.mxu0 0
    %384 = vmatprep.mubr.bf16.mxu0 0
    %385 = vmatmul.mubr.bf16.gmra.mrb[0].mxu0 %v344
    %v386 = vpop.f32.mrb[0].mxu0
    %v387 = vadd.f32 0.0, %v386
    %v388 = vpop.f32.mrb[0].mxu0
    %v389 = vpop.f32.mrb[0].mxu0
    %v390 = vadd.f32 0.0, %v389
    %v391 = vpop.f32.mrb[0].mxu0
    %392 = vmatprep.mubr.bf16.mxu0 0
    %393 = vmatmul.mubr.bf16.gmra.mrb[0].mxu0 %v347
    %v394 = vpop.f32.mrb[0].mxu0
    %v395 = vadd.f32 0.0, %v394
    %v396 = vpop.f32.mrb[0].mxu0
    %v397 = vpop.f32.mrb[0].mxu0
    %v398 = vadd.f32 0.0, %v397
    %v399 = vpop.f32.mrb[0].mxu0
    %400 = vdwg.mxu0
    %v405 = vunpack.c.l.b16 %v315
    %v406 = vunpack.c.l.b16 %v316
    %v407 = vunpack.c.l.b16 %v317
    %v408 = vunpack.c.l.b16 %v318
    %v409 = vpack.c.b16 %v406, %v405
    %v410 = vpack.c.b16 %v408, %v407
    %v412 = vsel %vm127, %v409, 0
    %v415 = vsel %vm127, %v410, 0
    %417 = vmatprep.subr.bf16.mxu0 0
    %418 = vmatpush1.bf16.msra.mxu0 %v324
    %419 = vmatprep.subr.bf16.mxu0 0
    %420 = vmatpush1.bf16.msra.mxu0 %v325
    %421 = vmatprep.subr.bf16.mxu0 0
    %422 = vmatpush1.bf16.msra.mxu0 0
    %423 = vmatprep.subr.bf16.mxu0 0
    %424 = vmatpush1.bf16.msra.mxu0 0
    %425 = vmatprep.subr.bf16.mxu0 0
    %426 = vmatpush1.bf16.msra.mxu0 0
    %427 = vmatprep.subr.bf16.mxu0 0
    %428 = vmatpush1.bf16.msra.mxu0 0
    %429 = vmatprep.subr.bf16.mxu0 0
    %430 = vmatpush1.bf16.msra.mxu0 0
    %431 = vmatprep.subr.bf16.mxu0 0
    %432 = vmatpush1.bf16.msra.mxu0 0
    %433 = vmatprep.subr.bf16.mxu0 0
    %434 = vmatpush1.bf16.msra.mxu0 0
    %435 = vmatprep.subr.bf16.mxu0 0
    %436 = vmatpush1.bf16.msra.mxu0 0
    %437 = vmatprep.subr.bf16.mxu0 0
    %438 = vmatpush1.bf16.msra.mxu0 0
    %439 = vmatprep.subr.bf16.mxu0 0
    %440 = vmatpush1.bf16.msra.mxu0 0
    %441 = vmatprep.subr.bf16.mxu0 0
    %442 = vmatpush1.bf16.msra.mxu0 0
    %443 = vmatprep.subr.bf16.mxu0 0
    %444 = vmatpush1.bf16.msra.mxu0 0
    %445 = vmatprep.subr.bf16.mxu0 0
    %446 = vmatpush1.bf16.msra.mxu0 0
    %447 = vmatprep.subr.bf16.mxu0 0
    %448 = vmatpush1.bf16.msra.mxu0 0
    %449 = vmatprep.mubr.bf16.mxu0 0
    %450 = vmatmul.mubr.bf16.gmra.mrb[0].mxu0 %v412
    %v451 = vpop.f32.mrb[0].mxu0
    %v452 = vadd.f32 %v387, %v451
    %v453 = vpop.f32.mrb[0].mxu0
    %v454 = vpop.f32.mrb[0].mxu0
    %v455 = vadd.f32 %v390, %v454
    %v456 = vpop.f32.mrb[0].mxu0
    %457 = vmatprep.mubr.bf16.mxu0 0
    %458 = vmatmul.mubr.bf16.gmra.mrb[0].mxu0 %v415
    %v459 = vpop.f32.mrb[0].mxu0
    %v460 = vadd.f32 %v395, %v459
    %v461 = vpop.f32.mrb[0].mxu0
    %v462 = vpop.f32.mrb[0].mxu0
    %v463 = vadd.f32 %v398, %v462
    %v464 = vpop.f32.mrb[0].mxu0
    %465 = vdwg.mxu0
    %v466 = vld [vmem:[%s4] sm:$0xff]
    %v467 = vld [vmem:[%s4 + $0x8] sm:$0xff]
    %v468 = vld [vmem:[%s4 + $0x10] sm:$0xff]
    %v469 = vld [vmem:[%s4 + $0x18] sm:$0xff]
    %471 = vset.pattern.permute.xlu0 0
    %472 = vperm.xlu0 %471, %v466
    %v473 = vpop.permute.xlu0 %472
    %476 = vset.pattern.permute.xlu0 0
    %477 = vperm.xlu0 %476, %v467
    %v478 = vpop.permute.xlu0 %477
    %481 = vset.pattern.permute.xlu0 0
    %482 = vperm.xlu0 %481, %v468
    %v483 = vpop.permute.xlu0 %482
    %486 = vset.pattern.permute.xlu0 0
    %487 = vperm.xlu0 %486, %v469
    %v488 = vpop.permute.xlu0 %487
    %v490 = vadd.f32 %v452, %v473
    %v491 = vadd.f32 %v455, %v478
    %v492 = vadd.f32 %v460, %v483
    %v493 = vadd.f32 %v463, %v488
    %v494 = vmax.f32 %v490, 0.0
    %v495 = vmax.f32 %v491, 0.0
    %v496 = vmax.f32 %v492, 0.0
    %v497 = vmax.f32 %v493, 0.0
    %v498 = vld [vmem:[%s5] sm:$0xf]
    %v499 = vld [vmem:[%s5 + $0x4] sm:$0xf]
    %v500 = vld [vmem:[%s5 + $0x8] sm:$0xf]
    %v501 = vld [vmem:[%s5 + $0xc] sm:$0xf]
    %v502 = vpack.c.bf16 %v495, %v494
    %v503 = vpack.c.bf16 %v497, %v496
    %v504 = vld [vmem:[%s6] sm:$0xff]
    %v505 = vld [vmem:[%s6 + $0x8] sm:$0xff]
    %v506 = vld [vmem:[%s6 + $0x10] sm:$0xff]
    %v507 = vld [vmem:[%s6 + $0x18] sm:$0xff]
    %509 = vset.pattern.permute.xlu0 0
    %510 = vperm.xlu0 %509, %v504
    %v511 = vpop.permute.xlu0 %510
    %514 = vset.pattern.permute.xlu0 0
    %515 = vperm.xlu0 %514, %v505
    %v516 = vpop.permute.xlu0 %515
    %519 = vset.pattern.permute.xlu0 0
    %520 = vperm.xlu0 %519, %v506
    %v521 = vpop.permute.xlu0 %520
    %524 = vset.pattern.permute.xlu0 0
    %525 = vperm.xlu0 %524, %v507
    %v526 = vpop.permute.xlu0 %525
    %v532 = vunpack.c.l.b16 %v498
    %v533 = vunpack.c.l.b16 %v499
    %v534 = vunpack.c.l.b16 %v500
    %v535 = vunpack.c.l.b16 %v501
    %v536 = vpack.c.b16 %v533, %v532
    %v537 = vpack.c.b16 %v535, %v534
    %v539 = vsel %vm127, %v536, 0
    %v542 = vsel %vm127, %v537, 0
    %544 = vmatprep.subr.bf16.mxu0 0
    %545 = vmatpush1.bf16.msra.mxu0 %v502
    %546 = vmatprep.subr.bf16.mxu0 0
    %547 = vmatpush1.bf16.msra.mxu0 %v503
    %548 = vmatprep.subr.bf16.mxu0 0
    %549 = vmatpush1.bf16.msra.mxu0 0
    %550 = vmatprep.subr.bf16.mxu0 0
    %551 = vmatpush1.bf16.msra.mxu0 0
    %552 = vmatprep.subr.bf16.mxu0 0
    %553 = vmatpush1.bf16.msra.mxu0 0
    %554 = vmatprep.subr.bf16.mxu0 0
    %555 = vmatpush1.bf16.msra.mxu0 0
    %556 = vmatprep.subr.bf16.mxu0 0
    %557 = vmatpush1.bf16.msra.mxu0 0
    %558 = vmatprep.subr.bf16.mxu0 0
    %559 = vmatpush1.bf16.msra.mxu0 0
    %560 = vmatprep.subr.bf16.mxu0 0
    %561 = vmatpush1.bf16.msra.mxu0 0
    %562 = vmatprep.subr.bf16.mxu0 0
    %563 = vmatpush1.bf16.msra.mxu0 0
    %564 = vmatprep.subr.bf16.mxu0 0
    %565 = vmatpush1.bf16.msra.mxu0 0
    %566 = vmatprep.subr.bf16.mxu0 0
    %567 = vmatpush1.bf16.msra.mxu0 0
    %568 = vmatprep.subr.bf16.mxu0 0
    %569 = vmatpush1.bf16.msra.mxu0 0
    %570 = vmatprep.subr.bf16.mxu0 0
    %571 = vmatpush1.bf16.msra.mxu0 0
    %572 = vmatprep.subr.bf16.mxu0 0
    %573 = vmatpush1.bf16.msra.mxu0 0
    %574 = vmatprep.subr.bf16.mxu0 0
    %575 = vmatpush1.bf16.msra.mxu0 0
    %576 = vmatprep.mubr.bf16.mxu0 0
    %577 = vmatmul.mubr.bf16.gmra.mrb[0].mxu0 %v539
    %v578 = vpop.f32.mrb[0].mxu0
    %v579 = vadd.f32 %v511, %v578
    %v580 = vpop.f32.mrb[0].mxu0
    %v581 = vpop.f32.mrb[0].mxu0
    %v582 = vadd.f32 %v516, %v581
    %v583 = vpop.f32.mrb[0].mxu0
    %584 = vmatprep.mubr.bf16.mxu0 0
    %585 = vmatmul.mubr.bf16.gmra.mrb[0].mxu0 %v542
    %v586 = vpop.f32.mrb[0].mxu0
    %v587 = vadd.f32 %v521, %v586
    %v588 = vpop.f32.mrb[0].mxu0
    %v589 = vpop.f32.mrb[0].mxu0
    %v590 = vadd.f32 %v526, %v589
    %v591 = vpop.f32.mrb[0].mxu0
    %592 = vdwg.mxu0
    %s593 = scalar_lea.vmem [#allocation2], 32
    %594 = vst.msk [vmem:[%s593] sm:$0xff] %vm310, %v579
    %595 = vst.msk [vmem:[%s593 + $0x8] sm:$0xff] %vm310, %v582
    %596 = vst.msk [vmem:[%s593 + $0x10] sm:$0xff] %vm310, %v587
    %597 = vst.msk [vmem:[%s593 + $0x18] sm:$0xff] %vm310, %v590
    // Predicated region
    $region30: #{geometric_feature_extraction.5} parent=1 // pred_check
      _
    $region31: #{geometric_feature_extraction.5} parent=1 // pred_check_branch
      %599 = sbr.rel (0) target = $region33
    $region32: #{geometric_feature_extraction.5} parent=1 // pred_region
      %s601 = ssub.s32 1024, 1024
      %602 = vsyncadd [#allocation3], %s601
      %s603 = sshll.u32 [#allocation2], 4
      %s604 = int_to_ptr.vmem [resolvable:$true] %s603
      %609 = dma.vmem_to_hbm [thread:$0]  %s604, 1024, %s7, [#allocation3], 128, 128, 8
    $region33: #{geometric_feature_extraction.5} parent=1 // pred_fallthru
      _
    // Predicated region
    $region34: #{geometric_feature_extraction.5} parent=1 // pred_check
      _
    $region35: #{geometric_feature_extraction.5} parent=1 // pred_check_branch
      %611 = sbr.rel (0) target = $region37
    $region36: #{geometric_feature_extraction.5} parent=1 // pred_region
      %612 = dma.done [#allocation3], 1024
    $region37: #{geometric_feature_extraction.5} parent=1 // pred_fallthru
      _
    %613 = vsyncpa [#allocation3], 1

</llo_original>
